<compile_context>
chip_gen: v6e
topology: v6e:2x2x1
jax: 0.10.0
libtpu: 0.0.40
codegen_flags: <defaults>
</compile_context>

<pallas_src>
import math
import functools

import jax
import jax.numpy as jnp
from jax.experimental import pallas as pl
from jax.experimental.pallas import tpu as pltpu


def _mha_kernel(q_ref, kht_ref, vh_ref,
                wqt_ref, bq_ref, wot_ref, bo_ref, lnw_ref, lnb_ref,
                out_ref, attn_ref,
                qp_sc, m_sc, l_sc, acc_sc,
                *, num_heads, head_dim, ln_eps):
    """Grid = (q tiles, kv tiles).  Batch 0 only; K/V already projected."""
    H, ch = num_heads, head_dim
    scale = 1.0 / math.sqrt(ch)
    j = pl.program_id(1)

    @pl.when(j == 0)
    def _():
        # Q projection once per query tile: full-width (TQ, E) @ (E, D) matmul
        # (bf16 operands, f32 MXU accumulation), cached in VMEM for all kv steps.
        qp = jnp.dot(q_ref[...], wqt_ref[...],
                     preferred_element_type=jnp.float32) + bq_ref[...]
        qp_sc[...] = qp.astype(jnp.bfloat16)
        m_sc[...] = jnp.full(m_sc.shape, -jnp.inf, m_sc.dtype)
        l_sc[...] = jnp.zeros(l_sc.shape, l_sc.dtype)
        acc_sc[...] = jnp.zeros(acc_sc.shape, acc_sc.dtype)

    # Per-head attention; heads are lane-aligned column slabs (ch % 128 == 0 ->
    # free views, no transpose/concat inside the kernel).
    for h in range(H):
        lo, hi = h * ch, (h + 1) * ch
        q_h = qp_sc[:, lo:hi]                                         # (TQ, ch) bf16
        s = jnp.dot(q_h, kht_ref[h],
                    preferred_element_type=jnp.float32) * scale       # (TQ, TK) f32
        attn_ref[h] = s                                               # pre-softmax logits (lane-dense store)

        # Online softmax + PV accumulation (f32 stats).
        m_prev = m_sc[h]                                              # (TQ, 1)
        m_new = jnp.maximum(m_prev, jnp.max(s, axis=-1, keepdims=True))
        alpha = jnp.exp(m_prev - m_new)
        p = jnp.exp(s - m_new)
        l_sc[h] = alpha * l_sc[h] + jnp.sum(p, axis=-1, keepdims=True)
        pv = jnp.dot(p.astype(jnp.bfloat16), vh_ref[h],
                     preferred_element_type=jnp.float32)              # (TQ, ch)
        acc_sc[:, lo:hi] = alpha * acc_sc[:, lo:hi] + pv
        m_sc[h] = m_new

    @pl.when(j == pl.num_programs(1) - 1)
    def _():
        # Normalize per head (exact division).  Heads already sit as column
        # slabs of acc_sc -> one full-depth (TQ, D) @ (D, E) out_proj matmul.
        for h in range(H):
            lo, hi = h * ch, (h + 1) * ch
            acc_sc[:, lo:hi] = acc_sc[:, lo:hi] / l_sc[h]
        proj = jnp.dot(acc_sc[...].astype(jnp.bfloat16), wot_ref[...],
                       preferred_element_type=jnp.float32) + bo_ref[...]
        # dropout: identity in eval mode

        # LayerNorm over the embedding dim (eps matches the module: 1e-6).
        mean = jnp.mean(proj, axis=-1, keepdims=True)
        var = jnp.mean((proj - mean) ** 2, axis=-1, keepdims=True)
        normed = (proj - mean) * jax.lax.rsqrt(var + ln_eps)
        out_ref[...] = normed * lnw_ref[...] + lnb_ref[...]


def _pick_tile(n, candidates=(512, 256, 128)):
    """Largest MXU-friendly tile that divides n, preferring >=2 grid steps
    (keeps both v7x TensorCores busy); falls back to the full extent."""
    for t in candidates:
        if n % t == 0 and n // t >= 2:
            return t
    for t in candidates:
        if n % t == 0:
            return t
    return n


def muti_head_attention_pallas(q, k, v, params, *, num_heads, ln_eps=1e-6):
    B, Nq, E = q.shape
    _, Nk, _ = k.shape
    D = params["wq"].shape[0]              # internal_dim
    H = num_heads
    ch = D // H

    # The module returns only batch 0 -> drop the other batches (exactly equivalent).
    q0 = q[0].astype(jnp.bfloat16)         # (Nq, E)
    k0 = k[0].astype(jnp.bfloat16)         # (Nk, E)
    v0 = v[0].astype(jnp.bfloat16)         # (Nk, E)

    bf = lambda x: x.astype(jnp.bfloat16)

    # K / V projections are query-tile-invariant -> compute ONCE here with
    # plain XLA matmuls (bf16 in, f32 acc, f32 bias), then lay out per head
    # pre-transposed so the kernel never transposes grid-invariant data.
    kp = jnp.dot(k0, bf(params["wk"]).T,
                 preferred_element_type=jnp.float32) + params["bk"]    # (Nk, D)
    vp = jnp.dot(v0, bf(params["wv"]).T,
                 preferred_element_type=jnp.float32) + params["bv"]    # (Nk, D)
    kht = bf(kp).reshape(Nk, H, ch).transpose(1, 2, 0)                 # (H, ch, Nk)
    vh = bf(vp).reshape(Nk, H, ch).transpose(1, 0, 2)                  # (H, Nk, ch)

    # Full-width weight layouts for in-kernel matmuls.
    wqt = bf(params["wq"]).T                                           # (E, D)
    bq = params["bq"].astype(jnp.float32)                              # (1, D)
    wot = bf(params["wo"]).T                                           # (D, E)
    bo = params["bo"].astype(jnp.float32)                              # (1, E)
    lnw = params["ln_w"].astype(jnp.float32)                           # (1, E)
    lnb = params["ln_b"].astype(jnp.float32)                           # (1, E)

    TQ = _pick_tile(Nq)
    TK = _pick_tile(Nk)
    n_q, n_k = Nq // TQ, Nk // TK

    kernel = functools.partial(_mha_kernel, num_heads=H, head_dim=ch, ln_eps=ln_eps)

    def invariant(a):
        nd = a.ndim
        return pl.BlockSpec(a.shape, lambda i, j, _nd=nd: (0,) * _nd)

    out1, attn0 = pl.pallas_call(
        kernel,
        grid=(n_q, n_k),
        in_specs=[
            pl.BlockSpec((TQ, E), lambda i, j: (i, 0)),         # q tile
            pl.BlockSpec((H, ch, TK), lambda i, j: (0, 0, j)),  # projected K^T tile
            pl.BlockSpec((H, TK, ch), lambda i, j: (0, j, 0)),  # projected V tile
            invariant(wqt), invariant(bq),
            invariant(wot), invariant(bo),
            invariant(lnw), invariant(lnb),
        ],
        out_specs=[
            pl.BlockSpec((TQ, E), lambda i, j: (i, 0)),
            pl.BlockSpec((H, TQ, TK), lambda i, j: (0, i, j)),
        ],
        out_shape=[
            jax.ShapeDtypeStruct((Nq, E), jnp.float32),
            jax.ShapeDtypeStruct((H, Nq, Nk), jnp.float32),
        ],
        scratch_shapes=[
            pltpu.VMEM((TQ, D), jnp.bfloat16),    # cached Q projection for the q tile
            pltpu.VMEM((H, TQ, 1), jnp.float32),  # running max
            pltpu.VMEM((H, TQ, 1), jnp.float32),  # running denominator
            pltpu.VMEM((TQ, D), jnp.float32),     # un-normalized PV acc (heads = column slabs)
        ],
        compiler_params=pltpu.CompilerParams(
            dimension_semantics=("parallel", "arbitrary"),
            vmem_limit_bytes=48 * 1024 * 1024,    # safe on v5e/v6e/v7x (<= 64 MiB physical)
        ),
    )(q0, kht, vh, wqt, bq, wot, bo, lnw, lnb)

    return out1, attn0


def _reference(q, k, v, params, *, num_heads):
    """Pure-JAX reference mirroring the PyTorch forward (eval mode) with the same
    bf16-matmul / f32-accumulate precision policy as the kernel."""
    B, Nq, E = q.shape
    D = params["wq"].shape[0]
    ch = D // num_heads
    cast = lambda x: x.astype(jnp.bfloat16)

    def lin(x, w, b):
        return jnp.dot(cast(x), cast(w).T, preferred_element_type=jnp.float32) + b

    qp = lin(q, params["wq"], params["bq"])
    kp = lin(k, params["wk"], params["bk"])
    vp = lin(v, params["wv"], params["bv"])

    def sep(x):
        b, n, c = x.shape
        return x.reshape(b, n, num_heads, c // num_heads).transpose(0, 2, 1, 3)

    qh, kh, vh = sep(qp), sep(kp), sep(vp)
    attn = jnp.einsum("bhqc,bhkc->bhqk", cast(qh), cast(kh),
                      preferred_element_type=jnp.float32) / math.sqrt(ch)
    attn_out = attn
    p = jax.nn.softmax(attn, axis=-1)
    o = jnp.einsum("bhqk,bhkc->bhqc", cast(p), cast(vh),
                   preferred_element_type=jnp.float32)
    o = o.transpose(0, 2, 1, 3).reshape(B, Nq, D)
    o = jnp.dot(cast(o), cast(params["wo"]).T,
                preferred_element_type=jnp.float32) + params["bo"]
    mean = jnp.mean(o, axis=-1, keepdims=True)
    var = jnp.mean((o - mean) ** 2, axis=-1, keepdims=True)
    o = (o - mean) * jax.lax.rsqrt(var + 1e-6) * params["ln_w"] + params["ln_b"]
    return o[0], attn_out[0]


def init_params(key, embedding_dim, internal_dim):
    ks = jax.random.split(key, 8)
    s_in = 1.0 / math.sqrt(embedding_dim)
    s_out = 1.0 / math.sqrt(internal_dim)
    return {
        "wq": jax.random.uniform(ks[0], (internal_dim, embedding_dim), jnp.float32, -s_in, s_in),
        "bq": jax.random.uniform(ks[1], (1, internal_dim), jnp.float32, -s_in, s_in),
        "wk": jax.random.uniform(ks[2], (internal_dim, embedding_dim), jnp.float32, -s_in, s_in),
        "bk": jax.random.uniform(ks[3], (1, internal_dim), jnp.float32, -s_in, s_in),
        "wv": jax.random.uniform(ks[4], (internal_dim, embedding_dim), jnp.float32, -s_in, s_in),
        "bv": jax.random.uniform(ks[5], (1, internal_dim), jnp.float32, -s_in, s_in),
        "wo": jax.random.uniform(ks[6], (embedding_dim, internal_dim), jnp.float32, -s_out, s_out),
        "bo": jax.random.uniform(ks[7], (1, embedding_dim), jnp.float32, -s_out, s_out),
        "ln_w": jnp.ones((1, embedding_dim), jnp.float32),
        "ln_b": jnp.zeros((1, embedding_dim), jnp.float32),
    }


if __name__ == "__main__":
    # Small but TPU-aligned shapes (128-multiples -> lane-dense stores, full MXU tiles).
    B, Nq, Nk = 2, 256, 128
    embedding_dim, num_heads, downsample_rate = 256, 2, 1
    internal_dim = embedding_dim // downsample_rate

    key = jax.random.PRNGKey(0)
    kq, kk, kv, kp = jax.random.split(key, 4)
    q = jax.random.normal(kq, (B, Nq, embedding_dim), jnp.float32)
    k = jax.random.normal(kk, (B, Nk, embedding_dim), jnp.float32)
    v = jax.random.normal(kv, (B, Nk, embedding_dim), jnp.float32)
    params = init_params(kp, embedding_dim, internal_dim)

    out1, attn0 = muti_head_attention_pallas(q, k, v, params, num_heads=num_heads)
    out1 = jax.block_until_ready(out1)
    attn0 = jax.block_until_ready(attn0)

    ref_out1, ref_attn0 = _reference(q, k, v, params, num_heads=num_heads)
    ref_out1 = jax.block_until_ready(ref_out1)
    ref_attn0 = jax.block_until_ready(ref_attn0)

    assert out1.shape == (Nq, embedding_dim)
    assert attn0.shape == (num_heads, Nq, Nk)
    err_attn = float(jnp.max(jnp.abs(attn0 - ref_attn0)))
    err_out = float(jnp.max(jnp.abs(out1 - ref_out1)))
    assert jnp.allclose(attn0, ref_attn0, atol=2e-3, rtol=2e-3), err_attn
    assert jnp.allclose(out1, ref_out1, atol=2e-2, rtol=2e-2), err_out

    print("KERNEL_OK")
</pallas_src>

<mosaic_0001>
module attributes {stable_mosaic.version = 11 : i64} {
  func.func @_mha_kernel(%arg0: i32, %arg1: i32, %arg2: memref<128x256xbf16, #tpu.memory_space<vmem>>, %arg3: memref<2x128x128xbf16, #tpu.memory_space<vmem>>, %arg4: memref<2x128x128xbf16, #tpu.memory_space<vmem>>, %arg5: memref<256x256xbf16, #tpu.memory_space<vmem>>, %arg6: memref<1x256xf32, #tpu.memory_space<vmem>>, %arg7: memref<256x256xbf16, #tpu.memory_space<vmem>>, %arg8: memref<1x256xf32, #tpu.memory_space<vmem>>, %arg9: memref<1x256xf32, #tpu.memory_space<vmem>>, %arg10: memref<1x256xf32, #tpu.memory_space<vmem>>, %arg11: memref<128x256xf32, #tpu.memory_space<vmem>>, %arg12: memref<2x128x128xf32, #tpu.memory_space<vmem>>, %arg13: memref<128x256xbf16, #tpu.memory_space<vmem>>, %arg14: memref<2x128x1xf32, #tpu.memory_space<vmem>>, %arg15: memref<2x128x1xf32, #tpu.memory_space<vmem>>, %arg16: memref<128x256xf32, #tpu.memory_space<vmem>>) attributes {dimension_semantics = [#tpu.dimension_semantics<parallel>, #tpu.dimension_semantics<arbitrary>], iteration_bounds = array<i64: 2, 1>, scalar_prefetch = 0 : i64, scratch_operands = 4 : i64, tpu.core_type = #tpu.core_type<tc>, window_params = [{transform_indices = @transform_0, window_bounds = array<i64: 128, 256>}, {transform_indices = @transform_1, window_bounds = array<i64: 2, 128, 128>}, {transform_indices = @transform_2, window_bounds = array<i64: 2, 128, 128>}, {pipeline_mode = #tpu.pipeline_mode<synchronous>, transform_indices = @transform_3, window_bounds = array<i64: 256, 256>}, {pipeline_mode = #tpu.pipeline_mode<synchronous>, transform_indices = @transform_4, window_bounds = array<i64: 1, 256>}, {pipeline_mode = #tpu.pipeline_mode<synchronous>, transform_indices = @transform_5, window_bounds = array<i64: 256, 256>}, {pipeline_mode = #tpu.pipeline_mode<synchronous>, transform_indices = @transform_6, window_bounds = array<i64: 1, 256>}, {pipeline_mode = #tpu.pipeline_mode<synchronous>, transform_indices = @transform_7, window_bounds = array<i64: 1, 256>}, {pipeline_mode = #tpu.pipeline_mode<synchronous>, transform_indices = @transform_8, window_bounds = array<i64: 1, 256>}, {transform_indices = @transform_9, window_bounds = array<i64: 128, 256>}, {transform_indices = @transform_10, window_bounds = array<i64: 2, 128, 128>}]} {
    %c0_i32 = arith.constant 0 : i32
    %0 = arith.cmpi eq, %arg1, %c0_i32 : i32
    %1 = arith.extui %0 : i1 to i32
    %c0_i32_0 = arith.constant 0 : i32
    %2 = arith.cmpi ne, %1, %c0_i32_0 : i32
    scf.if %2 {
      %c0_63 = arith.constant 0 : index
      %c0_64 = arith.constant 0 : index
      %86 = vector.load %arg2[%c0_63, %c0_64] : memref<128x256xbf16, #tpu.memory_space<vmem>>, vector<128x256xbf16>
      %c0_65 = arith.constant 0 : index
      %c0_66 = arith.constant 0 : index
      %87 = vector.load %arg5[%c0_65, %c0_66] : memref<256x256xbf16, #tpu.memory_space<vmem>>, vector<256x256xbf16>
      %cst_67 = arith.constant dense<0.000000e+00> : vector<128x256xf32>
      %88 = tpu.matmul %86, %87, %cst_67 {dimension_numbers = #tpu.dot_dimension_numbers<[1], [0], [0], [1], [0, 0, 1, 1], [], []>} : vector<128x256xbf16>, vector<256x256xbf16>, vector<128x256xf32> -> vector<128x256xf32>
      %c0_68 = arith.constant 0 : index
      %c0_69 = arith.constant 0 : index
      %89 = vector.load %arg6[%c0_68, %c0_69] : memref<1x256xf32, #tpu.memory_space<vmem>>, vector<1x256xf32>
      %90 = vector.broadcast %89 : vector<1x256xf32> to vector<128x256xf32>
      %91 = arith.addf %88, %90 : vector<128x256xf32>
      %92 = arith.truncf %91 : vector<128x256xf32> to vector<128x256xbf16>
      %c0_70 = arith.constant 0 : index
      %c0_71 = arith.constant 0 : index
      %93 = vector.load %arg13[%c0_70, %c0_71] : memref<128x256xbf16, #tpu.memory_space<vmem>>, vector<128x256xbf16>
      tpu.vector_store %arg13[%c0_70, %c0_71], %92 {strides = array<i32>} : memref<128x256xbf16, #tpu.memory_space<vmem>>, vector<128x256xbf16>,
      %cst_72 = arith.constant 0xFF800000 : f32
      %94 = vector.broadcast %cst_72 : f32 to vector<2x128x1xf32>
      %c0_73 = arith.constant 0 : index
      %c0_74 = arith.constant 0 : index
      %c0_75 = arith.constant 0 : index
      %95 = vector.load %arg14[%c0_73, %c0_74, %c0_75] : memref<2x128x1xf32, #tpu.memory_space<vmem>>, vector<2x128x1xf32>
      tpu.vector_store %arg14[%c0_73, %c0_74, %c0_75], %94 {strides = array<i32>} : memref<2x128x1xf32, #tpu.memory_space<vmem>>, vector<2x128x1xf32>,
      %cst_76 = arith.constant 0.000000e+00 : f32
      %96 = vector.broadcast %cst_76 : f32 to vector<2x128x1xf32>
      %c0_77 = arith.constant 0 : index
      %c0_78 = arith.constant 0 : index
      %c0_79 = arith.constant 0 : index
      %97 = vector.load %arg15[%c0_77, %c0_78, %c0_79] : memref<2x128x1xf32, #tpu.memory_space<vmem>>, vector<2x128x1xf32>
      tpu.vector_store %arg15[%c0_77, %c0_78, %c0_79], %96 {strides = array<i32>} : memref<2x128x1xf32, #tpu.memory_space<vmem>>, vector<2x128x1xf32>,
      %cst_80 = arith.constant 0.000000e+00 : f32
      %98 = vector.broadcast %cst_80 : f32 to vector<128x256xf32>
      %c0_81 = arith.constant 0 : index
      %c0_82 = arith.constant 0 : index
      %99 = vector.load %arg16[%c0_81, %c0_82] : memref<128x256xf32, #tpu.memory_space<vmem>>, vector<128x256xf32>
      tpu.vector_store %arg16[%c0_81, %c0_82], %98 {strides = array<i32>} : memref<128x256xf32, #tpu.memory_space<vmem>>, vector<128x256xf32>,
    } else {
    }
    %c0 = arith.constant 0 : index
    %c0_1 = arith.constant 0 : index
    %3 = vector.load %arg13[%c0, %c0_1] : memref<128x256xbf16, #tpu.memory_space<vmem>>, vector<128x128xbf16>
    %c0_2 = arith.constant 0 : index
    %c0_3 = arith.constant 0 : index
    %c0_4 = arith.constant 0 : index
    %4 = vector.load %arg3[%c0_2, %c0_3, %c0_4] : memref<2x128x128xbf16, #tpu.memory_space<vmem>>, vector<1x128x128xbf16>
    %5 = vector.shape_cast %4 : vector<1x128x128xbf16> to vector<128x128xbf16>
    %cst = arith.constant dense<0.000000e+00> : vector<128x128xf32>
    %6 = tpu.matmul %3, %5, %cst {dimension_numbers = #tpu.dot_dimension_numbers<[1], [0], [0], [1], [0, 0, 1, 1], [], []>} : vector<128x128xbf16>, vector<128x128xbf16>, vector<128x128xf32> -> vector<128x128xf32>
    %cst_5 = arith.constant 0.0883883461 : f32
    %7 = vector.broadcast %cst_5 : f32 to vector<128x128xf32>
    %8 = arith.mulf %6, %7 : vector<128x128xf32>
    %c0_6 = arith.constant 0 : index
    %c0_7 = arith.constant 0 : index
    %c0_8 = arith.constant 0 : index
    %9 = vector.load %arg12[%c0_6, %c0_7, %c0_8] : memref<2x128x128xf32, #tpu.memory_space<vmem>>, vector<1x128x128xf32>
    %10 = vector.shape_cast %9 : vector<1x128x128xf32> to vector<128x128xf32>
    %11 = vector.shape_cast %8 : vector<128x128xf32> to vector<1x128x128xf32>
    tpu.vector_store %arg12[%c0_6, %c0_7, %c0_8], %11 {strides = array<i32>} : memref<2x128x128xf32, #tpu.memory_space<vmem>>, vector<1x128x128xf32>,
    %c0_9 = arith.constant 0 : index
    %c0_10 = arith.constant 0 : index
    %c0_11 = arith.constant 0 : index
    %12 = vector.load %arg14[%c0_9, %c0_10, %c0_11] : memref<2x128x1xf32, #tpu.memory_space<vmem>>, vector<1x128x1xf32>
    %13 = vector.shape_cast %12 : vector<1x128x1xf32> to vector<128x1xf32>
    %cst_12 = arith.constant dense<0xFF800000> : vector<128xf32>
    %14 = vector.multi_reduction <maximumf>, %8, %cst_12 [1] : vector<128x128xf32> to vector<128xf32>
    %15 = vector.shape_cast %14 : vector<128xf32> to vector<128x1xf32>
    %16 = arith.maximumf %13, %15 : vector<128x1xf32>
    %17 = arith.subf %13, %16 : vector<128x1xf32>
    %18 = math.exp %17 : vector<128x1xf32>
    %19 = vector.broadcast %16 : vector<128x1xf32> to vector<128x128xf32>
    %20 = arith.subf %8, %19 : vector<128x128xf32>
    %21 = math.exp %20 : vector<128x128xf32>
    %c0_13 = arith.constant 0 : index
    %c0_14 = arith.constant 0 : index
    %c0_15 = arith.constant 0 : index
    %22 = vector.load %arg15[%c0_13, %c0_14, %c0_15] : memref<2x128x1xf32, #tpu.memory_space<vmem>>, vector<1x128x1xf32>
    %23 = vector.shape_cast %22 : vector<1x128x1xf32> to vector<128x1xf32>
    %24 = arith.mulf %18, %23 : vector<128x1xf32>
    %cst_16 = arith.constant dense<0.000000e+00> : vector<128xf32>
    %25 = vector.multi_reduction <add>, %21, %cst_16 [1] : vector<128x128xf32> to vector<128xf32>
    %26 = vector.shape_cast %25 : vector<128xf32> to vector<128x1xf32>
    %27 = arith.addf %24, %26 : vector<128x1xf32>
    %c0_17 = arith.constant 0 : index
    %c0_18 = arith.constant 0 : index
    %c0_19 = arith.constant 0 : index
    %28 = vector.load %arg15[%c0_17, %c0_18, %c0_19] : memref<2x128x1xf32, #tpu.memory_space<vmem>>, vector<1x128x1xf32>
    %29 = vector.shape_cast %28 : vector<1x128x1xf32> to vector<128x1xf32>
    %30 = vector.shape_cast %27 : vector<128x1xf32> to vector<1x128x1xf32>
    tpu.vector_store %arg15[%c0_17, %c0_18, %c0_19], %30 {strides = array<i32>} : memref<2x128x1xf32, #tpu.memory_space<vmem>>, vector<1x128x1xf32>,
    %31 = arith.truncf %21 : vector<128x128xf32> to vector<128x128xbf16>
    %c0_20 = arith.constant 0 : index
    %c0_21 = arith.constant 0 : index
    %c0_22 = arith.constant 0 : index
    %32 = vector.load %arg4[%c0_20, %c0_21, %c0_22] : memref<2x128x128xbf16, #tpu.memory_space<vmem>>, vector<1x128x128xbf16>
    %33 = vector.shape_cast %32 : vector<1x128x128xbf16> to vector<128x128xbf16>
    %cst_23 = arith.constant dense<0.000000e+00> : vector<128x128xf32>
    %34 = tpu.matmul %31, %33, %cst_23 {dimension_numbers = #tpu.dot_dimension_numbers<[1], [0], [0], [1], [0, 0, 1, 1], [], []>} : vector<128x128xbf16>, vector<128x128xbf16>, vector<128x128xf32> -> vector<128x128xf32>
    %c0_24 = arith.constant 0 : index
    %c0_25 = arith.constant 0 : index
    %35 = vector.load %arg16[%c0_24, %c0_25] : memref<128x256xf32, #tpu.memory_space<vmem>>, vector<128x128xf32>
    %36 = vector.broadcast %18 : vector<128x1xf32> to vector<128x128xf32>
    %37 = arith.mulf %36, %35 : vector<128x128xf32>
    %38 = arith.addf %37, %34 : vector<128x128xf32>
    %c0_26 = arith.constant 0 : index
    %c0_27 = arith.constant 0 : index
    %39 = vector.load %arg16[%c0_26, %c0_27] : memref<128x256xf32, #tpu.memory_space<vmem>>, vector<128x128xf32>
    tpu.vector_store %arg16[%c0_26, %c0_27], %38 {strides = array<i32>} : memref<128x256xf32, #tpu.memory_space<vmem>>, vector<128x128xf32>,
    %c0_28 = arith.constant 0 : index
    %c0_29 = arith.constant 0 : index
    %c0_30 = arith.constant 0 : index
    %40 = vector.load %arg14[%c0_28, %c0_29, %c0_30] : memref<2x128x1xf32, #tpu.memory_space<vmem>>, vector<1x128x1xf32>
    %41 = vector.shape_cast %40 : vector<1x128x1xf32> to vector<128x1xf32>
    %42 = vector.shape_cast %16 : vector<128x1xf32> to vector<1x128x1xf32>
    tpu.vector_store %arg14[%c0_28, %c0_29, %c0_30], %42 {strides = array<i32>} : memref<2x128x1xf32, #tpu.memory_space<vmem>>, vector<1x128x1xf32>,
    %c0_31 = arith.constant 0 : index
    %c128 = arith.constant 128 : index
    %43 = vector.load %arg13[%c0_31, %c128] : memref<128x256xbf16, #tpu.memory_space<vmem>>, vector<128x128xbf16>
    %c1 = arith.constant 1 : index
    %c0_32 = arith.constant 0 : index
    %c0_33 = arith.constant 0 : index
    %44 = vector.load %arg3[%c1, %c0_32, %c0_33] : memref<2x128x128xbf16, #tpu.memory_space<vmem>>, vector<1x128x128xbf16>
    %45 = vector.shape_cast %44 : vector<1x128x128xbf16> to vector<128x128xbf16>
    %cst_34 = arith.constant dense<0.000000e+00> : vector<128x128xf32>
    %46 = tpu.matmul %43, %45, %cst_34 {dimension_numbers = #tpu.dot_dimension_numbers<[1], [0], [0], [1], [0, 0, 1, 1], [], []>} : vector<128x128xbf16>, vector<128x128xbf16>, vector<128x128xf32> -> vector<128x128xf32>
    %cst_35 = arith.constant 0.0883883461 : f32
    %47 = vector.broadcast %cst_35 : f32 to vector<128x128xf32>
    %48 = arith.mulf %46, %47 : vector<128x128xf32>
    %c1_36 = arith.constant 1 : index
    %c0_37 = arith.constant 0 : index
    %c0_38 = arith.constant 0 : index
    %49 = vector.load %arg12[%c1_36, %c0_37, %c0_38] : memref<2x128x128xf32, #tpu.memory_space<vmem>>, vector<1x128x128xf32>
    %50 = vector.shape_cast %49 : vector<1x128x128xf32> to vector<128x128xf32>
    %51 = vector.shape_cast %48 : vector<128x128xf32> to vector<1x128x128xf32>
    tpu.vector_store %arg12[%c1_36, %c0_37, %c0_38], %51 {strides = array<i32>} : memref<2x128x128xf32, #tpu.memory_space<vmem>>, vector<1x128x128xf32>,
    %c1_39 = arith.constant 1 : index
    %c0_40 = arith.constant 0 : index
    %c0_41 = arith.constant 0 : index
    %52 = vector.load %arg14[%c1_39, %c0_40, %c0_41] : memref<2x128x1xf32, #tpu.memory_space<vmem>>, vector<1x128x1xf32>
    %53 = vector.shape_cast %52 : vector<1x128x1xf32> to vector<128x1xf32>
    %cst_42 = arith.constant dense<0xFF800000> : vector<128xf32>
    %54 = vector.multi_reduction <maximumf>, %48, %cst_42 [1] : vector<128x128xf32> to vector<128xf32>
    %55 = vector.shape_cast %54 : vector<128xf32> to vector<128x1xf32>
    %56 = arith.maximumf %53, %55 : vector<128x1xf32>
    %57 = arith.subf %53, %56 : vector<128x1xf32>
    %58 = math.exp %57 : vector<128x1xf32>
    %59 = vector.broadcast %56 : vector<128x1xf32> to vector<128x128xf32>
    %60 = arith.subf %48, %59 : vector<128x128xf32>
    %61 = math.exp %60 : vector<128x128xf32>
    %c1_43 = arith.constant 1 : index
    %c0_44 = arith.constant 0 : index
    %c0_45 = arith.constant 0 : index
    %62 = vector.load %arg15[%c1_43, %c0_44, %c0_45] : memref<2x128x1xf32, #tpu.memory_space<vmem>>, vector<1x128x1xf32>
    %63 = vector.shape_cast %62 : vector<1x128x1xf32> to vector<128x1xf32>
    %64 = arith.mulf %58, %63 : vector<128x1xf32>
    %cst_46 = arith.constant dense<0.000000e+00> : vector<128xf32>
    %65 = vector.multi_reduction <add>, %61, %cst_46 [1] : vector<128x128xf32> to vector<128xf32>
    %66 = vector.shape_cast %65 : vector<128xf32> to vector<128x1xf32>
    %67 = arith.addf %64, %66 : vector<128x1xf32>
    %c1_47 = arith.constant 1 : index
    %c0_48 = arith.constant 0 : index
    %c0_49 = arith.constant 0 : index
    %68 = vector.load %arg15[%c1_47, %c0_48, %c0_49] : memref<2x128x1xf32, #tpu.memory_space<vmem>>, vector<1x128x1xf32>
    %69 = vector.shape_cast %68 : vector<1x128x1xf32> to vector<128x1xf32>
    %70 = vector.shape_cast %67 : vector<128x1xf32> to vector<1x128x1xf32>
    tpu.vector_store %arg15[%c1_47, %c0_48, %c0_49], %70 {strides = array<i32>} : memref<2x128x1xf32, #tpu.memory_space<vmem>>, vector<1x128x1xf32>,
    %71 = arith.truncf %61 : vector<128x128xf32> to vector<128x128xbf16>
    %c1_50 = arith.constant 1 : index
    %c0_51 = arith.constant 0 : index
    %c0_52 = arith.constant 0 : index
    %72 = vector.load %arg4[%c1_50, %c0_51, %c0_52] : memref<2x128x128xbf16, #tpu.memory_space<vmem>>, vector<1x128x128xbf16>
    %73 = vector.shape_cast %72 : vector<1x128x128xbf16> to vector<128x128xbf16>
    %cst_53 = arith.constant dense<0.000000e+00> : vector<128x128xf32>
    %74 = tpu.matmul %71, %73, %cst_53 {dimension_numbers = #tpu.dot_dimension_numbers<[1], [0], [0], [1], [0, 0, 1, 1], [], []>} : vector<128x128xbf16>, vector<128x128xbf16>, vector<128x128xf32> -> vector<128x128xf32>
    %c0_54 = arith.constant 0 : index
    %c128_55 = arith.constant 128 : index
    %75 = vector.load %arg16[%c0_54, %c128_55] : memref<128x256xf32, #tpu.memory_space<vmem>>, vector<128x128xf32>
    %76 = vector.broadcast %58 : vector<128x1xf32> to vector<128x128xf32>
    %77 = arith.mulf %76, %75 : vector<128x128xf32>
    %78 = arith.addf %77, %74 : vector<128x128xf32>
    %c0_56 = arith.constant 0 : index
    %c128_57 = arith.constant 128 : index
    %79 = vector.load %arg16[%c0_56, %c128_57] : memref<128x256xf32, #tpu.memory_space<vmem>>, vector<128x128xf32>
    tpu.vector_store %arg16[%c0_56, %c128_57], %78 {strides = array<i32>} : memref<128x256xf32, #tpu.memory_space<vmem>>, vector<128x128xf32>,
    %c1_58 = arith.constant 1 : index
    %c0_59 = arith.constant 0 : index
    %c0_60 = arith.constant 0 : index
    %80 = vector.load %arg14[%c1_58, %c0_59, %c0_60] : memref<2x128x1xf32, #tpu.memory_space<vmem>>, vector<1x128x1xf32>
    %81 = vector.shape_cast %80 : vector<1x128x1xf32> to vector<128x1xf32>
    %82 = vector.shape_cast %56 : vector<128x1xf32> to vector<1x128x1xf32>
    tpu.vector_store %arg14[%c1_58, %c0_59, %c0_60], %82 {strides = array<i32>} : memref<2x128x1xf32, #tpu.memory_space<vmem>>, vector<1x128x1xf32>,
    %c0_i32_61 = arith.constant 0 : i32
    %83 = arith.cmpi eq, %arg1, %c0_i32_61 : i32
    %84 = arith.extui %83 : i1 to i32
    %c0_i32_62 = arith.constant 0 : i32
    %85 = arith.cmpi ne, %84, %c0_i32_62 : i32
    scf.if %85 {
      %c0_63 = arith.constant 0 : index
      %c0_64 = arith.constant 0 : index
      %86 = vector.load %arg16[%c0_63, %c0_64] : memref<128x256xf32, #tpu.memory_space<vmem>>, vector<128x128xf32>
      %c0_65 = arith.constant 0 : index
      %c0_66 = arith.constant 0 : index
      %c0_67 = arith.constant 0 : index
      %87 = vector.load %arg15[%c0_65, %c0_66, %c0_67] : memref<2x128x1xf32, #tpu.memory_space<vmem>>, vector<1x128x1xf32>
      %88 = vector.shape_cast %87 : vector<1x128x1xf32> to vector<128x1xf32>
      %89 = vector.broadcast %88 : vector<128x1xf32> to vector<128x128xf32>
      %90 = arith.divf %86, %89 : vector<128x128xf32>
      %c0_68 = arith.constant 0 : index
      %c0_69 = arith.constant 0 : index
      %91 = vector.load %arg16[%c0_68, %c0_69] : memref<128x256xf32, #tpu.memory_space<vmem>>, vector<128x128xf32>
      tpu.vector_store %arg16[%c0_68, %c0_69], %90 {strides = array<i32>} : memref<128x256xf32, #tpu.memory_space<vmem>>, vector<128x128xf32>,
      %c0_70 = arith.constant 0 : index
      %c128_71 = arith.constant 128 : index
      %92 = vector.load %arg16[%c0_70, %c128_71] : memref<128x256xf32, #tpu.memory_space<vmem>>, vector<128x128xf32>
      %c1_72 = arith.constant 1 : index
      %c0_73 = arith.constant 0 : index
      %c0_74 = arith.constant 0 : index
      %93 = vector.load %arg15[%c1_72, %c0_73, %c0_74] : memref<2x128x1xf32, #tpu.memory_space<vmem>>, vector<1x128x1xf32>
      %94 = vector.shape_cast %93 : vector<1x128x1xf32> to vector<128x1xf32>
      %95 = vector.broadcast %94 : vector<128x1xf32> to vector<128x128xf32>
      %96 = arith.divf %92, %95 : vector<128x128xf32>
      %c0_75 = arith.constant 0 : index
      %c128_76 = arith.constant 128 : index
      %97 = vector.load %arg16[%c0_75, %c128_76] : memref<128x256xf32, #tpu.memory_space<vmem>>, vector<128x128xf32>
      tpu.vector_store %arg16[%c0_75, %c128_76], %96 {strides = array<i32>} : memref<128x256xf32, #tpu.memory_space<vmem>>, vector<128x128xf32>,
      %c0_77 = arith.constant 0 : index
      %c0_78 = arith.constant 0 : index
      %98 = vector.load %arg16[%c0_77, %c0_78] : memref<128x256xf32, #tpu.memory_space<vmem>>, vector<128x256xf32>
      %99 = arith.truncf %98 : vector<128x256xf32> to vector<128x256xbf16>
      %c0_79 = arith.constant 0 : index
      %c0_80 = arith.constant 0 : index
      %100 = vector.load %arg7[%c0_79, %c0_80] : memref<256x256xbf16, #tpu.memory_space<vmem>>, vector<256x256xbf16>
      %cst_81 = arith.constant dense<0.000000e+00> : vector<128x256xf32>
      %101 = tpu.matmul %99, %100, %cst_81 {dimension_numbers = #tpu.dot_dimension_numbers<[1], [0], [0], [1], [0, 0, 1, 1], [], []>} : vector<128x256xbf16>, vector<256x256xbf16>, vector<128x256xf32> -> vector<128x256xf32>
      %c0_82 = arith.constant 0 : index
      %c0_83 = arith.constant 0 : index
      %102 = vector.load %arg8[%c0_82, %c0_83] : memref<1x256xf32, #tpu.memory_space<vmem>>, vector<1x256xf32>
      %103 = vector.broadcast %102 : vector<1x256xf32> to vector<128x256xf32>
      %104 = arith.addf %101, %103 : vector<128x256xf32>
      %cst_84 = arith.constant dense<0.000000e+00> : vector<128xf32>
      %105 = vector.multi_reduction <add>, %104, %cst_84 [1] : vector<128x256xf32> to vector<128xf32>
      %106 = vector.shape_cast %105 : vector<128xf32> to vector<128x1xf32>
      %cst_85 = arith.constant 2.560000e+02 : f32
      %107 = vector.broadcast %cst_85 : f32 to vector<128x1xf32>
      %108 = arith.divf %106, %107 : vector<128x1xf32>
      %109 = vector.broadcast %108 : vector<128x1xf32> to vector<128x256xf32>
      %110 = arith.subf %104, %109 : vector<128x256xf32>
      %111 = arith.mulf %110, %110 : vector<128x256xf32>
      %cst_86 = arith.constant dense<0.000000e+00> : vector<128xf32>
      %112 = vector.multi_reduction <add>, %111, %cst_86 [1] : vector<128x256xf32> to vector<128xf32>
      %113 = vector.shape_cast %112 : vector<128xf32> to vector<128x1xf32>
      %cst_87 = arith.constant 2.560000e+02 : f32
      %114 = vector.broadcast %cst_87 : f32 to vector<128x1xf32>
      %115 = arith.divf %113, %114 : vector<128x1xf32>
      %116 = vector.broadcast %108 : vector<128x1xf32> to vector<128x256xf32>
      %117 = arith.subf %104, %116 : vector<128x256xf32>
      %cst_88 = arith.constant 9.99999997E-7 : f32
      %118 = vector.broadcast %cst_88 : f32 to vector<128x1xf32>
      %119 = arith.addf %115, %118 : vector<128x1xf32>
      %120 = math.rsqrt %119 : vector<128x1xf32>
      %121 = vector.broadcast %120 : vector<128x1xf32> to vector<128x256xf32>
      %122 = arith.mulf %117, %121 : vector<128x256xf32>
      %c0_89 = arith.constant 0 : index
      %c0_90 = arith.constant 0 : index
      %123 = vector.load %arg9[%c0_89, %c0_90] : memref<1x256xf32, #tpu.memory_space<vmem>>, vector<1x256xf32>
      %124 = vector.broadcast %123 : vector<1x256xf32> to vector<128x256xf32>
      %125 = arith.mulf %122, %124 : vector<128x256xf32>
      %c0_91 = arith.constant 0 : index
      %c0_92 = arith.constant 0 : index
      %126 = vector.load %arg10[%c0_91, %c0_92] : memref<1x256xf32, #tpu.memory_space<vmem>>, vector<1x256xf32>
      %127 = vector.broadcast %126 : vector<1x256xf32> to vector<128x256xf32>
      %128 = arith.addf %125, %127 : vector<128x256xf32>
      %c0_93 = arith.constant 0 : index
      %c0_94 = arith.constant 0 : index
      %129 = vector.load %arg11[%c0_93, %c0_94] : memref<128x256xf32, #tpu.memory_space<vmem>>, vector<128x256xf32>
      tpu.vector_store %arg11[%c0_93, %c0_94], %128 {strides = array<i32>} : memref<128x256xf32, #tpu.memory_space<vmem>>, vector<128x256xf32>,
    } else {
    }
    return
  }
  func.func @transform_0(%arg0: i32, %arg1: i32) -> (i32, i32) {
    %c0_i32 = arith.constant 0 : i32
    %c0_i32_0 = arith.constant 0 : i32
    return %arg0, %c0_i32 : i32, i32
  }
  func.func @transform_1(%arg0: i32, %arg1: i32) -> (i32, i32, i32) {
    %c0_i32 = arith.constant 0 : i32
    %c0_i32_0 = arith.constant 0 : i32
    %c0_i32_1 = arith.constant 0 : i32
    return %c0_i32, %c0_i32_0, %arg1 : i32, i32, i32
  }
  func.func @transform_2(%arg0: i32, %arg1: i32) -> (i32, i32, i32) {
    %c0_i32 = arith.constant 0 : i32
    %c0_i32_0 = arith.constant 0 : i32
    %c0_i32_1 = arith.constant 0 : i32
    return %c0_i32, %arg1, %c0_i32_0 : i32, i32, i32
  }
  func.func @transform_3(%arg0: i32, %arg1: i32) -> (i32, i32) {
    %c0_i32 = arith.constant 0 : i32
    %c0_i32_0 = arith.constant 0 : i32
    %c0_i32_1 = arith.constant 0 : i32
    return %c0_i32, %c0_i32_0 : i32, i32
  }
  func.func @transform_4(%arg0: i32, %arg1: i32) -> (i32, i32) {
    %c0_i32 = arith.constant 0 : i32
    %c0_i32_0 = arith.constant 0 : i32
    %c0_i32_1 = arith.constant 0 : i32
    return %c0_i32, %c0_i32_0 : i32, i32
  }
  func.func @transform_5(%arg0: i32, %arg1: i32) -> (i32, i32) {
    %c0_i32 = arith.constant 0 : i32
    %c0_i32_0 = arith.constant 0 : i32
    %c0_i32_1 = arith.constant 0 : i32
    return %c0_i32, %c0_i32_0 : i32, i32
  }
  func.func @transform_6(%arg0: i32, %arg1: i32) -> (i32, i32) {
    %c0_i32 = arith.constant 0 : i32
    %c0_i32_0 = arith.constant 0 : i32
    %c0_i32_1 = arith.constant 0 : i32
    return %c0_i32, %c0_i32_0 : i32, i32
  }
  func.func @transform_7(%arg0: i32, %arg1: i32) -> (i32, i32) {
    %c0_i32 = arith.constant 0 : i32
    %c0_i32_0 = arith.constant 0 : i32
    %c0_i32_1 = arith.constant 0 : i32
    return %c0_i32, %c0_i32_0 : i32, i32
  }
  func.func @transform_8(%arg0: i32, %arg1: i32) -> (i32, i32) {
    %c0_i32 = arith.constant 0 : i32
    %c0_i32_0 = arith.constant 0 : i32
    %c0_i32_1 = arith.constant 0 : i32
    return %c0_i32, %c0_i32_0 : i32, i32
  }
  func.func @transform_9(%arg0: i32, %arg1: i32) -> (i32, i32) {
    %c0_i32 = arith.constant 0 : i32
    %c0_i32_0 = arith.constant 0 : i32
    return %arg0, %c0_i32 : i32, i32
  }
  func.func @transform_10(%arg0: i32, %arg1: i32) -> (i32, i32, i32) {
    %c0_i32 = arith.constant 0 : i32
    %c0_i32_0 = arith.constant 0 : i32
    return %c0_i32, %arg0, %arg1 : i32, i32, i32
  }
}

</mosaic_0001>

<llo_original>
// kernel: tpu_custom_call.1
$region0: #{tpu_custom_call.1}
  #allocation0 [shape = 'u32[]', space=smem, size = 0x4, offset = 0x4, fixed_abs, tag = 'smem constant byte address 0x4 - core index']
  #allocation1 [shape = 'u32[144,128]{1,0:T(1,128)}', space=vmem, size = 0x12000, scoped, tag = 'internal scratch']
  #allocation2 [shape = 'bf16[128,256]{1,0:T(8,128)(2,1)}', space=vmem, size = 0x10000, scoped, tag = 'scratch operand']
  #allocation3 [shape = 'f32[2,128,1]{2,1,0:T(8,128)}', space=vmem, size = 0x20000, scoped, tag = 'scratch operand']
  #allocation4 [shape = 'f32[2,128,1]{2,1,0:T(8,128)}', space=vmem, size = 0x20000, scoped, tag = 'scratch operand']
  #allocation5 [shape = 'f32[128,256]{1,0:T(8,128)}', space=vmem, size = 0x20000, scoped, tag = 'scratch operand']
  #allocation18 [shape = 's32[]', space=sflag, size = 0x4, offset = 0, fixed_abs, tag = 'sflag constant byte address 0x0 - dummy sync flag']
  %s0 = inlined_call_operand.hbm [shape: bf16[256,256], index: 0, kind: input, shape index: {}]
  %s1 = inlined_call_operand.hbm [shape: bf16[2,128,128], index: 1, kind: input, shape index: {}]
  %s2 = inlined_call_operand.hbm [shape: bf16[2,128,128], index: 2, kind: input, shape index: {}]
  %s3 = inlined_call_operand.hbm [shape: bf16[256,256], index: 3, kind: input, shape index: {}]
  %s4 = inlined_call_operand.vmem [shape: f32[1,256], index: 4, kind: input, shape index: {}]
  %s5 = inlined_call_operand.hbm [shape: bf16[256,256], index: 5, kind: input, shape index: {}]
  %s6 = inlined_call_operand.vmem [shape: f32[1,256], index: 6, kind: input, shape index: {}]
  %s7 = inlined_call_operand.vmem [shape: f32[1,256], index: 7, kind: input, shape index: {}]
  %s8 = inlined_call_operand.vmem [shape: f32[1,256], index: 8, kind: input, shape index: {}]
  %s9 = inlined_call_operand.hbm [shape: f32[256,256], index: 9, kind: output, shape index: {0}]
  %s10 = inlined_call_operand.hbm [shape: f32[2,256,128], index: 10, kind: output, shape index: {1}]
  %11 = xla_tuple %s9, %s10
  %s12 = sld [smem:[#allocation0]]
  $region105: #{tpu_custom_call.1} parent=0
    _
  %s14 = ssub.s32 1, %s12
  %s15 = scalar_select 0, %s14, %s12
  $region1: #{tpu_custom_call.1} parent=0
    #allocation6 [shape = 'u8[131072]{0}', space=vmem, size = 0x20000, scoped, tag = 'input window, operand 0']
    #allocation7 [shape = 's32[2]{0}', space=sflag, size = 0x8, scoped, tag = 'scoped memory for tpu_custom_call.1']
    #allocation8 [shape = 's32[2]{0}', space=sflag, size = 0x8, scoped, tag = 'scoped memory for tpu_custom_call.1']
    #allocation9 [shape = 'u8[65536]{0}', space=vmem, size = 0x10000, scoped, tag = 'input window, operand 1, single buffered']
    #allocation10 [shape = 's32[1]{0}', space=sflag, size = 0x4, scoped, tag = 'scoped memory for tpu_custom_call.1']
    #allocation11 [shape = 'u8[65536]{0}', space=vmem, size = 0x10000, scoped, tag = 'input window, operand 2, single buffered']
    #allocation12 [shape = 'u8[131072]{0}', space=vmem, size = 0x20000, scoped, tag = 'input window, operand 3, single buffered']
    #allocation13 [shape = 's32[1]{0}', space=sflag, size = 0x4, scoped, tag = 'scoped memory for tpu_custom_call.1']
    #allocation14 [shape = 'u8[131072]{0}', space=vmem, size = 0x20000, scoped, tag = 'input window, operand 5, single buffered']
    #allocation15 [shape = 'u8[262144]{0}', space=vmem, size = 0x40000, scoped, tag = 'output window, operand 0']
    #allocation16 [shape = 'u8[262144]{0}', space=vmem, size = 0x40000, scoped, tag = 'output window, operand 1']
    #allocation17 [shape = 's32[2]{0}', space=sflag, size = 0x8, scoped, tag = 'scoped memory for tpu_custom_call.1']
    %16 = vsyncpa [#allocation7], 0
    %s17 = scalar_lea.sflag [#allocation7], 1
    %18 = vsyncpa %s17, 0
    %19 = vsyncpa [#allocation10], 0
    %20 = vsyncpa [#allocation13], 0
    %21 = vsyncpa [#allocation8], 0
    %s22 = scalar_lea.sflag [#allocation8], 1
    %23 = vsyncpa %s22, 0
    %24 = vsyncpa [#allocation17], 0
    %s25 = scalar_lea.sflag [#allocation17], 1
    %26 = vsyncpa %s25, 0
    loop: start=0, step=1, limit=4
    $region2: #{tpu_custom_call.1} parent=1 // loop_pre_header
      _
    $region3: #{tpu_custom_call.1} parent=1 // loop_header
      %s28 = sphi 0, %s32
      %p29 = scmp.ge.s32.totalorder %s28, 4
      %s35 = sphi 0, %s47
      %s36 = sphi 0, %s43
      %s37 = sphi 0, %s35
      %s38 = sphi 0, %s36
      %s39 = sphi 0, %s37
      %s40 = sphi 0, %s38
      %s50 = sphi 0, %s52
      %s53 = sphi 0, %s50
      %s54 = sphi 0, %s53
      %s70 = sphi 0, %s54
      %s76 = sphi 0, %s78
      %s79 = sphi 0, %s76
      %s80 = sphi 0, %s79
      %s96 = sphi 0, %s80
      %s102 = sphi 0, %s104
      %s105 = sphi 0, %s102
      %s106 = sphi 0, %s105
      %s122 = sphi 0, %s106
      %s126 = sphi 0, %s126
      %s128 = sphi 0, %s126
      %s129 = sphi 0, %s128
      %s143 = sphi 0, %s129
      %s147 = sphi 0, %s147
      %s149 = sphi 0, %s147
      %s150 = sphi 0, %s149
      %s164 = sphi 0, %s150
      %s168 = sphi 0, %s168
      %s170 = sphi 0, %s168
      %s171 = sphi 0, %s170
      %s185 = sphi 0, %s171
      %s189 = sphi 0, %s189
      %s191 = sphi 0, %s189
      %s192 = sphi 0, %s191
      %s206 = sphi 0, %s192
      %s210 = sphi 0, %s210
      %s212 = sphi 0, %s210
      %s213 = sphi 0, %s212
      %s227 = sphi 0, %s213
      %s231 = sphi 0, %s231
      %s233 = sphi 0, %s231
      %s234 = sphi 0, %s233
      %s248 = sphi 0, %s234
      %s254 = sphi 0, %s256
      %s257 = sphi 0, %s254
      %s258 = sphi 0, %s257
      %s274 = sphi 0, %s258
      %s282 = sphi 0, %s284
      %s285 = sphi 0, %s282
      %s286 = sphi 0, %s285
      %s302 = sphi 0, %s286
    $region4: #{tpu_custom_call.1} parent=1 // loop_header_branch
      %31 = sbr.rel (%p29) target = $region8
    $region5: #{tpu_custom_call.1} parent=1 // loop_body
      %s33 = ssub.s32 %s28, 1
      %s34 = ssub.s32 %s28, 2
      %s41 = sadd.s32 1, %s36
      %p42 = scmp.ge.s32.totalorder %s41, 1
      %s43 = scalar_select %p42, 0, %s41
      %s44 = sadd.s32 1, %s35
      %s45 = scalar_select %p42, %s44, %s35
      %p46 = scmp.ge.s32.totalorder %s45, 2
      %s47 = scalar_select %p46, 0, %s45
      %s48 = ssub.s32 %s35, %s47
      %p49 = scmp.eq.s32.totalorder %s48, 0
      %s51 = sadd.s32 %s50, 1
      %s52 = scalar_select %p49, %s50, %s51
      %p55 = pneg %p49
      %p56 = scmp.eq.s32.totalorder %s28, 1
      %p57 = por %p55, %p56
      %p58 = scmp.ne.s32.totalorder %s50, %s53
      %p59 = scmp.eq.s32.totalorder %s28, 0
      %p60 = por %p58, %p59
      %p61 = scmp.ne.s32.totalorder %s50, %s53
      %p62 = scmp.eq.s32.totalorder %s33, 1
      %p63 = por %p61, %p62
      %p64 = scmp.ne.s32.totalorder %s53, %s54
      %p65 = scmp.eq.s32.totalorder %s33, 0
      %p66 = por %p64, %p65
      %p67 = scmp.ne.s32.totalorder %s53, %s54
      %p68 = scmp.eq.s32.totalorder %s34, 1
      %p69 = por %p67, %p68
      %p71 = scmp.ne.s32.totalorder %s54, %s70
      %p72 = scmp.eq.s32.totalorder %s34, 0
      %p73 = por %p71, %p72
      %s74 = ssub.s32 %s36, %s43
      %p75 = scmp.eq.s32.totalorder %s74, 0
      %s77 = sadd.s32 %s76, 1
      %s78 = scalar_select %p75, %s76, %s77
      %p81 = pneg %p75
      %p82 = scmp.eq.s32.totalorder %s28, 1
      %p83 = por %p81, %p82
      %p84 = scmp.ne.s32.totalorder %s76, %s79
      %p85 = scmp.eq.s32.totalorder %s28, 0
      %p86 = por %p84, %p85
      %p87 = scmp.ne.s32.totalorder %s76, %s79
      %p88 = scmp.eq.s32.totalorder %s33, 1
      %p89 = por %p87, %p88
      %p90 = scmp.ne.s32.totalorder %s79, %s80
      %p91 = scmp.eq.s32.totalorder %s33, 0
      %p92 = por %p90, %p91
      %p93 = scmp.ne.s32.totalorder %s79, %s80
      %p94 = scmp.eq.s32.totalorder %s34, 1
      %p95 = por %p93, %p94
      %p97 = scmp.ne.s32.totalorder %s80, %s96
      %p98 = scmp.eq.s32.totalorder %s34, 0
      %p99 = por %p97, %p98
      %s100 = ssub.s32 %s36, %s43
      %p101 = scmp.eq.s32.totalorder %s100, 0
      %s103 = sadd.s32 %s102, 1
      %s104 = scalar_select %p101, %s102, %s103
      %p107 = pneg %p101
      %p108 = scmp.eq.s32.totalorder %s28, 1
      %p109 = por %p107, %p108
      %p110 = scmp.ne.s32.totalorder %s102, %s105
      %p111 = scmp.eq.s32.totalorder %s28, 0
      %p112 = por %p110, %p111
      %p113 = scmp.ne.s32.totalorder %s102, %s105
      %p114 = scmp.eq.s32.totalorder %s33, 1
      %p115 = por %p113, %p114
      %p116 = scmp.ne.s32.totalorder %s105, %s106
      %p117 = scmp.eq.s32.totalorder %s33, 0
      %p118 = por %p116, %p117
      %p119 = scmp.ne.s32.totalorder %s105, %s106
      %p120 = scmp.eq.s32.totalorder %s34, 1
      %p121 = por %p119, %p120
      %p123 = scmp.ne.s32.totalorder %s106, %s122
      %p124 = scmp.eq.s32.totalorder %s34, 0
      %p125 = por %p123, %p124
      %s127 = sadd.s32 %s126, 1
      %p130 = scmp.eq.s32.totalorder %s28, 1
      %p131 = scmp.ne.s32.totalorder %s126, %s128
      %p132 = scmp.eq.s32.totalorder %s28, 0
      %p133 = por %p131, %p132
      %p134 = scmp.ne.s32.totalorder %s126, %s128
      %p135 = scmp.eq.s32.totalorder %s33, 1
      %p136 = por %p134, %p135
      %p137 = scmp.ne.s32.totalorder %s128, %s129
      %p138 = scmp.eq.s32.totalorder %s33, 0
      %p139 = por %p137, %p138
      %p140 = scmp.ne.s32.totalorder %s128, %s129
      %p141 = scmp.eq.s32.totalorder %s34, 1
      %p142 = por %p140, %p141
      %p144 = scmp.ne.s32.totalorder %s129, %s143
      %p145 = scmp.eq.s32.totalorder %s34, 0
      %p146 = por %p144, %p145
      %s148 = sadd.s32 %s147, 1
      %p151 = scmp.eq.s32.totalorder %s28, 1
      %p152 = scmp.ne.s32.totalorder %s147, %s149
      %p153 = scmp.eq.s32.totalorder %s28, 0
      %p154 = por %p152, %p153
      %p155 = scmp.ne.s32.totalorder %s147, %s149
      %p156 = scmp.eq.s32.totalorder %s33, 1
      %p157 = por %p155, %p156
      %p158 = scmp.ne.s32.totalorder %s149, %s150
      %p159 = scmp.eq.s32.totalorder %s33, 0
      %p160 = por %p158, %p159
      %p161 = scmp.ne.s32.totalorder %s149, %s150
      %p162 = scmp.eq.s32.totalorder %s34, 1
      %p163 = por %p161, %p162
      %p165 = scmp.ne.s32.totalorder %s150, %s164
      %p166 = scmp.eq.s32.totalorder %s34, 0
      %p167 = por %p165, %p166
      %s169 = sadd.s32 %s168, 1
      %p172 = scmp.eq.s32.totalorder %s28, 1
      %p173 = scmp.ne.s32.totalorder %s168, %s170
      %p174 = scmp.eq.s32.totalorder %s28, 0
      %p175 = por %p173, %p174
      %p176 = scmp.ne.s32.totalorder %s168, %s170
      %p177 = scmp.eq.s32.totalorder %s33, 1
      %p178 = por %p176, %p177
      %p179 = scmp.ne.s32.totalorder %s170, %s171
      %p180 = scmp.eq.s32.totalorder %s33, 0
      %p181 = por %p179, %p180
      %p182 = scmp.ne.s32.totalorder %s170, %s171
      %p183 = scmp.eq.s32.totalorder %s34, 1
      %p184 = por %p182, %p183
      %p186 = scmp.ne.s32.totalorder %s171, %s185
      %p187 = scmp.eq.s32.totalorder %s34, 0
      %p188 = por %p186, %p187
      %s190 = sadd.s32 %s189, 1
      %p193 = scmp.eq.s32.totalorder %s28, 1
      %p194 = scmp.ne.s32.totalorder %s189, %s191
      %p195 = scmp.eq.s32.totalorder %s28, 0
      %p196 = por %p194, %p195
      %p197 = scmp.ne.s32.totalorder %s189, %s191
      %p198 = scmp.eq.s32.totalorder %s33, 1
      %p199 = por %p197, %p198
      %p200 = scmp.ne.s32.totalorder %s191, %s192
      %p201 = scmp.eq.s32.totalorder %s33, 0
      %p202 = por %p200, %p201
      %p203 = scmp.ne.s32.totalorder %s191, %s192
      %p204 = scmp.eq.s32.totalorder %s34, 1
      %p205 = por %p203, %p204
      %p207 = scmp.ne.s32.totalorder %s192, %s206
      %p208 = scmp.eq.s32.totalorder %s34, 0
      %p209 = por %p207, %p208
      %s211 = sadd.s32 %s210, 1
      %p214 = scmp.eq.s32.totalorder %s28, 1
      %p215 = scmp.ne.s32.totalorder %s210, %s212
      %p216 = scmp.eq.s32.totalorder %s28, 0
      %p217 = por %p215, %p216
      %p218 = scmp.ne.s32.totalorder %s210, %s212
      %p219 = scmp.eq.s32.totalorder %s33, 1
      %p220 = por %p218, %p219
      %p221 = scmp.ne.s32.totalorder %s212, %s213
      %p222 = scmp.eq.s32.totalorder %s33, 0
      %p223 = por %p221, %p222
      %p224 = scmp.ne.s32.totalorder %s212, %s213
      %p225 = scmp.eq.s32.totalorder %s34, 1
      %p226 = por %p224, %p225
      %p228 = scmp.ne.s32.totalorder %s213, %s227
      %p229 = scmp.eq.s32.totalorder %s34, 0
      %p230 = por %p228, %p229
      %s232 = sadd.s32 %s231, 1
      %p235 = scmp.eq.s32.totalorder %s28, 1
      %p236 = scmp.ne.s32.totalorder %s231, %s233
      %p237 = scmp.eq.s32.totalorder %s28, 0
      %p238 = por %p236, %p237
      %p239 = scmp.ne.s32.totalorder %s231, %s233
      %p240 = scmp.eq.s32.totalorder %s33, 1
      %p241 = por %p239, %p240
      %p242 = scmp.ne.s32.totalorder %s233, %s234
      %p243 = scmp.eq.s32.totalorder %s33, 0
      %p244 = por %p242, %p243
      %p245 = scmp.ne.s32.totalorder %s233, %s234
      %p246 = scmp.eq.s32.totalorder %s34, 1
      %p247 = por %p245, %p246
      %p249 = scmp.ne.s32.totalorder %s234, %s248
      %p250 = scmp.eq.s32.totalorder %s34, 0
      %p251 = por %p249, %p250
      %s252 = ssub.s32 %s35, %s47
      %p253 = scmp.eq.s32.totalorder %s252, 0
      %s255 = sadd.s32 %s254, 1
      %s256 = scalar_select %p253, %s254, %s255
      %p259 = pneg %p253
      %p260 = scmp.eq.s32.totalorder %s28, 1
      %p261 = por %p259, %p260
      %p262 = scmp.ne.s32.totalorder %s254, %s257
      %p263 = scmp.eq.s32.totalorder %s28, 0
      %p264 = por %p262, %p263
      %p265 = scmp.ne.s32.totalorder %s254, %s257
      %p266 = scmp.eq.s32.totalorder %s33, 1
      %p267 = por %p265, %p266
      %p268 = scmp.ne.s32.totalorder %s257, %s258
      %p269 = scmp.eq.s32.totalorder %s33, 0
      %p270 = por %p268, %p269
      %p271 = scmp.ne.s32.totalorder %s257, %s258
      %p272 = scmp.eq.s32.totalorder %s34, 1
      %p273 = por %p271, %p272
      %p275 = scmp.ne.s32.totalorder %s258, %s274
      %p276 = scmp.eq.s32.totalorder %s34, 0
      %p277 = por %p275, %p276
      %s278 = ssub.s32 %s35, %s47
      %s279 = ssub.s32 %s36, %s43
      %s280 = sor.u32 %s278, %s279
      %p281 = scmp.eq.s32.totalorder %s280, 0
      %s283 = sadd.s32 %s282, 1
      %s284 = scalar_select %p281, %s282, %s283
      %p287 = pneg %p281
      %p288 = scmp.eq.s32.totalorder %s28, 1
      %p289 = por %p287, %p288
      %p290 = scmp.ne.s32.totalorder %s282, %s285
      %p291 = scmp.eq.s32.totalorder %s28, 0
      %p292 = por %p290, %p291
      %p293 = scmp.ne.s32.totalorder %s282, %s285
      %p294 = scmp.eq.s32.totalorder %s33, 1
      %p295 = por %p293, %p294
      %p296 = scmp.ne.s32.totalorder %s285, %s286
      %p297 = scmp.eq.s32.totalorder %s33, 0
      %p298 = por %p296, %p297
      %p299 = scmp.ne.s32.totalorder %s285, %s286
      %p300 = scmp.eq.s32.totalorder %s34, 1
      %p301 = por %p299, %p300
      %p303 = scmp.ne.s32.totalorder %s286, %s302
      %p304 = scmp.eq.s32.totalorder %s34, 0
      %p305 = por %p303, %p304
      %p306 = scmp.le.s32.totalorder 1, %s28
      %p307 = scmp.lt.s32.totalorder %s28, 3
      %p308 = pnand %p306, %p307
      %p309 = pneg %p308
      // Predicated region
      $region9: #{tpu_custom_call.1} parent=5 // pred_check
        _
      $region10: #{tpu_custom_call.1} parent=5 // pred_check_branch
        %311 = sbr.rel (%p308) target = $region12
      $region11: #{tpu_custom_call.1} parent=5 // pred_region
        %s312 = ssub.s32 %s28, 1
        // Predicated region
        $region13: #{tpu_custom_call.1} parent=11 // pred_check
          %p313 = pneg %p92
        $region14: #{tpu_custom_call.1} parent=11 // pred_check_branch
          %315 = sbr.rel (%p313) target = $region16
        $region15: #{tpu_custom_call.1} parent=11 // pred_region
          %s317 = ssub.s32 2048, 2048
          %318 = vsyncadd [#allocation10], %s317
          %s319 = smul.addr %s38, 64
          %s320 = scalar_lea.hbm %s1, %s319
          %s321 = sshll.u32 [#allocation9], 4
          %s322 = int_to_ptr.vmem [resolvable:$true] %s321
          %327 = dma.hbm_to_vmem [thread:$0]  %s320, 2048, %s322, [#allocation10], 64, 64, 4
        $region16: #{tpu_custom_call.1} parent=11 // pred_fallthru
          _
        // Predicated region
        $region17: #{tpu_custom_call.1} parent=11 // pred_check
          %p328 = pneg %p118
        $region18: #{tpu_custom_call.1} parent=11 // pred_check_branch
          %330 = sbr.rel (%p328) target = $region20
        $region19: #{tpu_custom_call.1} parent=11 // pred_region
          %s331 = smul.u32 16, %s38
          %s333 = ssub.s32 2048, 2048
          %334 = vsyncadd [#allocation10], %s333
          %s335 = smul.addr %s331, 64
          %s336 = scalar_lea.hbm %s2, %s335
          %s337 = sshll.u32 [#allocation11], 4
          %s338 = int_to_ptr.vmem [resolvable:$true] %s337
          %343 = dma.hbm_to_vmem [thread:$0]  %s336, 2048, %s338, [#allocation10], 64, 64, 4
        $region20: #{tpu_custom_call.1} parent=11 // pred_fallthru
          _
        // Predicated region
        $region21: #{tpu_custom_call.1} parent=11 // pred_check
          %p344 = pneg %p139
        $region22: #{tpu_custom_call.1} parent=11 // pred_check_branch
          %346 = sbr.rel (%p344) target = $region24
        $region23: #{tpu_custom_call.1} parent=11 // pred_region
          %s348 = ssub.s32 4096, 4096
          %349 = vsyncadd [#allocation13], %s348
          %s350 = sshll.u32 [#allocation12], 4
          %s351 = int_to_ptr.vmem [resolvable:$true] %s350
          %356 = dma.hbm_to_vmem [thread:$0]  %s3, 4096, %s351, [#allocation13], 128, 128, 8
        $region24: #{tpu_custom_call.1} parent=11 // pred_fallthru
          _
        // Predicated region
        $region25: #{tpu_custom_call.1} parent=11 // pred_check
          %p357 = pneg %p160
        $region26: #{tpu_custom_call.1} parent=11 // pred_check_branch
          %359 = sbr.rel (%p357) target = $region28
        $region27: #{tpu_custom_call.1} parent=11 // pred_region
          _
        $region28: #{tpu_custom_call.1} parent=11 // pred_fallthru
          _
        // Predicated region
        $region29: #{tpu_custom_call.1} parent=11 // pred_check
          %p360 = pneg %p181
        $region30: #{tpu_custom_call.1} parent=11 // pred_check_branch
          %362 = sbr.rel (%p360) target = $region32
        $region31: #{tpu_custom_call.1} parent=11 // pred_region
          %s364 = ssub.s32 4096, 4096
          %365 = vsyncadd [#allocation13], %s364
          %s366 = sshll.u32 [#allocation14], 4
          %s367 = int_to_ptr.vmem [resolvable:$true] %s366
          %372 = dma.hbm_to_vmem [thread:$0]  %s5, 4096, %s367, [#allocation13], 128, 128, 8
        $region32: #{tpu_custom_call.1} parent=11 // pred_fallthru
          _
        // Predicated region
        $region33: #{tpu_custom_call.1} parent=11 // pred_check
          %p373 = pneg %p202
        $region34: #{tpu_custom_call.1} parent=11 // pred_check_branch
          %375 = sbr.rel (%p373) target = $region36
        $region35: #{tpu_custom_call.1} parent=11 // pred_region
          _
        $region36: #{tpu_custom_call.1} parent=11 // pred_fallthru
          _
        // Predicated region
        $region37: #{tpu_custom_call.1} parent=11 // pred_check
          %p376 = pneg %p223
        $region38: #{tpu_custom_call.1} parent=11 // pred_check_branch
          %378 = sbr.rel (%p376) target = $region40
        $region39: #{tpu_custom_call.1} parent=11 // pred_region
          _
        $region40: #{tpu_custom_call.1} parent=11 // pred_fallthru
          _
        // Predicated region
        $region41: #{tpu_custom_call.1} parent=11 // pred_check
          %p379 = pneg %p244
        $region42: #{tpu_custom_call.1} parent=11 // pred_check_branch
          %381 = sbr.rel (%p379) target = $region44
        $region43: #{tpu_custom_call.1} parent=11 // pred_region
          _
        $region44: #{tpu_custom_call.1} parent=11 // pred_fallthru
          _
      $region12: #{tpu_custom_call.1} parent=5 // pred_fallthru
        _
      %p382 = scmp.lt.s32.totalorder %s28, 2
      // Predicated region
      $region45: #{tpu_custom_call.1} parent=5 // pred_check
        %p383 = pneg %p382
      $region46: #{tpu_custom_call.1} parent=5 // pred_check_branch
        %385 = sbr.rel (%p383) target = $region48
      $region47: #{tpu_custom_call.1} parent=5 // pred_region
        // Predicated region
        $region49: #{tpu_custom_call.1} parent=47 // pred_check
          %p386 = pneg %p60
        $region50: #{tpu_custom_call.1} parent=47 // pred_check_branch
          %388 = sbr.rel (%p386) target = $region52
        $region51: #{tpu_custom_call.1} parent=47 // pred_region
          %s389 = sand.u32 %s50, 1
          %s390 = scalar_lea.sflag [#allocation7], %s389
          %s391 = sand.u32 %s50, 1
          %s392 = smul.addr %s391, 128
          %s393 = scalar_lea.vmem [#allocation6], %s392
          %s394 = smul.u32 16, %s35
          %s396 = ssub.s32 2048, 2048
          %397 = vsyncadd %s390, %s396
          %s398 = smul.addr %s394, 2
          %s399 = smul.addr %s398, 64
          %s400 = scalar_lea.hbm %s0, %s399
          %s401 = sshll.u32 %s393, 4
          %s402 = int_to_ptr.vmem [resolvable:$true] %s401
          %407 = dma.hbm_to_vmem [thread:$0]  %s400, 2048, %s402, %s390, 128, 128, 8
        $region52: #{tpu_custom_call.1} parent=47 // pred_fallthru
          _
      $region48: #{tpu_custom_call.1} parent=5 // pred_fallthru
        _
      %p408 = scmp.le.s32.totalorder 1, %s28
      %p409 = scmp.lt.s32.totalorder %s28, 3
      %p410 = pnand %p408, %p409
      %p411 = pneg %p410
      // Predicated region
      $region53: #{tpu_custom_call.1} parent=5 // pred_check
        _
      $region54: #{tpu_custom_call.1} parent=5 // pred_check_branch
        %413 = sbr.rel (%p410) target = $region56
      $region55: #{tpu_custom_call.1} parent=5 // pred_region
        %s414 = ssub.s32 %s28, 1
        %s415 = sand.u32 %s53, 1
        %s416 = scalar_lea.sflag [#allocation7], %s415
        %s417 = sand.u32 %s53, 1
        %s418 = smul.addr %s417, 128
        %s419 = scalar_lea.vmem [#allocation6], %s418
        // Predicated region
        $region57: #{tpu_custom_call.1} parent=55 // pred_check
          %p420 = pneg %p66
        $region58: #{tpu_custom_call.1} parent=55 // pred_check_branch
          %422 = sbr.rel (%p420) target = $region60
        $region59: #{tpu_custom_call.1} parent=55 // pred_region
          %423 = dma.done %s416, 2048
        $region60: #{tpu_custom_call.1} parent=55 // pred_fallthru
          _
        // Predicated region
        $region61: #{tpu_custom_call.1} parent=55 // pred_check
          %p424 = pneg %p92
        $region62: #{tpu_custom_call.1} parent=55 // pred_check_branch
          %426 = sbr.rel (%p424) target = $region64
        $region63: #{tpu_custom_call.1} parent=55 // pred_region
          %427 = dma.done [#allocation10], 2048
        $region64: #{tpu_custom_call.1} parent=55 // pred_fallthru
          _
        // Predicated region
        $region65: #{tpu_custom_call.1} parent=55 // pred_check
          %p428 = pneg %p118
        $region66: #{tpu_custom_call.1} parent=55 // pred_check_branch
          %430 = sbr.rel (%p428) target = $region68
        $region67: #{tpu_custom_call.1} parent=55 // pred_region
          %431 = dma.done [#allocation10], 2048
        $region68: #{tpu_custom_call.1} parent=55 // pred_fallthru
          _
        // Predicated region
        $region69: #{tpu_custom_call.1} parent=55 // pred_check
          %p432 = pneg %p139
        $region70: #{tpu_custom_call.1} parent=55 // pred_check_branch
          %434 = sbr.rel (%p432) target = $region72
        $region71: #{tpu_custom_call.1} parent=55 // pred_region
          %435 = dma.done [#allocation13], 4096
        $region72: #{tpu_custom_call.1} parent=55 // pred_fallthru
          _
        // Predicated region
        $region73: #{tpu_custom_call.1} parent=55 // pred_check
          %p436 = pneg %p181
        $region74: #{tpu_custom_call.1} parent=55 // pred_check_branch
          %438 = sbr.rel (%p436) target = $region76
        $region75: #{tpu_custom_call.1} parent=55 // pred_region
          %439 = dma.done [#allocation13], 4096
        $region76: #{tpu_custom_call.1} parent=55 // pred_fallthru
          _
        %s440 = sand.u32 %s53, 1
        %s441 = scalar_lea.sflag [#allocation7], %s440
        %s442 = sand.u32 %s53, 1
        %s443 = smul.addr %s442, 128
        %s444 = scalar_lea.vmem [#allocation6], %s443
        %p445 = pneg %p66
        %p446 = pneg %p63
        %p447 = pneg %p92
        %p448 = pneg %p89
        %p449 = pneg %p118
        %p450 = pneg %p115
        %p451 = pneg %p139
        %p452 = pneg %p136
        %p453 = pneg %p160
        %p454 = pneg %p157
        %p455 = pneg %p181
        %p456 = pneg %p178
        %p457 = pneg %p202
        %p458 = pneg %p199
        %p459 = pneg %p223
        %p460 = pneg %p220
        %p461 = pneg %p244
        %p462 = pneg %p241
        %p463 = pneg %p270
        %p464 = pneg %p267
        %s465 = sand.u32 %s257, 1
        %s466 = scalar_lea.sflag [#allocation8], %s465
        %s467 = sand.u32 %s257, 1
        %s468 = smul.addr %s467, 256
        %s469 = scalar_lea.vmem [#allocation15], %s468
        %p470 = pneg %p298
        %p471 = pneg %p295
        %s472 = sand.u32 %s285, 1
        %s473 = scalar_lea.sflag [#allocation17], %s472
        %s474 = sand.u32 %s285, 1
        %s475 = smul.addr %s474, 256
        %s476 = scalar_lea.vmem [#allocation16], %s475
        %s477 = smul.u32 16, %s37
        %s478 = smul.u32 16, %s38
        %s479 = smul.u32 16, %s37
        %s480 = smul.u32 16, %s37
        %p482 = scmp.eq.s32.totalorder %s38, 0
        // Predicated region
        $region77: #{tpu_custom_call.1} parent=55 // pred_check
          %p483 = pneg %p482
        $region78: #{tpu_custom_call.1} parent=55 // pred_check_branch
          %485 = sbr.rel (%p483) target = $region80
        $region79: #{tpu_custom_call.1} parent=55 // pred_region
          %v486 = vld [vmem:[%s419] sm:$0xff]
          %v487 = vld [vmem:[%s419 + $0x8] sm:$0xff]
          %v488 = vld [vmem:[%s419 + $0x10] sm:$0xff]
          %v489 = vld [vmem:[%s419 + $0x18] sm:$0xff]
          %v490 = vld [vmem:[%s419 + $0x20] sm:$0xff]
          %v491 = vld [vmem:[%s419 + $0x28] sm:$0xff]
          %v492 = vld [vmem:[%s419 + $0x30] sm:$0xff]
          %v493 = vld [vmem:[%s419 + $0x38] sm:$0xff]
          %v494 = vld [vmem:[%s419 + $0x40] sm:$0xff]
          %v495 = vld [vmem:[%s419 + $0x48] sm:$0xff]
          %v496 = vld [vmem:[%s419 + $0x50] sm:$0xff]
          %v497 = vld [vmem:[%s419 + $0x58] sm:$0xff]
          %v498 = vld [vmem:[%s419 + $0x60] sm:$0xff]
          %v499 = vld [vmem:[%s419 + $0x68] sm:$0xff]
          %v500 = vld [vmem:[%s419 + $0x70] sm:$0xff]
          %v501 = vld [vmem:[%s419 + $0x78] sm:$0xff]
          %v502 = vld [vmem:[#allocation12] sm:$0xff]
          %v503 = vld [vmem:[#allocation12 + $0x8] sm:$0xff]
          %v504 = vld [vmem:[#allocation12 + $0x10] sm:$0xff]
          %v505 = vld [vmem:[#allocation12 + $0x18] sm:$0xff]
          %v506 = vld [vmem:[#allocation12 + $0x20] sm:$0xff]
          %v507 = vld [vmem:[#allocation12 + $0x28] sm:$0xff]
          %v508 = vld [vmem:[#allocation12 + $0x30] sm:$0xff]
          %v509 = vld [vmem:[#allocation12 + $0x38] sm:$0xff]
          %v510 = vld [vmem:[#allocation12 + $0x40] sm:$0xff]
          %v511 = vld [vmem:[#allocation12 + $0x48] sm:$0xff]
          %v512 = vld [vmem:[#allocation12 + $0x50] sm:$0xff]
          %v513 = vld [vmem:[#allocation12 + $0x58] sm:$0xff]
          %v514 = vld [vmem:[#allocation12 + $0x60] sm:$0xff]
          %v515 = vld [vmem:[#allocation12 + $0x68] sm:$0xff]
          %v516 = vld [vmem:[#allocation12 + $0x70] sm:$0xff]
          %v517 = vld [vmem:[#allocation12 + $0x78] sm:$0xff]
          %v518 = vld [vmem:[#allocation12 + $0x80] sm:$0xff]
          %v519 = vld [vmem:[#allocation12 + $0x88] sm:$0xff]
          %v520 = vld [vmem:[#allocation12 + $0x90] sm:$0xff]
          %v521 = vld [vmem:[#allocation12 + $0x98] sm:$0xff]
          %v522 = vld [vmem:[#allocation12 + $0xa0] sm:$0xff]
          %v523 = vld [vmem:[#allocation12 + $0xa8] sm:$0xff]
          %v524 = vld [vmem:[#allocation12 + $0xb0] sm:$0xff]
          %v525 = vld [vmem:[#allocation12 + $0xb8] sm:$0xff]
          %v526 = vld [vmem:[#allocation12 + $0xc0] sm:$0xff]
          %v527 = vld [vmem:[#allocation12 + $0xc8] sm:$0xff]
          %v528 = vld [vmem:[#allocation12 + $0xd0] sm:$0xff]
          %v529 = vld [vmem:[#allocation12 + $0xd8] sm:$0xff]
          %v530 = vld [vmem:[#allocation12 + $0xe0] sm:$0xff]
          %v531 = vld [vmem:[#allocation12 + $0xe8] sm:$0xff]
          %v532 = vld [vmem:[#allocation12 + $0xf0] sm:$0xff]
          %v533 = vld [vmem:[#allocation12 + $0xf8] sm:$0xff]
          %v534 = vld [vmem:[%s4] sm:$0x3]
          %v536 = vlaneseq
          %v537 = vshrl.u32 %v536, 7
          %v538 = vsub.s32 0, %v537
          %v539 = vrot.slane %v534, %v538
          %v540 = vlaneseq
          %v541 = vshrl.u32 %v540, 7
          %v542 = vsub.s32 1, %v541
          %v543 = vrot.slane %v534, %v542
          %v562 = vunpack.c.l.b16 %v486
          %v563 = vunpack.c.h.b16 %v486
          %v564 = vunpack.c.l.b16 %v487
          %v565 = vunpack.c.h.b16 %v487
          %v566 = vunpack.c.l.b16 %v488
          %v567 = vunpack.c.h.b16 %v488
          %v568 = vunpack.c.l.b16 %v489
          %v569 = vunpack.c.h.b16 %v489
          %v570 = vunpack.c.l.b16 %v490
          %v571 = vunpack.c.h.b16 %v490
          %v572 = vunpack.c.l.b16 %v491
          %v573 = vunpack.c.h.b16 %v491
          %v574 = vunpack.c.l.b16 %v492
          %v575 = vunpack.c.h.b16 %v492
          %v576 = vunpack.c.l.b16 %v493
          %v577 = vunpack.c.h.b16 %v493
          %v578 = vunpack.c.l.b16 %v494
          %v579 = vunpack.c.h.b16 %v494
          %v580 = vunpack.c.l.b16 %v495
          %v581 = vunpack.c.h.b16 %v495
          %v582 = vunpack.c.l.b16 %v496
          %v583 = vunpack.c.h.b16 %v496
          %v584 = vunpack.c.l.b16 %v497
          %v585 = vunpack.c.h.b16 %v497
          %v586 = vunpack.c.l.b16 %v498
          %v587 = vunpack.c.h.b16 %v498
          %v588 = vunpack.c.l.b16 %v499
          %v589 = vunpack.c.h.b16 %v499
          %v590 = vunpack.c.l.b16 %v500
          %v591 = vunpack.c.h.b16 %v500
          %v592 = vunpack.c.l.b16 %v501
          %v593 = vunpack.c.h.b16 %v501
          %v594 = vpack.c.b16 %v564, %v562
          %v595 = vpack.c.b16 %v565, %v563
          %v596 = vpack.c.b16 %v568, %v566
          %v597 = vpack.c.b16 %v569, %v567
          %v598 = vpack.c.b16 %v572, %v570
          %v599 = vpack.c.b16 %v573, %v571
          %v600 = vpack.c.b16 %v576, %v574
          %v601 = vpack.c.b16 %v577, %v575
          %v602 = vpack.c.b16 %v580, %v578
          %v603 = vpack.c.b16 %v581, %v579
          %v604 = vpack.c.b16 %v584, %v582
          %v605 = vpack.c.b16 %v585, %v583
          %v606 = vpack.c.b16 %v588, %v586
          %v607 = vpack.c.b16 %v589, %v587
          %v608 = vpack.c.b16 %v592, %v590
          %v609 = vpack.c.b16 %v593, %v591
          %v658 = vunpack.c.l.b16 %v502
          %v659 = vunpack.c.h.b16 %v502
          %v660 = vunpack.c.l.b16 %v503
          %v661 = vunpack.c.h.b16 %v503
          %v662 = vunpack.c.l.b16 %v504
          %v663 = vunpack.c.h.b16 %v504
          %v664 = vunpack.c.l.b16 %v505
          %v665 = vunpack.c.h.b16 %v505
          %v666 = vunpack.c.l.b16 %v506
          %v667 = vunpack.c.h.b16 %v506
          %v668 = vunpack.c.l.b16 %v507
          %v669 = vunpack.c.h.b16 %v507
          %v670 = vunpack.c.l.b16 %v508
          %v671 = vunpack.c.h.b16 %v508
          %v672 = vunpack.c.l.b16 %v509
          %v673 = vunpack.c.h.b16 %v509
          %v674 = vunpack.c.l.b16 %v510
          %v675 = vunpack.c.h.b16 %v510
          %v676 = vunpack.c.l.b16 %v511
          %v677 = vunpack.c.h.b16 %v511
          %v678 = vunpack.c.l.b16 %v512
          %v679 = vunpack.c.h.b16 %v512
          %v680 = vunpack.c.l.b16 %v513
          %v681 = vunpack.c.h.b16 %v513
          %v682 = vunpack.c.l.b16 %v514
          %v683 = vunpack.c.h.b16 %v514
          %v684 = vunpack.c.l.b16 %v515
          %v685 = vunpack.c.h.b16 %v515
          %v686 = vunpack.c.l.b16 %v516
          %v687 = vunpack.c.h.b16 %v516
          %v688 = vunpack.c.l.b16 %v517
          %v689 = vunpack.c.h.b16 %v517
          %v690 = vunpack.c.l.b16 %v518
          %v691 = vunpack.c.h.b16 %v518
          %v692 = vunpack.c.l.b16 %v519
          %v693 = vunpack.c.h.b16 %v519
          %v694 = vunpack.c.l.b16 %v520
          %v695 = vunpack.c.h.b16 %v520
          %v696 = vunpack.c.l.b16 %v521
          %v697 = vunpack.c.h.b16 %v521
          %v698 = vunpack.c.l.b16 %v522
          %v699 = vunpack.c.h.b16 %v522
          %v700 = vunpack.c.l.b16 %v523
          %v701 = vunpack.c.h.b16 %v523
          %v702 = vunpack.c.l.b16 %v524
          %v703 = vunpack.c.h.b16 %v524
          %v704 = vunpack.c.l.b16 %v525
          %v705 = vunpack.c.h.b16 %v525
          %v706 = vunpack.c.l.b16 %v526
          %v707 = vunpack.c.h.b16 %v526
          %v708 = vunpack.c.l.b16 %v527
          %v709 = vunpack.c.h.b16 %v527
          %v710 = vunpack.c.l.b16 %v528
          %v711 = vunpack.c.h.b16 %v528
          %v712 = vunpack.c.l.b16 %v529
          %v713 = vunpack.c.h.b16 %v529
          %v714 = vunpack.c.l.b16 %v530
          %v715 = vunpack.c.h.b16 %v530
          %v716 = vunpack.c.l.b16 %v531
          %v717 = vunpack.c.h.b16 %v531
          %v718 = vunpack.c.l.b16 %v532
          %v719 = vunpack.c.h.b16 %v532
          %v720 = vunpack.c.l.b16 %v533
          %v721 = vunpack.c.h.b16 %v533
          %v722 = vpack.c.b16 %v660, %v658
          %v723 = vpack.c.b16 %v661, %v659
          %v724 = vpack.c.b16 %v664, %v662
          %v725 = vpack.c.b16 %v665, %v663
          %v726 = vpack.c.b16 %v668, %v666
          %v727 = vpack.c.b16 %v669, %v667
          %v728 = vpack.c.b16 %v672, %v670
          %v729 = vpack.c.b16 %v673, %v671
          %v730 = vpack.c.b16 %v676, %v674
          %v731 = vpack.c.b16 %v677, %v675
          %v732 = vpack.c.b16 %v680, %v678
          %v733 = vpack.c.b16 %v681, %v679
          %v734 = vpack.c.b16 %v684, %v682
          %v735 = vpack.c.b16 %v685, %v683
          %v736 = vpack.c.b16 %v688, %v686
          %v737 = vpack.c.b16 %v689, %v687
          %v738 = vpack.c.b16 %v692, %v690
          %v739 = vpack.c.b16 %v693, %v691
          %v740 = vpack.c.b16 %v696, %v694
          %v741 = vpack.c.b16 %v697, %v695
          %v742 = vpack.c.b16 %v700, %v698
          %v743 = vpack.c.b16 %v701, %v699
          %v744 = vpack.c.b16 %v704, %v702
          %v745 = vpack.c.b16 %v705, %v703
          %v746 = vpack.c.b16 %v708, %v706
          %v747 = vpack.c.b16 %v709, %v707
          %v748 = vpack.c.b16 %v712, %v710
          %v749 = vpack.c.b16 %v713, %v711
          %v750 = vpack.c.b16 %v716, %v714
          %v751 = vpack.c.b16 %v717, %v715
          %v752 = vpack.c.b16 %v720, %v718
          %v753 = vpack.c.b16 %v721, %v719
          %786 = vmatprep.subr.bf16.mxu0 %v737
          %787 = vmatpush1.bf16.msra.mxu0 %v736
          %788 = vmatprep.subr.bf16.mxu0 %v735
          %789 = vmatpush1.bf16.msra.mxu0 %v734
          %790 = vmatprep.subr.bf16.mxu0 %v733
          %791 = vmatpush1.bf16.msra.mxu0 %v732
          %792 = vmatprep.subr.bf16.mxu0 %v731
          %793 = vmatpush1.bf16.msra.mxu0 %v730
          %794 = vmatprep.subr.bf16.mxu0 %v729
          %795 = vmatpush1.bf16.msra.mxu0 %v728
          %796 = vmatprep.subr.bf16.mxu0 %v727
          %797 = vmatpush1.bf16.msra.mxu0 %v726
          %798 = vmatprep.subr.bf16.mxu0 %v725
          %799 = vmatpush1.bf16.msra.mxu0 %v724
          %800 = vmatprep.subr.bf16.mxu0 %v723
          %801 = vmatpush1.bf16.msra.mxu0 %v722
          %802 = vmatprep.subr.bf16.mxu0 %v753
          %803 = vmatpush2.bf16.msra.mxu0 %v752
          %804 = vmatprep.subr.bf16.mxu0 %v751
          %805 = vmatpush2.bf16.msra.mxu0 %v750
          %806 = vmatprep.subr.bf16.mxu0 %v749
          %807 = vmatpush2.bf16.msra.mxu0 %v748
          %808 = vmatprep.subr.bf16.mxu0 %v747
          %809 = vmatpush2.bf16.msra.mxu0 %v746
          %810 = vmatprep.subr.bf16.mxu0 %v745
          %811 = vmatpush2.bf16.msra.mxu0 %v744
          %812 = vmatprep.subr.bf16.mxu0 %v743
          %813 = vmatpush2.bf16.msra.mxu0 %v742
          %814 = vmatprep.subr.bf16.mxu0 %v741
          %815 = vmatpush2.bf16.msra.mxu0 %v740
          %816 = vmatprep.subr.bf16.mxu0 %v739
          %817 = vmatpush2.bf16.msra.mxu0 %v738
          %818 = vmatprep.mubr.bf16.mxu0 %v595
          %819 = vmatmul.mubr.bf16.gmra.mxu0 %v594
          %v820 = vpop.f32.mrf.mxu0
          %v821 = vadd.f32 %v539, %v820
          %v822 = vpop.f32.mrf.mxu0
          %v823 = vadd.f32 %v543, %v822
          %v824 = vpop.f32.mrf.mxu0
          %v825 = vadd.f32 %v539, %v824
          %v826 = vpop.f32.mrf.mxu0
          %v827 = vadd.f32 %v543, %v826
          %828 = vmatprep.mubr.bf16.mxu0 %v597
          %829 = vmatmul.mubr.bf16.gmra.mxu0 %v596
          %v830 = vpop.f32.mrf.mxu0
          %v831 = vadd.f32 %v539, %v830
          %v832 = vpop.f32.mrf.mxu0
          %v833 = vadd.f32 %v543, %v832
          %v834 = vpop.f32.mrf.mxu0
          %v835 = vadd.f32 %v539, %v834
          %v836 = vpop.f32.mrf.mxu0
          %v837 = vadd.f32 %v543, %v836
          %838 = vmatprep.mubr.bf16.mxu0 %v599
          %839 = vmatmul.mubr.bf16.gmra.mxu0 %v598
          %v840 = vpop.f32.mrf.mxu0
          %v841 = vadd.f32 %v539, %v840
          %v842 = vpop.f32.mrf.mxu0
          %v843 = vadd.f32 %v543, %v842
          %v844 = vpop.f32.mrf.mxu0
          %v845 = vadd.f32 %v539, %v844
          %v846 = vpop.f32.mrf.mxu0
          %v847 = vadd.f32 %v543, %v846
          %848 = vmatprep.mubr.bf16.mxu0 %v601
          %849 = vmatmul.mubr.bf16.gmra.mxu0 %v600
          %v850 = vpop.f32.mrf.mxu0
          %v851 = vadd.f32 %v539, %v850
          %v852 = vpop.f32.mrf.mxu0
          %v853 = vadd.f32 %v543, %v852
          %v854 = vpop.f32.mrf.mxu0
          %v855 = vadd.f32 %v539, %v854
          %v856 = vpop.f32.mrf.mxu0
          %v857 = vadd.f32 %v543, %v856
          %858 = vmatprep.mubr.bf16.mxu0 %v603
          %859 = vmatmul.mubr.bf16.gmra.mxu0 %v602
          %v860 = vpop.f32.mrf.mxu0
          %v861 = vadd.f32 %v539, %v860
          %v862 = vpop.f32.mrf.mxu0
          %v863 = vadd.f32 %v543, %v862
          %v864 = vpop.f32.mrf.mxu0
          %v865 = vadd.f32 %v539, %v864
          %v866 = vpop.f32.mrf.mxu0
          %v867 = vadd.f32 %v543, %v866
          %868 = vmatprep.mubr.bf16.mxu0 %v605
          %869 = vmatmul.mubr.bf16.gmra.mxu0 %v604
          %v870 = vpop.f32.mrf.mxu0
          %v871 = vadd.f32 %v539, %v870
          %v872 = vpop.f32.mrf.mxu0
          %v873 = vadd.f32 %v543, %v872
          %v874 = vpop.f32.mrf.mxu0
          %v875 = vadd.f32 %v539, %v874
          %v876 = vpop.f32.mrf.mxu0
          %v877 = vadd.f32 %v543, %v876
          %878 = vmatprep.mubr.bf16.mxu0 %v607
          %879 = vmatmul.mubr.bf16.gmra.mxu0 %v606
          %v880 = vpop.f32.mrf.mxu0
          %v881 = vadd.f32 %v539, %v880
          %v882 = vpop.f32.mrf.mxu0
          %v883 = vadd.f32 %v543, %v882
          %v884 = vpop.f32.mrf.mxu0
          %v885 = vadd.f32 %v539, %v884
          %v886 = vpop.f32.mrf.mxu0
          %v887 = vadd.f32 %v543, %v886
          %888 = vmatprep.mubr.bf16.mxu0 %v609
          %889 = vmatmul.mubr.bf16.gmra.mxu0 %v608
          %v890 = vpop.f32.mrf.mxu0
          %v891 = vadd.f32 %v539, %v890
          %v892 = vpop.f32.mrf.mxu0
          %v893 = vadd.f32 %v543, %v892
          %v894 = vpop.f32.mrf.mxu0
          %v895 = vadd.f32 %v539, %v894
          %v896 = vpop.f32.mrf.mxu0
          %v897 = vadd.f32 %v543, %v896
          %898 = vdwg.mxu0
          %v899 = vpack.c.bf16 %v825, %v821
          %v900 = vpack.c.bf16 %v827, %v823
          %v901 = vpack.c.bf16 %v835, %v831
          %v902 = vpack.c.bf16 %v837, %v833
          %v903 = vpack.c.bf16 %v845, %v841
          %v904 = vpack.c.bf16 %v847, %v843
          %v905 = vpack.c.bf16 %v855, %v851
          %v906 = vpack.c.bf16 %v857, %v853
          %v907 = vpack.c.bf16 %v865, %v861
          %v908 = vpack.c.bf16 %v867, %v863
          %v909 = vpack.c.bf16 %v875, %v871
          %v910 = vpack.c.bf16 %v877, %v873
          %v911 = vpack.c.bf16 %v885, %v881
          %v912 = vpack.c.bf16 %v887, %v883
          %v913 = vpack.c.bf16 %v895, %v891
          %v914 = vpack.c.bf16 %v897, %v893
          %v931 = vunpack.c.l.b16 %v899
          %v932 = vunpack.c.l.b16 %v900
          %v933 = vunpack.c.h.b16 %v899
          %v934 = vunpack.c.h.b16 %v900
          %v935 = vunpack.c.l.b16 %v901
          %v936 = vunpack.c.l.b16 %v902
          %v937 = vunpack.c.h.b16 %v901
          %v938 = vunpack.c.h.b16 %v902
          %v939 = vunpack.c.l.b16 %v903
          %v940 = vunpack.c.l.b16 %v904
          %v941 = vunpack.c.h.b16 %v903
          %v942 = vunpack.c.h.b16 %v904
          %v943 = vunpack.c.l.b16 %v905
          %v944 = vunpack.c.l.b16 %v906
          %v945 = vunpack.c.h.b16 %v905
          %v946 = vunpack.c.h.b16 %v906
          %v947 = vunpack.c.l.b16 %v907
          %v948 = vunpack.c.l.b16 %v908
          %v949 = vunpack.c.h.b16 %v907
          %v950 = vunpack.c.h.b16 %v908
          %v951 = vunpack.c.l.b16 %v909
          %v952 = vunpack.c.l.b16 %v910
          %v953 = vunpack.c.h.b16 %v909
          %v954 = vunpack.c.h.b16 %v910
          %v955 = vunpack.c.l.b16 %v911
          %v956 = vunpack.c.l.b16 %v912
          %v957 = vunpack.c.h.b16 %v911
          %v958 = vunpack.c.h.b16 %v912
          %v959 = vunpack.c.l.b16 %v913
          %v960 = vunpack.c.l.b16 %v914
          %v961 = vunpack.c.h.b16 %v913
          %v962 = vunpack.c.h.b16 %v914
          %v963 = vpack.c.b16 %v932, %v931
          %v964 = vpack.c.b16 %v934, %v933
          %v965 = vpack.c.b16 %v936, %v935
          %v966 = vpack.c.b16 %v938, %v937
          %v967 = vpack.c.b16 %v940, %v939
          %v968 = vpack.c.b16 %v942, %v941
          %v969 = vpack.c.b16 %v944, %v943
          %v970 = vpack.c.b16 %v946, %v945
          %v971 = vpack.c.b16 %v948, %v947
          %v972 = vpack.c.b16 %v950, %v949
          %v973 = vpack.c.b16 %v952, %v951
          %v974 = vpack.c.b16 %v954, %v953
          %v975 = vpack.c.b16 %v956, %v955
          %v976 = vpack.c.b16 %v958, %v957
          %v977 = vpack.c.b16 %v960, %v959
          %v978 = vpack.c.b16 %v962, %v961
          %995 = vst [vmem:[#allocation2] sm:$0xff] %v963
          %996 = vst [vmem:[#allocation2 + $0x8] sm:$0xff] %v964
          %997 = vst [vmem:[#allocation2 + $0x10] sm:$0xff] %v965
          %998 = vst [vmem:[#allocation2 + $0x18] sm:$0xff] %v966
          %999 = vst [vmem:[#allocation2 + $0x20] sm:$0xff] %v967
          %1000 = vst [vmem:[#allocation2 + $0x28] sm:$0xff] %v968
          %1001 = vst [vmem:[#allocation2 + $0x30] sm:$0xff] %v969
          %1002 = vst [vmem:[#allocation2 + $0x38] sm:$0xff] %v970
          %1003 = vst [vmem:[#allocation2 + $0x40] sm:$0xff] %v971
          %1004 = vst [vmem:[#allocation2 + $0x48] sm:$0xff] %v972
          %1005 = vst [vmem:[#allocation2 + $0x50] sm:$0xff] %v973
          %1006 = vst [vmem:[#allocation2 + $0x58] sm:$0xff] %v974
          %1007 = vst [vmem:[#allocation2 + $0x60] sm:$0xff] %v975
          %1008 = vst [vmem:[#allocation2 + $0x68] sm:$0xff] %v976
          %1009 = vst [vmem:[#allocation2 + $0x70] sm:$0xff] %v977
          %1010 = vst [vmem:[#allocation2 + $0x78] sm:$0xff] %v978
          %vm1011 = vcmask 7168
          %1012 = vst.msk [vmem:[#allocation3] sm:$0xff] %vm1011, -inf
          %1013 = vst.msk [vmem:[#allocation3 + $0x8] sm:$0xff] %vm1011, -inf
          %1014 = vst.msk [vmem:[#allocation3 + $0x10] sm:$0xff] %vm1011, -inf
          %1015 = vst.msk [vmem:[#allocation3 + $0x18] sm:$0xff] %vm1011, -inf
          %1016 = vst.msk [vmem:[#allocation3 + $0x20] sm:$0xff] %vm1011, -inf
          %1017 = vst.msk [vmem:[#allocation3 + $0x28] sm:$0xff] %vm1011, -inf
          %1018 = vst.msk [vmem:[#allocation3 + $0x30] sm:$0xff] %vm1011, -inf
          %1019 = vst.msk [vmem:[#allocation3 + $0x38] sm:$0xff] %vm1011, -inf
          %1020 = vst.msk [vmem:[#allocation3 + $0x40] sm:$0xff] %vm1011, -inf
          %1021 = vst.msk [vmem:[#allocation3 + $0x48] sm:$0xff] %vm1011, -inf
          %1022 = vst.msk [vmem:[#allocation3 + $0x50] sm:$0xff] %vm1011, -inf
          %1023 = vst.msk [vmem:[#allocation3 + $0x58] sm:$0xff] %vm1011, -inf
          %1024 = vst.msk [vmem:[#allocation3 + $0x60] sm:$0xff] %vm1011, -inf
          %1025 = vst.msk [vmem:[#allocation3 + $0x68] sm:$0xff] %vm1011, -inf
          %1026 = vst.msk [vmem:[#allocation3 + $0x70] sm:$0xff] %vm1011, -inf
          %1027 = vst.msk [vmem:[#allocation3 + $0x78] sm:$0xff] %vm1011, -inf
          %1028 = vst.msk [vmem:[#allocation3 + $0x80] sm:$0xff] %vm1011, -inf
          %1029 = vst.msk [vmem:[#allocation3 + $0x88] sm:$0xff] %vm1011, -inf
          %1030 = vst.msk [vmem:[#allocation3 + $0x90] sm:$0xff] %vm1011, -inf
          %1031 = vst.msk [vmem:[#allocation3 + $0x98] sm:$0xff] %vm1011, -inf
          %1032 = vst.msk [vmem:[#allocation3 + $0xa0] sm:$0xff] %vm1011, -inf
          %1033 = vst.msk [vmem:[#allocation3 + $0xa8] sm:$0xff] %vm1011, -inf
          %1034 = vst.msk [vmem:[#allocation3 + $0xb0] sm:$0xff] %vm1011, -inf
          %1035 = vst.msk [vmem:[#allocation3 + $0xb8] sm:$0xff] %vm1011, -inf
          %1036 = vst.msk [vmem:[#allocation3 + $0xc0] sm:$0xff] %vm1011, -inf
          %1037 = vst.msk [vmem:[#allocation3 + $0xc8] sm:$0xff] %vm1011, -inf
          %1038 = vst.msk [vmem:[#allocation3 + $0xd0] sm:$0xff] %vm1011, -inf
          %1039 = vst.msk [vmem:[#allocation3 + $0xd8] sm:$0xff] %vm1011, -inf
          %1040 = vst.msk [vmem:[#allocation3 + $0xe0] sm:$0xff] %vm1011, -inf
          %1041 = vst.msk [vmem:[#allocation3 + $0xe8] sm:$0xff] %vm1011, -inf
          %1042 = vst.msk [vmem:[#allocation3 + $0xf0] sm:$0xff] %vm1011, -inf
          %1043 = vst.msk [vmem:[#allocation3 + $0xf8] sm:$0xff] %vm1011, -inf
          %1044 = vst.msk [vmem:[#allocation4] sm:$0xff] %vm1011, 0.0
          %1045 = vst.msk [vmem:[#allocation4 + $0x8] sm:$0xff] %vm1011, 0.0
          %1046 = vst.msk [vmem:[#allocation4 + $0x10] sm:$0xff] %vm1011, 0.0
          %1047 = vst.msk [vmem:[#allocation4 + $0x18] sm:$0xff] %vm1011, 0.0
          %1048 = vst.msk [vmem:[#allocation4 + $0x20] sm:$0xff] %vm1011, 0.0
          %1049 = vst.msk [vmem:[#allocation4 + $0x28] sm:$0xff] %vm1011, 0.0
          %1050 = vst.msk [vmem:[#allocation4 + $0x30] sm:$0xff] %vm1011, 0.0
          %1051 = vst.msk [vmem:[#allocation4 + $0x38] sm:$0xff] %vm1011, 0.0
          %1052 = vst.msk [vmem:[#allocation4 + $0x40] sm:$0xff] %vm1011, 0.0
          %1053 = vst.msk [vmem:[#allocation4 + $0x48] sm:$0xff] %vm1011, 0.0
          %1054 = vst.msk [vmem:[#allocation4 + $0x50] sm:$0xff] %vm1011, 0.0
          %1055 = vst.msk [vmem:[#allocation4 + $0x58] sm:$0xff] %vm1011, 0.0
          %1056 = vst.msk [vmem:[#allocation4 + $0x60] sm:$0xff] %vm1011, 0.0
          %1057 = vst.msk [vmem:[#allocation4 + $0x68] sm:$0xff] %vm1011, 0.0
          %1058 = vst.msk [vmem:[#allocation4 + $0x70] sm:$0xff] %vm1011, 0.0
          %1059 = vst.msk [vmem:[#allocation4 + $0x78] sm:$0xff] %vm1011, 0.0
          %1060 = vst.msk [vmem:[#allocation4 + $0x80] sm:$0xff] %vm1011, 0.0
          %1061 = vst.msk [vmem:[#allocation4 + $0x88] sm:$0xff] %vm1011, 0.0
          %1062 = vst.msk [vmem:[#allocation4 + $0x90] sm:$0xff] %vm1011, 0.0
          %1063 = vst.msk [vmem:[#allocation4 + $0x98] sm:$0xff] %vm1011, 0.0
          %1064 = vst.msk [vmem:[#allocation4 + $0xa0] sm:$0xff] %vm1011, 0.0
          %1065 = vst.msk [vmem:[#allocation4 + $0xa8] sm:$0xff] %vm1011, 0.0
          %1066 = vst.msk [vmem:[#allocation4 + $0xb0] sm:$0xff] %vm1011, 0.0
          %1067 = vst.msk [vmem:[#allocation4 + $0xb8] sm:$0xff] %vm1011, 0.0
          %1068 = vst.msk [vmem:[#allocation4 + $0xc0] sm:$0xff] %vm1011, 0.0
          %1069 = vst.msk [vmem:[#allocation4 + $0xc8] sm:$0xff] %vm1011, 0.0
          %1070 = vst.msk [vmem:[#allocation4 + $0xd0] sm:$0xff] %vm1011, 0.0
          %1071 = vst.msk [vmem:[#allocation4 + $0xd8] sm:$0xff] %vm1011, 0.0
          %1072 = vst.msk [vmem:[#allocation4 + $0xe0] sm:$0xff] %vm1011, 0.0
          %1073 = vst.msk [vmem:[#allocation4 + $0xe8] sm:$0xff] %vm1011, 0.0
          %1074 = vst.msk [vmem:[#allocation4 + $0xf0] sm:$0xff] %vm1011, 0.0
          %1075 = vst.msk [vmem:[#allocation4 + $0xf8] sm:$0xff] %vm1011, 0.0
          %1076 = vst [vmem:[#allocation5] sm:$0xff] 0.0
          %1077 = vst [vmem:[#allocation5 + $0x8] sm:$0xff] 0.0
          %1078 = vst [vmem:[#allocation5 + $0x10] sm:$0xff] 0.0
          %1079 = vst [vmem:[#allocation5 + $0x18] sm:$0xff] 0.0
          %1080 = vst [vmem:[#allocation5 + $0x20] sm:$0xff] 0.0
          %1081 = vst [vmem:[#allocation5 + $0x28] sm:$0xff] 0.0
          %1082 = vst [vmem:[#allocation5 + $0x30] sm:$0xff] 0.0
          %1083 = vst [vmem:[#allocation5 + $0x38] sm:$0xff] 0.0
          %1084 = vst [vmem:[#allocation5 + $0x40] sm:$0xff] 0.0
          %1085 = vst [vmem:[#allocation5 + $0x48] sm:$0xff] 0.0
          %1086 = vst [vmem:[#allocation5 + $0x50] sm:$0xff] 0.0
          %1087 = vst [vmem:[#allocation5 + $0x58] sm:$0xff] 0.0
          %1088 = vst [vmem:[#allocation5 + $0x60] sm:$0xff] 0.0
          %1089 = vst [vmem:[#allocation5 + $0x68] sm:$0xff] 0.0
          %1090 = vst [vmem:[#allocation5 + $0x70] sm:$0xff] 0.0
          %1091 = vst [vmem:[#allocation5 + $0x78] sm:$0xff] 0.0
          %1092 = vst [vmem:[#allocation5 + $0x80] sm:$0xff] 0.0
          %1093 = vst [vmem:[#allocation5 + $0x88] sm:$0xff] 0.0
          %1094 = vst [vmem:[#allocation5 + $0x90] sm:$0xff] 0.0
          %1095 = vst [vmem:[#allocation5 + $0x98] sm:$0xff] 0.0
          %1096 = vst [vmem:[#allocation5 + $0xa0] sm:$0xff] 0.0
          %1097 = vst [vmem:[#allocation5 + $0xa8] sm:$0xff] 0.0
          %1098 = vst [vmem:[#allocation5 + $0xb0] sm:$0xff] 0.0
          %1099 = vst [vmem:[#allocation5 + $0xb8] sm:$0xff] 0.0
          %1100 = vst [vmem:[#allocation5 + $0xc0] sm:$0xff] 0.0
          %1101 = vst [vmem:[#allocation5 + $0xc8] sm:$0xff] 0.0
          %1102 = vst [vmem:[#allocation5 + $0xd0] sm:$0xff] 0.0
          %1103 = vst [vmem:[#allocation5 + $0xd8] sm:$0xff] 0.0
          %1104 = vst [vmem:[#allocation5 + $0xe0] sm:$0xff] 0.0
          %1105 = vst [vmem:[#allocation5 + $0xe8] sm:$0xff] 0.0
          %1106 = vst [vmem:[#allocation5 + $0xf0] sm:$0xff] 0.0
          %1107 = vst [vmem:[#allocation5 + $0xf8] sm:$0xff] 0.0
        $region80: #{tpu_custom_call.1} parent=55 // pred_fallthru
          _
        %v1108 = vld [vmem:[#allocation2] sm:$0xf]
        %v1109 = vld [vmem:[#allocation2 + $0x8] sm:$0xf]
        %v1110 = vld [vmem:[#allocation2 + $0x10] sm:$0xf]
        %v1111 = vld [vmem:[#allocation2 + $0x18] sm:$0xf]
        %v1112 = vld [vmem:[#allocation2 + $0x20] sm:$0xf]
        %v1113 = vld [vmem:[#allocation2 + $0x28] sm:$0xf]
        %v1114 = vld [vmem:[#allocation2 + $0x30] sm:$0xf]
        %v1115 = vld [vmem:[#allocation2 + $0x38] sm:$0xf]
        %v1116 = vld [vmem:[#allocation2 + $0x40] sm:$0xf]
        %v1117 = vld [vmem:[#allocation2 + $0x48] sm:$0xf]
        %v1118 = vld [vmem:[#allocation2 + $0x50] sm:$0xf]
        %v1119 = vld [vmem:[#allocation2 + $0x58] sm:$0xf]
        %v1120 = vld [vmem:[#allocation2 + $0x60] sm:$0xf]
        %v1121 = vld [vmem:[#allocation2 + $0x68] sm:$0xf]
        %v1122 = vld [vmem:[#allocation2 + $0x70] sm:$0xf]
        %v1123 = vld [vmem:[#allocation2 + $0x78] sm:$0xf]
        %v1124 = vld [vmem:[#allocation9] sm:$0xf]
        %v1125 = vld [vmem:[#allocation9 + $0x4] sm:$0xf]
        %v1126 = vld [vmem:[#allocation9 + $0x8] sm:$0xf]
        %v1127 = vld [vmem:[#allocation9 + $0xc] sm:$0xf]
        %v1128 = vld [vmem:[#allocation9 + $0x10] sm:$0xf]
        %v1129 = vld [vmem:[#allocation9 + $0x14] sm:$0xf]
        %v1130 = vld [vmem:[#allocation9 + $0x18] sm:$0xf]
        %v1131 = vld [vmem:[#allocation9 + $0x1c] sm:$0xf]
        %v1132 = vld [vmem:[#allocation9 + $0x20] sm:$0xf]
        %v1133 = vld [vmem:[#allocation9 + $0x24] sm:$0xf]
        %v1134 = vld [vmem:[#allocation9 + $0x28] sm:$0xf]
        %v1135 = vld [vmem:[#allocation9 + $0x2c] sm:$0xf]
        %v1136 = vld [vmem:[#allocation9 + $0x30] sm:$0xf]
        %v1137 = vld [vmem:[#allocation9 + $0x34] sm:$0xf]
        %v1138 = vld [vmem:[#allocation9 + $0x38] sm:$0xf]
        %v1139 = vld [vmem:[#allocation9 + $0x3c] sm:$0xf]
        %v1156 = vunpack.c.l.b16 %v1108
        %v1157 = vunpack.c.l.b16 %v1109
        %v1158 = vunpack.c.l.b16 %v1110
        %v1159 = vunpack.c.l.b16 %v1111
        %v1160 = vunpack.c.l.b16 %v1112
        %v1161 = vunpack.c.l.b16 %v1113
        %v1162 = vunpack.c.l.b16 %v1114
        %v1163 = vunpack.c.l.b16 %v1115
        %v1164 = vunpack.c.l.b16 %v1116
        %v1165 = vunpack.c.l.b16 %v1117
        %v1166 = vunpack.c.l.b16 %v1118
        %v1167 = vunpack.c.l.b16 %v1119
        %v1168 = vunpack.c.l.b16 %v1120
        %v1169 = vunpack.c.l.b16 %v1121
        %v1170 = vunpack.c.l.b16 %v1122
        %v1171 = vunpack.c.l.b16 %v1123
        %v1172 = vpack.c.b16 %v1157, %v1156
        %v1173 = vpack.c.b16 %v1159, %v1158
        %v1174 = vpack.c.b16 %v1161, %v1160
        %v1175 = vpack.c.b16 %v1163, %v1162
        %v1176 = vpack.c.b16 %v1165, %v1164
        %v1177 = vpack.c.b16 %v1167, %v1166
        %v1178 = vpack.c.b16 %v1169, %v1168
        %v1179 = vpack.c.b16 %v1171, %v1170
        %v1204 = vunpack.c.l.b16 %v1124
        %v1205 = vunpack.c.l.b16 %v1125
        %v1206 = vunpack.c.l.b16 %v1126
        %v1207 = vunpack.c.l.b16 %v1127
        %v1208 = vunpack.c.l.b16 %v1128
        %v1209 = vunpack.c.l.b16 %v1129
        %v1210 = vunpack.c.l.b16 %v1130
        %v1211 = vunpack.c.l.b16 %v1131
        %v1212 = vunpack.c.l.b16 %v1132
        %v1213 = vunpack.c.l.b16 %v1133
        %v1214 = vunpack.c.l.b16 %v1134
        %v1215 = vunpack.c.l.b16 %v1135
        %v1216 = vunpack.c.l.b16 %v1136
        %v1217 = vunpack.c.l.b16 %v1137
        %v1218 = vunpack.c.l.b16 %v1138
        %v1219 = vunpack.c.l.b16 %v1139
        %v1220 = vpack.c.b16 %v1205, %v1204
        %v1221 = vpack.c.b16 %v1207, %v1206
        %v1222 = vpack.c.b16 %v1209, %v1208
        %v1223 = vpack.c.b16 %v1211, %v1210
        %v1224 = vpack.c.b16 %v1213, %v1212
        %v1225 = vpack.c.b16 %v1215, %v1214
        %v1226 = vpack.c.b16 %v1217, %v1216
        %v1227 = vpack.c.b16 %v1219, %v1218
        %1236 = vmatprep.subr.bf16.mxu0 0
        %1237 = vmatpush1.bf16.msra.mxu0 %v1227
        %1238 = vmatprep.subr.bf16.mxu0 0
        %1239 = vmatpush1.bf16.msra.mxu0 %v1226
        %1240 = vmatprep.subr.bf16.mxu0 0
        %1241 = vmatpush1.bf16.msra.mxu0 %v1225
        %1242 = vmatprep.subr.bf16.mxu0 0
        %1243 = vmatpush1.bf16.msra.mxu0 %v1224
        %1244 = vmatprep.subr.bf16.mxu0 0
        %1245 = vmatpush1.bf16.msra.mxu0 %v1223
        %1246 = vmatprep.subr.bf16.mxu0 0
        %1247 = vmatpush1.bf16.msra.mxu0 %v1222
        %1248 = vmatprep.subr.bf16.mxu0 0
        %1249 = vmatpush1.bf16.msra.mxu0 %v1221
        %1250 = vmatprep.subr.bf16.mxu0 0
        %1251 = vmatpush1.bf16.msra.mxu0 %v1220
        %1252 = vmatprep.subr.bf16.mxu0 0
        %1253 = vmatpush2.bf16.msra.mxu0 0
        %1254 = vmatprep.subr.bf16.mxu0 0
        %1255 = vmatpush2.bf16.msra.mxu0 0
        %1256 = vmatprep.subr.bf16.mxu0 0
        %1257 = vmatpush2.bf16.msra.mxu0 0
        %1258 = vmatprep.subr.bf16.mxu0 0
        %1259 = vmatpush2.bf16.msra.mxu0 0
        %1260 = vmatprep.subr.bf16.mxu0 0
        %1261 = vmatpush2.bf16.msra.mxu0 0
        %1262 = vmatprep.subr.bf16.mxu0 0
        %1263 = vmatpush2.bf16.msra.mxu0 0
        %1264 = vmatprep.subr.bf16.mxu0 0
        %1265 = vmatpush2.bf16.msra.mxu0 0
        %1266 = vmatprep.subr.bf16.mxu0 0
        %1267 = vmatpush2.bf16.msra.mxu0 0
        %1268 = vmatprep.mubr.bf16.mxu0 0
        %1269 = vmatmul.mubr.bf16.gmra.mxu0 %v1172
        %v1270 = vpop.f32.mrf.mxu0
        %v1271 = vadd.f32 0.0, %v1270
        %v1272 = vpop.f32.mrf.mxu0
        %v1273 = vpop.f32.mrf.mxu0
        %v1274 = vadd.f32 0.0, %v1273
        %v1275 = vpop.f32.mrf.mxu0
        %1276 = vmatprep.mubr.bf16.mxu0 0
        %1277 = vmatmul.mubr.bf16.gmra.mxu0 %v1173
        %v1278 = vpop.f32.mrf.mxu0
        %v1279 = vadd.f32 0.0, %v1278
        %v1280 = vpop.f32.mrf.mxu0
        %v1281 = vpop.f32.mrf.mxu0
        %v1282 = vadd.f32 0.0, %v1281
        %v1283 = vpop.f32.mrf.mxu0
        %1284 = vmatprep.mubr.bf16.mxu0 0
        %1285 = vmatmul.mubr.bf16.gmra.mxu0 %v1174
        %v1286 = vpop.f32.mrf.mxu0
        %v1287 = vadd.f32 0.0, %v1286
        %v1288 = vpop.f32.mrf.mxu0
        %v1289 = vpop.f32.mrf.mxu0
        %v1290 = vadd.f32 0.0, %v1289
        %v1291 = vpop.f32.mrf.mxu0
        %1292 = vmatprep.mubr.bf16.mxu0 0
        %1293 = vmatmul.mubr.bf16.gmra.mxu0 %v1175
        %v1294 = vpop.f32.mrf.mxu0
        %v1295 = vadd.f32 0.0, %v1294
        %v1296 = vpop.f32.mrf.mxu0
        %v1297 = vpop.f32.mrf.mxu0
        %v1298 = vadd.f32 0.0, %v1297
        %v1299 = vpop.f32.mrf.mxu0
        %1300 = vmatprep.mubr.bf16.mxu0 0
        %1301 = vmatmul.mubr.bf16.gmra.mxu0 %v1176
        %v1302 = vpop.f32.mrf.mxu0
        %v1303 = vadd.f32 0.0, %v1302
        %v1304 = vpop.f32.mrf.mxu0
        %v1305 = vpop.f32.mrf.mxu0
        %v1306 = vadd.f32 0.0, %v1305
        %v1307 = vpop.f32.mrf.mxu0
        %1308 = vmatprep.mubr.bf16.mxu0 0
        %1309 = vmatmul.mubr.bf16.gmra.mxu0 %v1177
        %v1310 = vpop.f32.mrf.mxu0
        %v1311 = vadd.f32 0.0, %v1310
        %v1312 = vpop.f32.mrf.mxu0
        %v1313 = vpop.f32.mrf.mxu0
        %v1314 = vadd.f32 0.0, %v1313
        %v1315 = vpop.f32.mrf.mxu0
        %1316 = vmatprep.mubr.bf16.mxu0 0
        %1317 = vmatmul.mubr.bf16.gmra.mxu0 %v1178
        %v1318 = vpop.f32.mrf.mxu0
        %v1319 = vadd.f32 0.0, %v1318
        %v1320 = vpop.f32.mrf.mxu0
        %v1321 = vpop.f32.mrf.mxu0
        %v1322 = vadd.f32 0.0, %v1321
        %v1323 = vpop.f32.mrf.mxu0
        %1324 = vmatprep.mubr.bf16.mxu0 0
        %1325 = vmatmul.mubr.bf16.gmra.mxu0 %v1179
        %v1326 = vpop.f32.mrf.mxu0
        %v1327 = vadd.f32 0.0, %v1326
        %v1328 = vpop.f32.mrf.mxu0
        %v1329 = vpop.f32.mrf.mxu0
        %v1330 = vadd.f32 0.0, %v1329
        %v1331 = vpop.f32.mrf.mxu0
        %1332 = vdwg.mxu0
        %v1333 = vmul.f32 %v1271, 0.088388346
        %v1334 = vmul.f32 %v1274, 0.088388346
        %v1335 = vmul.f32 %v1279, 0.088388346
        %v1336 = vmul.f32 %v1282, 0.088388346
        %v1337 = vmul.f32 %v1287, 0.088388346
        %v1338 = vmul.f32 %v1290, 0.088388346
        %v1339 = vmul.f32 %v1295, 0.088388346
        %v1340 = vmul.f32 %v1298, 0.088388346
        %v1341 = vmul.f32 %v1303, 0.088388346
        %v1342 = vmul.f32 %v1306, 0.088388346
        %v1343 = vmul.f32 %v1311, 0.088388346
        %v1344 = vmul.f32 %v1314, 0.088388346
        %v1345 = vmul.f32 %v1319, 0.088388346
        %v1346 = vmul.f32 %v1322, 0.088388346
        %v1347 = vmul.f32 %v1327, 0.088388346
        %v1348 = vmul.f32 %v1330, 0.088388346
        %1349 = vst [vmem:[%s476] sm:$0xff] %v1333
        %1350 = vst [vmem:[%s476 + $0x8] sm:$0xff] %v1334
        %1351 = vst [vmem:[%s476 + $0x10] sm:$0xff] %v1335
        %1352 = vst [vmem:[%s476 + $0x18] sm:$0xff] %v1336
        %1353 = vst [vmem:[%s476 + $0x20] sm:$0xff] %v1337
        %1354 = vst [vmem:[%s476 + $0x28] sm:$0xff] %v1338
        %1355 = vst [vmem:[%s476 + $0x30] sm:$0xff] %v1339
        %1356 = vst [vmem:[%s476 + $0x38] sm:$0xff] %v1340
        %1357 = vst [vmem:[%s476 + $0x40] sm:$0xff] %v1341
        %1358 = vst [vmem:[%s476 + $0x48] sm:$0xff] %v1342
        %1359 = vst [vmem:[%s476 + $0x50] sm:$0xff] %v1343
        %1360 = vst [vmem:[%s476 + $0x58] sm:$0xff] %v1344
        %1361 = vst [vmem:[%s476 + $0x60] sm:$0xff] %v1345
        %1362 = vst [vmem:[%s476 + $0x68] sm:$0xff] %v1346
        %1363 = vst [vmem:[%s476 + $0x70] sm:$0xff] %v1347
        %1364 = vst [vmem:[%s476 + $0x78] sm:$0xff] %v1348
        %v1365 = vld [vmem:[#allocation3] sm:$0xff]
        %v1366 = vld [vmem:[#allocation3 + $0x8] sm:$0xff]
        %v1367 = vld [vmem:[#allocation3 + $0x10] sm:$0xff]
        %v1368 = vld [vmem:[#allocation3 + $0x18] sm:$0xff]
        %v1369 = vld [vmem:[#allocation3 + $0x20] sm:$0xff]
        %v1370 = vld [vmem:[#allocation3 + $0x28] sm:$0xff]
        %v1371 = vld [vmem:[#allocation3 + $0x30] sm:$0xff]
        %v1372 = vld [vmem:[#allocation3 + $0x38] sm:$0xff]
        %v1373 = vld [vmem:[#allocation3 + $0x40] sm:$0xff]
        %v1374 = vld [vmem:[#allocation3 + $0x48] sm:$0xff]
        %v1375 = vld [vmem:[#allocation3 + $0x50] sm:$0xff]
        %v1376 = vld [vmem:[#allocation3 + $0x58] sm:$0xff]
        %v1377 = vld [vmem:[#allocation3 + $0x60] sm:$0xff]
        %v1378 = vld [vmem:[#allocation3 + $0x68] sm:$0xff]
        %v1379 = vld [vmem:[#allocation3 + $0x70] sm:$0xff]
        %v1380 = vld [vmem:[#allocation3 + $0x78] sm:$0xff]
        %1381 = vmax.xlane.f32.xlu0 %v1333
        %v1382 = vpop.xlane.xlu0 %1381
        %1383 = vmax.xlane.f32.xlu0 %v1334
        %v1384 = vpop.xlane.xlu0 %1383
        %1385 = vmax.xlane.f32.xlu0 %v1335
        %v1386 = vpop.xlane.xlu0 %1385
        %1387 = vmax.xlane.f32.xlu0 %v1336
        %v1388 = vpop.xlane.xlu0 %1387
        %1389 = vmax.xlane.f32.xlu0 %v1337
        %v1390 = vpop.xlane.xlu0 %1389
        %1391 = vmax.xlane.f32.xlu0 %v1338
        %v1392 = vpop.xlane.xlu0 %1391
        %1393 = vmax.xlane.f32.xlu0 %v1339
        %v1394 = vpop.xlane.xlu0 %1393
        %1395 = vmax.xlane.f32.xlu0 %v1340
        %v1396 = vpop.xlane.xlu0 %1395
        %1397 = vmax.xlane.f32.xlu0 %v1341
        %v1398 = vpop.xlane.xlu0 %1397
        %1399 = vmax.xlane.f32.xlu0 %v1342
        %v1400 = vpop.xlane.xlu0 %1399
        %1401 = vmax.xlane.f32.xlu0 %v1343
        %v1402 = vpop.xlane.xlu0 %1401
        %1403 = vmax.xlane.f32.xlu0 %v1344
        %v1404 = vpop.xlane.xlu0 %1403
        %1405 = vmax.xlane.f32.xlu0 %v1345
        %v1406 = vpop.xlane.xlu0 %1405
        %1407 = vmax.xlane.f32.xlu0 %v1346
        %v1408 = vpop.xlane.xlu0 %1407
        %1409 = vmax.xlane.f32.xlu0 %v1347
        %v1410 = vpop.xlane.xlu0 %1409
        %1411 = vmax.xlane.f32.xlu0 %v1348
        %v1412 = vpop.xlane.xlu0 %1411
        %v1413 = vmax.f32 %v1365, %v1382
        %v1414 = vmax.f32 %v1366, %v1384
        %v1415 = vmax.f32 %v1367, %v1386
        %v1416 = vmax.f32 %v1368, %v1388
        %v1417 = vmax.f32 %v1369, %v1390
        %v1418 = vmax.f32 %v1370, %v1392
        %v1419 = vmax.f32 %v1371, %v1394
        %v1420 = vmax.f32 %v1372, %v1396
        %v1421 = vmax.f32 %v1373, %v1398
        %v1422 = vmax.f32 %v1374, %v1400
        %v1423 = vmax.f32 %v1375, %v1402
        %v1424 = vmax.f32 %v1376, %v1404
        %v1425 = vmax.f32 %v1377, %v1406
        %v1426 = vmax.f32 %v1378, %v1408
        %v1427 = vmax.f32 %v1379, %v1410
        %v1428 = vmax.f32 %v1380, %v1412
        %v1429 = vsub.f32 %v1365, %v1413
        %v1430 = vsub.f32 %v1366, %v1414
        %v1431 = vsub.f32 %v1367, %v1415
        %v1432 = vsub.f32 %v1368, %v1416
        %v1433 = vsub.f32 %v1369, %v1417
        %v1434 = vsub.f32 %v1370, %v1418
        %v1435 = vsub.f32 %v1371, %v1419
        %v1436 = vsub.f32 %v1372, %v1420
        %v1437 = vsub.f32 %v1373, %v1421
        %v1438 = vsub.f32 %v1374, %v1422
        %v1439 = vsub.f32 %v1375, %v1423
        %v1440 = vsub.f32 %v1376, %v1424
        %v1441 = vsub.f32 %v1377, %v1425
        %v1442 = vsub.f32 %v1378, %v1426
        %v1443 = vsub.f32 %v1379, %v1427
        %v1444 = vsub.f32 %v1380, %v1428
        %v1445 = vmul.f32 %v1429, 1.442695
        %v1446 = vpow.pop %v1445
        %v1447 = vmul.f32 %v1430, 1.442695
        %v1448 = vpow.pop %v1447
        %v1449 = vmul.f32 %v1431, 1.442695
        %v1450 = vpow.pop %v1449
        %v1451 = vmul.f32 %v1432, 1.442695
        %v1452 = vpow.pop %v1451
        %v1453 = vmul.f32 %v1433, 1.442695
        %v1454 = vpow.pop %v1453
        %v1455 = vmul.f32 %v1434, 1.442695
        %v1456 = vpow.pop %v1455
        %v1457 = vmul.f32 %v1435, 1.442695
        %v1458 = vpow.pop %v1457
        %v1459 = vmul.f32 %v1436, 1.442695
        %v1460 = vpow.pop %v1459
        %v1461 = vmul.f32 %v1437, 1.442695
        %v1462 = vpow.pop %v1461
        %v1463 = vmul.f32 %v1438, 1.442695
        %v1464 = vpow.pop %v1463
        %v1465 = vmul.f32 %v1439, 1.442695
        %v1466 = vpow.pop %v1465
        %v1467 = vmul.f32 %v1440, 1.442695
        %v1468 = vpow.pop %v1467
        %v1469 = vmul.f32 %v1441, 1.442695
        %v1470 = vpow.pop %v1469
        %v1471 = vmul.f32 %v1442, 1.442695
        %v1472 = vpow.pop %v1471
        %v1473 = vmul.f32 %v1443, 1.442695
        %v1474 = vpow.pop %v1473
        %v1475 = vmul.f32 %v1444, 1.442695
        %v1476 = vpow.pop %v1475
        %1478 = vset.pattern.permute.xlu0 0
        %1479 = vperm.xlu0 %1478, %v1413
        %v1480 = vpop.permute.xlu0 %1479
        %1483 = vset.pattern.permute.xlu0 0
        %1484 = vperm.xlu0 %1483, %v1414
        %v1485 = vpop.permute.xlu0 %1484
        %1488 = vset.pattern.permute.xlu0 0
        %1489 = vperm.xlu0 %1488, %v1415
        %v1490 = vpop.permute.xlu0 %1489
        %1493 = vset.pattern.permute.xlu0 0
        %1494 = vperm.xlu0 %1493, %v1416
        %v1495 = vpop.permute.xlu0 %1494
        %1498 = vset.pattern.permute.xlu0 0
        %1499 = vperm.xlu0 %1498, %v1417
        %v1500 = vpop.permute.xlu0 %1499
        %1503 = vset.pattern.permute.xlu0 0
        %1504 = vperm.xlu0 %1503, %v1418
        %v1505 = vpop.permute.xlu0 %1504
        %1508 = vset.pattern.permute.xlu0 0
        %1509 = vperm.xlu0 %1508, %v1419
        %v1510 = vpop.permute.xlu0 %1509
        %1513 = vset.pattern.permute.xlu0 0
        %1514 = vperm.xlu0 %1513, %v1420
        %v1515 = vpop.permute.xlu0 %1514
        %1518 = vset.pattern.permute.xlu0 0
        %1519 = vperm.xlu0 %1518, %v1421
        %v1520 = vpop.permute.xlu0 %1519
        %1523 = vset.pattern.permute.xlu0 0
        %1524 = vperm.xlu0 %1523, %v1422
        %v1525 = vpop.permute.xlu0 %1524
        %1528 = vset.pattern.permute.xlu0 0
        %1529 = vperm.xlu0 %1528, %v1423
        %v1530 = vpop.permute.xlu0 %1529
        %1533 = vset.pattern.permute.xlu0 0
        %1534 = vperm.xlu0 %1533, %v1424
        %v1535 = vpop.permute.xlu0 %1534
        %1538 = vset.pattern.permute.xlu0 0
        %1539 = vperm.xlu0 %1538, %v1425
        %v1540 = vpop.permute.xlu0 %1539
        %1543 = vset.pattern.permute.xlu0 0
        %1544 = vperm.xlu0 %1543, %v1426
        %v1545 = vpop.permute.xlu0 %1544
        %1548 = vset.pattern.permute.xlu0 0
        %1549 = vperm.xlu0 %1548, %v1427
        %v1550 = vpop.permute.xlu0 %1549
        %1553 = vset.pattern.permute.xlu0 0
        %1554 = vperm.xlu0 %1553, %v1428
        %v1555 = vpop.permute.xlu0 %1554
        %v1557 = vsub.f32 %v1333, %v1480
        %v1558 = vsub.f32 %v1334, %v1485
        %v1559 = vsub.f32 %v1335, %v1490
        %v1560 = vsub.f32 %v1336, %v1495
        %v1561 = vsub.f32 %v1337, %v1500
        %v1562 = vsub.f32 %v1338, %v1505
        %v1563 = vsub.f32 %v1339, %v1510
        %v1564 = vsub.f32 %v1340, %v1515
        %v1565 = vsub.f32 %v1341, %v1520
        %v1566 = vsub.f32 %v1342, %v1525
        %v1567 = vsub.f32 %v1343, %v1530
        %v1568 = vsub.f32 %v1344, %v1535
        %v1569 = vsub.f32 %v1345, %v1540
        %v1570 = vsub.f32 %v1346, %v1545
        %v1571 = vsub.f32 %v1347, %v1550
        %v1572 = vsub.f32 %v1348, %v1555
        %v1573 = vmul.f32 %v1557, 1.442695
        %v1574 = vpow.pop %v1573
        %v1575 = vmul.f32 %v1558, 1.442695
        %v1576 = vpow.pop %v1575
        %v1577 = vmul.f32 %v1559, 1.442695
        %v1578 = vpow.pop %v1577
        %v1579 = vmul.f32 %v1560, 1.442695
        %v1580 = vpow.pop %v1579
        %v1581 = vmul.f32 %v1561, 1.442695
        %v1582 = vpow.pop %v1581
        %v1583 = vmul.f32 %v1562, 1.442695
        %v1584 = vpow.pop %v1583
        %v1585 = vmul.f32 %v1563, 1.442695
        %v1586 = vpow.pop %v1585
        %v1587 = vmul.f32 %v1564, 1.442695
        %v1588 = vpow.pop %v1587
        %v1589 = vmul.f32 %v1565, 1.442695
        %v1590 = vpow.pop %v1589
        %v1591 = vmul.f32 %v1566, 1.442695
        %v1592 = vpow.pop %v1591
        %v1593 = vmul.f32 %v1567, 1.442695
        %v1594 = vpow.pop %v1593
        %v1595 = vmul.f32 %v1568, 1.442695
        %v1596 = vpow.pop %v1595
        %v1597 = vmul.f32 %v1569, 1.442695
        %v1598 = vpow.pop %v1597
        %v1599 = vmul.f32 %v1570, 1.442695
        %v1600 = vpow.pop %v1599
        %v1601 = vmul.f32 %v1571, 1.442695
        %v1602 = vpow.pop %v1601
        %v1603 = vmul.f32 %v1572, 1.442695
        %v1604 = vpow.pop %v1603
        %v1605 = vld [vmem:[#allocation4] sm:$0xff]
        %v1606 = vld [vmem:[#allocation4 + $0x8] sm:$0xff]
        %v1607 = vld [vmem:[#allocation4 + $0x10] sm:$0xff]
        %v1608 = vld [vmem:[#allocation4 + $0x18] sm:$0xff]
        %v1609 = vld [vmem:[#allocation4 + $0x20] sm:$0xff]
        %v1610 = vld [vmem:[#allocation4 + $0x28] sm:$0xff]
        %v1611 = vld [vmem:[#allocation4 + $0x30] sm:$0xff]
        %v1612 = vld [vmem:[#allocation4 + $0x38] sm:$0xff]
        %v1613 = vld [vmem:[#allocation4 + $0x40] sm:$0xff]
        %v1614 = vld [vmem:[#allocation4 + $0x48] sm:$0xff]
        %v1615 = vld [vmem:[#allocation4 + $0x50] sm:$0xff]
        %v1616 = vld [vmem:[#allocation4 + $0x58] sm:$0xff]
        %v1617 = vld [vmem:[#allocation4 + $0x60] sm:$0xff]
        %v1618 = vld [vmem:[#allocation4 + $0x68] sm:$0xff]
        %v1619 = vld [vmem:[#allocation4 + $0x70] sm:$0xff]
        %v1620 = vld [vmem:[#allocation4 + $0x78] sm:$0xff]
        %v1621 = vmul.f32 %v1446, %v1605
        %v1622 = vmul.f32 %v1448, %v1606
        %v1623 = vmul.f32 %v1450, %v1607
        %v1624 = vmul.f32 %v1452, %v1608
        %v1625 = vmul.f32 %v1454, %v1609
        %v1626 = vmul.f32 %v1456, %v1610
        %v1627 = vmul.f32 %v1458, %v1611
        %v1628 = vmul.f32 %v1460, %v1612
        %v1629 = vmul.f32 %v1462, %v1613
        %v1630 = vmul.f32 %v1464, %v1614
        %v1631 = vmul.f32 %v1466, %v1615
        %v1632 = vmul.f32 %v1468, %v1616
        %v1633 = vmul.f32 %v1470, %v1617
        %v1634 = vmul.f32 %v1472, %v1618
        %v1635 = vmul.f32 %v1474, %v1619
        %v1636 = vmul.f32 %v1476, %v1620
        %1637 = vadd.xlane.f32.xlu0 %v1574
        %v1638 = vpop.xlane.xlu0 %1637
        %1639 = vadd.xlane.f32.xlu0 %v1576
        %v1640 = vpop.xlane.xlu0 %1639
        %1641 = vadd.xlane.f32.xlu0 %v1578
        %v1642 = vpop.xlane.xlu0 %1641
        %1643 = vadd.xlane.f32.xlu0 %v1580
        %v1644 = vpop.xlane.xlu0 %1643
        %1645 = vadd.xlane.f32.xlu0 %v1582
        %v1646 = vpop.xlane.xlu0 %1645
        %1647 = vadd.xlane.f32.xlu0 %v1584
        %v1648 = vpop.xlane.xlu0 %1647
        %1649 = vadd.xlane.f32.xlu0 %v1586
        %v1650 = vpop.xlane.xlu0 %1649
        %1651 = vadd.xlane.f32.xlu0 %v1588
        %v1652 = vpop.xlane.xlu0 %1651
        %1653 = vadd.xlane.f32.xlu0 %v1590
        %v1654 = vpop.xlane.xlu0 %1653
        %1655 = vadd.xlane.f32.xlu0 %v1592
        %v1656 = vpop.xlane.xlu0 %1655
        %1657 = vadd.xlane.f32.xlu0 %v1594
        %v1658 = vpop.xlane.xlu0 %1657
        %1659 = vadd.xlane.f32.xlu0 %v1596
        %v1660 = vpop.xlane.xlu0 %1659
        %1661 = vadd.xlane.f32.xlu0 %v1598
        %v1662 = vpop.xlane.xlu0 %1661
        %1663 = vadd.xlane.f32.xlu0 %v1600
        %v1664 = vpop.xlane.xlu0 %1663
        %1665 = vadd.xlane.f32.xlu0 %v1602
        %v1666 = vpop.xlane.xlu0 %1665
        %1667 = vadd.xlane.f32.xlu0 %v1604
        %v1668 = vpop.xlane.xlu0 %1667
        %v1669 = vadd.f32 %v1621, %v1638
        %v1670 = vadd.f32 %v1622, %v1640
        %v1671 = vadd.f32 %v1623, %v1642
        %v1672 = vadd.f32 %v1624, %v1644
        %v1673 = vadd.f32 %v1625, %v1646
        %v1674 = vadd.f32 %v1626, %v1648
        %v1675 = vadd.f32 %v1627, %v1650
        %v1676 = vadd.f32 %v1628, %v1652
        %v1677 = vadd.f32 %v1629, %v1654
        %v1678 = vadd.f32 %v1630, %v1656
        %v1679 = vadd.f32 %v1631, %v1658
        %v1680 = vadd.f32 %v1632, %v1660
        %v1681 = vadd.f32 %v1633, %v1662
        %v1682 = vadd.f32 %v1634, %v1664
        %v1683 = vadd.f32 %v1635, %v1666
        %v1684 = vadd.f32 %v1636, %v1668
        %vm1685 = vcmask 7168
        %1686 = vst.msk [vmem:[#allocation4] sm:$0xff] %vm1685, %v1669
        %1687 = vst.msk [vmem:[#allocation4 + $0x8] sm:$0xff] %vm1685, %v1670
        %1688 = vst.msk [vmem:[#allocation4 + $0x10] sm:$0xff] %vm1685, %v1671
        %1689 = vst.msk [vmem:[#allocation4 + $0x18] sm:$0xff] %vm1685, %v1672
        %1690 = vst.msk [vmem:[#allocation4 + $0x20] sm:$0xff] %vm1685, %v1673
        %1691 = vst.msk [vmem:[#allocation4 + $0x28] sm:$0xff] %vm1685, %v1674
        %1692 = vst.msk [vmem:[#allocation4 + $0x30] sm:$0xff] %vm1685, %v1675
        %1693 = vst.msk [vmem:[#allocation4 + $0x38] sm:$0xff] %vm1685, %v1676
        %1694 = vst.msk [vmem:[#allocation4 + $0x40] sm:$0xff] %vm1685, %v1677
        %1695 = vst.msk [vmem:[#allocation4 + $0x48] sm:$0xff] %vm1685, %v1678
        %1696 = vst.msk [vmem:[#allocation4 + $0x50] sm:$0xff] %vm1685, %v1679
        %1697 = vst.msk [vmem:[#allocation4 + $0x58] sm:$0xff] %vm1685, %v1680
        %1698 = vst.msk [vmem:[#allocation4 + $0x60] sm:$0xff] %vm1685, %v1681
        %1699 = vst.msk [vmem:[#allocation4 + $0x68] sm:$0xff] %vm1685, %v1682
        %1700 = vst.msk [vmem:[#allocation4 + $0x70] sm:$0xff] %vm1685, %v1683
        %1701 = vst.msk [vmem:[#allocation4 + $0x78] sm:$0xff] %vm1685, %v1684
        %v1702 = vpack.c.bf16 %v1576, %v1574
        %v1703 = vpack.c.bf16 %v1580, %v1578
        %v1704 = vpack.c.bf16 %v1584, %v1582
        %v1705 = vpack.c.bf16 %v1588, %v1586
        %v1706 = vpack.c.bf16 %v1592, %v1590
        %v1707 = vpack.c.bf16 %v1596, %v1594
        %v1708 = vpack.c.bf16 %v1600, %v1598
        %v1709 = vpack.c.bf16 %v1604, %v1602
        %v1710 = vld [vmem:[#allocation11] sm:$0xf]
        %v1711 = vld [vmem:[#allocation11 + $0x4] sm:$0xf]
        %v1712 = vld [vmem:[#allocation11 + $0x8] sm:$0xf]
        %v1713 = vld [vmem:[#allocation11 + $0xc] sm:$0xf]
        %v1714 = vld [vmem:[#allocation11 + $0x10] sm:$0xf]
        %v1715 = vld [vmem:[#allocation11 + $0x14] sm:$0xf]
        %v1716 = vld [vmem:[#allocation11 + $0x18] sm:$0xf]
        %v1717 = vld [vmem:[#allocation11 + $0x1c] sm:$0xf]
        %v1718 = vld [vmem:[#allocation11 + $0x20] sm:$0xf]
        %v1719 = vld [vmem:[#allocation11 + $0x24] sm:$0xf]
        %v1720 = vld [vmem:[#allocation11 + $0x28] sm:$0xf]
        %v1721 = vld [vmem:[#allocation11 + $0x2c] sm:$0xf]
        %v1722 = vld [vmem:[#allocation11 + $0x30] sm:$0xf]
        %v1723 = vld [vmem:[#allocation11 + $0x34] sm:$0xf]
        %v1724 = vld [vmem:[#allocation11 + $0x38] sm:$0xf]
        %v1725 = vld [vmem:[#allocation11 + $0x3c] sm:$0xf]
        %v1742 = vunpack.c.l.b16 %v1710
        %v1743 = vunpack.c.l.b16 %v1711
        %v1744 = vunpack.c.l.b16 %v1712
        %v1745 = vunpack.c.l.b16 %v1713
        %v1746 = vunpack.c.l.b16 %v1714
        %v1747 = vunpack.c.l.b16 %v1715
        %v1748 = vunpack.c.l.b16 %v1716
        %v1749 = vunpack.c.l.b16 %v1717
        %v1750 = vunpack.c.l.b16 %v1718
        %v1751 = vunpack.c.l.b16 %v1719
        %v1752 = vunpack.c.l.b16 %v1720
        %v1753 = vunpack.c.l.b16 %v1721
        %v1754 = vunpack.c.l.b16 %v1722
        %v1755 = vunpack.c.l.b16 %v1723
        %v1756 = vunpack.c.l.b16 %v1724
        %v1757 = vunpack.c.l.b16 %v1725
        %v1758 = vpack.c.b16 %v1743, %v1742
        %v1759 = vpack.c.b16 %v1745, %v1744
        %v1760 = vpack.c.b16 %v1747, %v1746
        %v1761 = vpack.c.b16 %v1749, %v1748
        %v1762 = vpack.c.b16 %v1751, %v1750
        %v1763 = vpack.c.b16 %v1753, %v1752
        %v1764 = vpack.c.b16 %v1755, %v1754
        %v1765 = vpack.c.b16 %v1757, %v1756
        %1774 = vmatprep.subr.bf16.mxu0 0
        %1775 = vmatpush1.bf16.msra.mxu0 %v1765
        %1776 = vmatprep.subr.bf16.mxu0 0
        %1777 = vmatpush1.bf16.msra.mxu0 %v1764
        %1778 = vmatprep.subr.bf16.mxu0 0
        %1779 = vmatpush1.bf16.msra.mxu0 %v1763
        %1780 = vmatprep.subr.bf16.mxu0 0
        %1781 = vmatpush1.bf16.msra.mxu0 %v1762
        %1782 = vmatprep.subr.bf16.mxu0 0
        %1783 = vmatpush1.bf16.msra.mxu0 %v1761
        %1784 = vmatprep.subr.bf16.mxu0 0
        %1785 = vmatpush1.bf16.msra.mxu0 %v1760
        %1786 = vmatprep.subr.bf16.mxu0 0
        %1787 = vmatpush1.bf16.msra.mxu0 %v1759
        %1788 = vmatprep.subr.bf16.mxu0 0
        %1789 = vmatpush1.bf16.msra.mxu0 %v1758
        %1790 = vmatprep.subr.bf16.mxu0 0
        %1791 = vmatpush2.bf16.msra.mxu0 0
        %1792 = vmatprep.subr.bf16.mxu0 0
        %1793 = vmatpush2.bf16.msra.mxu0 0
        %1794 = vmatprep.subr.bf16.mxu0 0
        %1795 = vmatpush2.bf16.msra.mxu0 0
        %1796 = vmatprep.subr.bf16.mxu0 0
        %1797 = vmatpush2.bf16.msra.mxu0 0
        %1798 = vmatprep.subr.bf16.mxu0 0
        %1799 = vmatpush2.bf16.msra.mxu0 0
        %1800 = vmatprep.subr.bf16.mxu0 0
        %1801 = vmatpush2.bf16.msra.mxu0 0
        %1802 = vmatprep.subr.bf16.mxu0 0
        %1803 = vmatpush2.bf16.msra.mxu0 0
        %1804 = vmatprep.subr.bf16.mxu0 0
        %1805 = vmatpush2.bf16.msra.mxu0 0
        %1806 = vmatprep.mubr.bf16.mxu0 0
        %1807 = vmatmul.mubr.bf16.gmra.mxu0 %v1702
        %v1808 = vpop.f32.mrf.mxu0
        %v1809 = vadd.f32 0.0, %v1808
        %v1810 = vpop.f32.mrf.mxu0
        %v1811 = vpop.f32.mrf.mxu0
        %v1812 = vadd.f32 0.0, %v1811
        %v1813 = vpop.f32.mrf.mxu0
        %1814 = vmatprep.mubr.bf16.mxu0 0
        %1815 = vmatmul.mubr.bf16.gmra.mxu0 %v1703
        %v1816 = vpop.f32.mrf.mxu0
        %v1817 = vadd.f32 0.0, %v1816
        %v1818 = vpop.f32.mrf.mxu0
        %v1819 = vpop.f32.mrf.mxu0
        %v1820 = vadd.f32 0.0, %v1819
        %v1821 = vpop.f32.mrf.mxu0
        %1822 = vmatprep.mubr.bf16.mxu0 0
        %1823 = vmatmul.mubr.bf16.gmra.mxu0 %v1704
        %v1824 = vpop.f32.mrf.mxu0
        %v1825 = vadd.f32 0.0, %v1824
        %v1826 = vpop.f32.mrf.mxu0
        %v1827 = vpop.f32.mrf.mxu0
        %v1828 = vadd.f32 0.0, %v1827
        %v1829 = vpop.f32.mrf.mxu0
        %1830 = vmatprep.mubr.bf16.mxu0 0
        %1831 = vmatmul.mubr.bf16.gmra.mxu0 %v1705
        %v1832 = vpop.f32.mrf.mxu0
        %v1833 = vadd.f32 0.0, %v1832
        %v1834 = vpop.f32.mrf.mxu0
        %v1835 = vpop.f32.mrf.mxu0
        %v1836 = vadd.f32 0.0, %v1835
        %v1837 = vpop.f32.mrf.mxu0
        %1838 = vmatprep.mubr.bf16.mxu0 0
        %1839 = vmatmul.mubr.bf16.gmra.mxu0 %v1706
        %v1840 = vpop.f32.mrf.mxu0
        %v1841 = vadd.f32 0.0, %v1840
        %v1842 = vpop.f32.mrf.mxu0
        %v1843 = vpop.f32.mrf.mxu0
        %v1844 = vadd.f32 0.0, %v1843
        %v1845 = vpop.f32.mrf.mxu0
        %1846 = vmatprep.mubr.bf16.mxu0 0
        %1847 = vmatmul.mubr.bf16.gmra.mxu0 %v1707
        %v1848 = vpop.f32.mrf.mxu0
        %v1849 = vadd.f32 0.0, %v1848
        %v1850 = vpop.f32.mrf.mxu0
        %v1851 = vpop.f32.mrf.mxu0
        %v1852 = vadd.f32 0.0, %v1851
        %v1853 = vpop.f32.mrf.mxu0
        %1854 = vmatprep.mubr.bf16.mxu0 0
        %1855 = vmatmul.mubr.bf16.gmra.mxu0 %v1708
        %v1856 = vpop.f32.mrf.mxu0
        %v1857 = vadd.f32 0.0, %v1856
        %v1858 = vpop.f32.mrf.mxu0
        %v1859 = vpop.f32.mrf.mxu0
        %v1860 = vadd.f32 0.0, %v1859
        %v1861 = vpop.f32.mrf.mxu0
        %1862 = vmatprep.mubr.bf16.mxu0 0
        %1863 = vmatmul.mubr.bf16.gmra.mxu0 %v1709
        %v1864 = vpop.f32.mrf.mxu0
        %v1865 = vadd.f32 0.0, %v1864
        %v1866 = vpop.f32.mrf.mxu0
        %v1867 = vpop.f32.mrf.mxu0
        %v1868 = vadd.f32 0.0, %v1867
        %v1869 = vpop.f32.mrf.mxu0
        %1870 = vdwg.mxu0
        %v1871 = vld [vmem:[#allocation5] sm:$0xff]
        %v1872 = vld [vmem:[#allocation5 + $0x10] sm:$0xff]
        %v1873 = vld [vmem:[#allocation5 + $0x20] sm:$0xff]
        %v1874 = vld [vmem:[#allocation5 + $0x30] sm:$0xff]
        %v1875 = vld [vmem:[#allocation5 + $0x40] sm:$0xff]
        %v1876 = vld [vmem:[#allocation5 + $0x50] sm:$0xff]
        %v1877 = vld [vmem:[#allocation5 + $0x60] sm:$0xff]
        %v1878 = vld [vmem:[#allocation5 + $0x70] sm:$0xff]
        %v1879 = vld [vmem:[#allocation5 + $0x80] sm:$0xff]
        %v1880 = vld [vmem:[#allocation5 + $0x90] sm:$0xff]
        %v1881 = vld [vmem:[#allocation5 + $0xa0] sm:$0xff]
        %v1882 = vld [vmem:[#allocation5 + $0xb0] sm:$0xff]
        %v1883 = vld [vmem:[#allocation5 + $0xc0] sm:$0xff]
        %v1884 = vld [vmem:[#allocation5 + $0xd0] sm:$0xff]
        %v1885 = vld [vmem:[#allocation5 + $0xe0] sm:$0xff]
        %v1886 = vld [vmem:[#allocation5 + $0xf0] sm:$0xff]
        %1888 = vset.pattern.permute.xlu0 0
        %1889 = vperm.xlu0 %1888, %v1446
        %v1890 = vpop.permute.xlu0 %1889
        %1893 = vset.pattern.permute.xlu0 0
        %1894 = vperm.xlu0 %1893, %v1448
        %v1895 = vpop.permute.xlu0 %1894
        %1898 = vset.pattern.permute.xlu0 0
        %1899 = vperm.xlu0 %1898, %v1450
        %v1900 = vpop.permute.xlu0 %1899
        %1903 = vset.pattern.permute.xlu0 0
        %1904 = vperm.xlu0 %1903, %v1452
        %v1905 = vpop.permute.xlu0 %1904
        %1908 = vset.pattern.permute.xlu0 0
        %1909 = vperm.xlu0 %1908, %v1454
        %v1910 = vpop.permute.xlu0 %1909
        %1913 = vset.pattern.permute.xlu0 0
        %1914 = vperm.xlu0 %1913, %v1456
        %v1915 = vpop.permute.xlu0 %1914
        %1918 = vset.pattern.permute.xlu0 0
        %1919 = vperm.xlu0 %1918, %v1458
        %v1920 = vpop.permute.xlu0 %1919
        %1923 = vset.pattern.permute.xlu0 0
        %1924 = vperm.xlu0 %1923, %v1460
        %v1925 = vpop.permute.xlu0 %1924
        %1928 = vset.pattern.permute.xlu0 0
        %1929 = vperm.xlu0 %1928, %v1462
        %v1930 = vpop.permute.xlu0 %1929
        %1933 = vset.pattern.permute.xlu0 0
        %1934 = vperm.xlu0 %1933, %v1464
        %v1935 = vpop.permute.xlu0 %1934
        %1938 = vset.pattern.permute.xlu0 0
        %1939 = vperm.xlu0 %1938, %v1466
        %v1940 = vpop.permute.xlu0 %1939
        %1943 = vset.pattern.permute.xlu0 0
        %1944 = vperm.xlu0 %1943, %v1468
        %v1945 = vpop.permute.xlu0 %1944
        %1948 = vset.pattern.permute.xlu0 0
        %1949 = vperm.xlu0 %1948, %v1470
        %v1950 = vpop.permute.xlu0 %1949
        %1953 = vset.pattern.permute.xlu0 0
        %1954 = vperm.xlu0 %1953, %v1472
        %v1955 = vpop.permute.xlu0 %1954
        %1958 = vset.pattern.permute.xlu0 0
        %1959 = vperm.xlu0 %1958, %v1474
        %v1960 = vpop.permute.xlu0 %1959
        %1963 = vset.pattern.permute.xlu0 0
        %1964 = vperm.xlu0 %1963, %v1476
        %v1965 = vpop.permute.xlu0 %1964
        %v1967 = vmul.f32 %v1890, %v1871
        %v1968 = vmul.f32 %v1895, %v1872
        %v1969 = vmul.f32 %v1900, %v1873
        %v1970 = vmul.f32 %v1905, %v1874
        %v1971 = vmul.f32 %v1910, %v1875
        %v1972 = vmul.f32 %v1915, %v1876
        %v1973 = vmul.f32 %v1920, %v1877
        %v1974 = vmul.f32 %v1925, %v1878
        %v1975 = vmul.f32 %v1930, %v1879
        %v1976 = vmul.f32 %v1935, %v1880
        %v1977 = vmul.f32 %v1940, %v1881
        %v1978 = vmul.f32 %v1945, %v1882
        %v1979 = vmul.f32 %v1950, %v1883
        %v1980 = vmul.f32 %v1955, %v1884
        %v1981 = vmul.f32 %v1960, %v1885
        %v1982 = vmul.f32 %v1965, %v1886
        %v1983 = vadd.f32 %v1967, %v1809
        %v1984 = vadd.f32 %v1968, %v1812
        %v1985 = vadd.f32 %v1969, %v1817
        %v1986 = vadd.f32 %v1970, %v1820
        %v1987 = vadd.f32 %v1971, %v1825
        %v1988 = vadd.f32 %v1972, %v1828
        %v1989 = vadd.f32 %v1973, %v1833
        %v1990 = vadd.f32 %v1974, %v1836
        %v1991 = vadd.f32 %v1975, %v1841
        %v1992 = vadd.f32 %v1976, %v1844
        %v1993 = vadd.f32 %v1977, %v1849
        %v1994 = vadd.f32 %v1978, %v1852
        %v1995 = vadd.f32 %v1979, %v1857
        %v1996 = vadd.f32 %v1980, %v1860
        %v1997 = vadd.f32 %v1981, %v1865
        %v1998 = vadd.f32 %v1982, %v1868
        %1999 = vst [vmem:[#allocation5] sm:$0xff] %v1983
        %2000 = vst [vmem:[#allocation5 + $0x10] sm:$0xff] %v1984
        %2001 = vst [vmem:[#allocation5 + $0x20] sm:$0xff] %v1985
        %2002 = vst [vmem:[#allocation5 + $0x30] sm:$0xff] %v1986
        %2003 = vst [vmem:[#allocation5 + $0x40] sm:$0xff] %v1987
        %2004 = vst [vmem:[#allocation5 + $0x50] sm:$0xff] %v1988
        %2005 = vst [vmem:[#allocation5 + $0x60] sm:$0xff] %v1989
        %2006 = vst [vmem:[#allocation5 + $0x70] sm:$0xff] %v1990
        %2007 = vst [vmem:[#allocation5 + $0x80] sm:$0xff] %v1991
        %2008 = vst [vmem:[#allocation5 + $0x90] sm:$0xff] %v1992
        %2009 = vst [vmem:[#allocation5 + $0xa0] sm:$0xff] %v1993
        %2010 = vst [vmem:[#allocation5 + $0xb0] sm:$0xff] %v1994
        %2011 = vst [vmem:[#allocation5 + $0xc0] sm:$0xff] %v1995
        %2012 = vst [vmem:[#allocation5 + $0xd0] sm:$0xff] %v1996
        %2013 = vst [vmem:[#allocation5 + $0xe0] sm:$0xff] %v1997
        %2014 = vst [vmem:[#allocation5 + $0xf0] sm:$0xff] %v1998
        %2015 = vst.msk [vmem:[#allocation3] sm:$0xff] %vm1685, %v1413
        %2016 = vst.msk [vmem:[#allocation3 + $0x8] sm:$0xff] %vm1685, %v1414
        %2017 = vst.msk [vmem:[#allocation3 + $0x10] sm:$0xff] %vm1685, %v1415
        %2018 = vst.msk [vmem:[#allocation3 + $0x18] sm:$0xff] %vm1685, %v1416
        %2019 = vst.msk [vmem:[#allocation3 + $0x20] sm:$0xff] %vm1685, %v1417
        %2020 = vst.msk [vmem:[#allocation3 + $0x28] sm:$0xff] %vm1685, %v1418
        %2021 = vst.msk [vmem:[#allocation3 + $0x30] sm:$0xff] %vm1685, %v1419
        %2022 = vst.msk [vmem:[#allocation3 + $0x38] sm:$0xff] %vm1685, %v1420
        %2023 = vst.msk [vmem:[#allocation3 + $0x40] sm:$0xff] %vm1685, %v1421
        %2024 = vst.msk [vmem:[#allocation3 + $0x48] sm:$0xff] %vm1685, %v1422
        %2025 = vst.msk [vmem:[#allocation3 + $0x50] sm:$0xff] %vm1685, %v1423
        %2026 = vst.msk [vmem:[#allocation3 + $0x58] sm:$0xff] %vm1685, %v1424
        %2027 = vst.msk [vmem:[#allocation3 + $0x60] sm:$0xff] %vm1685, %v1425
        %2028 = vst.msk [vmem:[#allocation3 + $0x68] sm:$0xff] %vm1685, %v1426
        %2029 = vst.msk [vmem:[#allocation3 + $0x70] sm:$0xff] %vm1685, %v1427
        %2030 = vst.msk [vmem:[#allocation3 + $0x78] sm:$0xff] %vm1685, %v1428
        %v2031 = vld [vmem:[#allocation2 + $0x4] sm:$0xf]
        %v2032 = vld [vmem:[#allocation2 + $0xc] sm:$0xf]
        %v2033 = vld [vmem:[#allocation2 + $0x14] sm:$0xf]
        %v2034 = vld [vmem:[#allocation2 + $0x1c] sm:$0xf]
        %v2035 = vld [vmem:[#allocation2 + $0x24] sm:$0xf]
        %v2036 = vld [vmem:[#allocation2 + $0x2c] sm:$0xf]
        %v2037 = vld [vmem:[#allocation2 + $0x34] sm:$0xf]
        %v2038 = vld [vmem:[#allocation2 + $0x3c] sm:$0xf]
        %v2039 = vld [vmem:[#allocation2 + $0x44] sm:$0xf]
        %v2040 = vld [vmem:[#allocation2 + $0x4c] sm:$0xf]
        %v2041 = vld [vmem:[#allocation2 + $0x54] sm:$0xf]
        %v2042 = vld [vmem:[#allocation2 + $0x5c] sm:$0xf]
        %v2043 = vld [vmem:[#allocation2 + $0x64] sm:$0xf]
        %v2044 = vld [vmem:[#allocation2 + $0x6c] sm:$0xf]
        %v2045 = vld [vmem:[#allocation2 + $0x74] sm:$0xf]
        %v2046 = vld [vmem:[#allocation2 + $0x7c] sm:$0xf]
        %s2047 = scalar_lea.vmem [#allocation9], 64
        %v2048 = vld [vmem:[%s2047] sm:$0xf]
        %v2049 = vld [vmem:[%s2047 + $0x4] sm:$0xf]
        %v2050 = vld [vmem:[%s2047 + $0x8] sm:$0xf]
        %v2051 = vld [vmem:[%s2047 + $0xc] sm:$0xf]
        %v2052 = vld [vmem:[%s2047 + $0x10] sm:$0xf]
        %v2053 = vld [vmem:[%s2047 + $0x14] sm:$0xf]
        %v2054 = vld [vmem:[%s2047 + $0x18] sm:$0xf]
        %v2055 = vld [vmem:[%s2047 + $0x1c] sm:$0xf]
        %v2056 = vld [vmem:[%s2047 + $0x20] sm:$0xf]
        %v2057 = vld [vmem:[%s2047 + $0x24] sm:$0xf]
        %v2058 = vld [vmem:[%s2047 + $0x28] sm:$0xf]
        %v2059 = vld [vmem:[%s2047 + $0x2c] sm:$0xf]
        %v2060 = vld [vmem:[%s2047 + $0x30] sm:$0xf]
        %v2061 = vld [vmem:[%s2047 + $0x34] sm:$0xf]
        %v2062 = vld [vmem:[%s2047 + $0x38] sm:$0xf]
        %v2063 = vld [vmem:[%s2047 + $0x3c] sm:$0xf]
        %v2080 = vunpack.c.l.b16 %v2031
        %v2081 = vunpack.c.l.b16 %v2032
        %v2082 = vunpack.c.l.b16 %v2033
        %v2083 = vunpack.c.l.b16 %v2034
        %v2084 = vunpack.c.l.b16 %v2035
        %v2085 = vunpack.c.l.b16 %v2036
        %v2086 = vunpack.c.l.b16 %v2037
        %v2087 = vunpack.c.l.b16 %v2038
        %v2088 = vunpack.c.l.b16 %v2039
        %v2089 = vunpack.c.l.b16 %v2040
        %v2090 = vunpack.c.l.b16 %v2041
        %v2091 = vunpack.c.l.b16 %v2042
        %v2092 = vunpack.c.l.b16 %v2043
        %v2093 = vunpack.c.l.b16 %v2044
        %v2094 = vunpack.c.l.b16 %v2045
        %v2095 = vunpack.c.l.b16 %v2046
        %v2096 = vpack.c.b16 %v2081, %v2080
        %v2097 = vpack.c.b16 %v2083, %v2082
        %v2098 = vpack.c.b16 %v2085, %v2084
        %v2099 = vpack.c.b16 %v2087, %v2086
        %v2100 = vpack.c.b16 %v2089, %v2088
        %v2101 = vpack.c.b16 %v2091, %v2090
        %v2102 = vpack.c.b16 %v2093, %v2092
        %v2103 = vpack.c.b16 %v2095, %v2094
        %v2128 = vunpack.c.l.b16 %v2048
        %v2129 = vunpack.c.l.b16 %v2049
        %v2130 = vunpack.c.l.b16 %v2050
        %v2131 = vunpack.c.l.b16 %v2051
        %v2132 = vunpack.c.l.b16 %v2052
        %v2133 = vunpack.c.l.b16 %v2053
        %v2134 = vunpack.c.l.b16 %v2054
        %v2135 = vunpack.c.l.b16 %v2055
        %v2136 = vunpack.c.l.b16 %v2056
        %v2137 = vunpack.c.l.b16 %v2057
        %v2138 = vunpack.c.l.b16 %v2058
        %v2139 = vunpack.c.l.b16 %v2059
        %v2140 = vunpack.c.l.b16 %v2060
        %v2141 = vunpack.c.l.b16 %v2061
        %v2142 = vunpack.c.l.b16 %v2062
        %v2143 = vunpack.c.l.b16 %v2063
        %v2144 = vpack.c.b16 %v2129, %v2128
        %v2145 = vpack.c.b16 %v2131, %v2130
        %v2146 = vpack.c.b16 %v2133, %v2132
        %v2147 = vpack.c.b16 %v2135, %v2134
        %v2148 = vpack.c.b16 %v2137, %v2136
        %v2149 = vpack.c.b16 %v2139, %v2138
        %v2150 = vpack.c.b16 %v2141, %v2140
        %v2151 = vpack.c.b16 %v2143, %v2142
        %2160 = vmatprep.subr.bf16.mxu0 0
        %2161 = vmatpush1.bf16.msra.mxu0 %v2151
        %2162 = vmatprep.subr.bf16.mxu0 0
        %2163 = vmatpush1.bf16.msra.mxu0 %v2150
        %2164 = vmatprep.subr.bf16.mxu0 0
        %2165 = vmatpush1.bf16.msra.mxu0 %v2149
        %2166 = vmatprep.subr.bf16.mxu0 0
        %2167 = vmatpush1.bf16.msra.mxu0 %v2148
        %2168 = vmatprep.subr.bf16.mxu0 0
        %2169 = vmatpush1.bf16.msra.mxu0 %v2147
        %2170 = vmatprep.subr.bf16.mxu0 0
        %2171 = vmatpush1.bf16.msra.mxu0 %v2146
        %2172 = vmatprep.subr.bf16.mxu0 0
        %2173 = vmatpush1.bf16.msra.mxu0 %v2145
        %2174 = vmatprep.subr.bf16.mxu0 0
        %2175 = vmatpush1.bf16.msra.mxu0 %v2144
        %2176 = vmatprep.subr.bf16.mxu0 0
        %2177 = vmatpush2.bf16.msra.mxu0 0
        %2178 = vmatprep.subr.bf16.mxu0 0
        %2179 = vmatpush2.bf16.msra.mxu0 0
        %2180 = vmatprep.subr.bf16.mxu0 0
        %2181 = vmatpush2.bf16.msra.mxu0 0
        %2182 = vmatprep.subr.bf16.mxu0 0
        %2183 = vmatpush2.bf16.msra.mxu0 0
        %2184 = vmatprep.subr.bf16.mxu0 0
        %2185 = vmatpush2.bf16.msra.mxu0 0
        %2186 = vmatprep.subr.bf16.mxu0 0
        %2187 = vmatpush2.bf16.msra.mxu0 0
        %2188 = vmatprep.subr.bf16.mxu0 0
        %2189 = vmatpush2.bf16.msra.mxu0 0
        %2190 = vmatprep.subr.bf16.mxu0 0
        %2191 = vmatpush2.bf16.msra.mxu0 0
        %2192 = vmatprep.mubr.bf16.mxu0 0
        %2193 = vmatmul.mubr.bf16.gmra.mxu0 %v2096
        %v2194 = vpop.f32.mrf.mxu0
        %v2195 = vadd.f32 0.0, %v2194
        %v2196 = vpop.f32.mrf.mxu0
        %v2197 = vpop.f32.mrf.mxu0
        %v2198 = vadd.f32 0.0, %v2197
        %v2199 = vpop.f32.mrf.mxu0
        %2200 = vmatprep.mubr.bf16.mxu0 0
        %2201 = vmatmul.mubr.bf16.gmra.mxu0 %v2097
        %v2202 = vpop.f32.mrf.mxu0
        %v2203 = vadd.f32 0.0, %v2202
        %v2204 = vpop.f32.mrf.mxu0
        %v2205 = vpop.f32.mrf.mxu0
        %v2206 = vadd.f32 0.0, %v2205
        %v2207 = vpop.f32.mrf.mxu0
        %2208 = vmatprep.mubr.bf16.mxu0 0
        %2209 = vmatmul.mubr.bf16.gmra.mxu0 %v2098
        %v2210 = vpop.f32.mrf.mxu0
        %v2211 = vadd.f32 0.0, %v2210
        %v2212 = vpop.f32.mrf.mxu0
        %v2213 = vpop.f32.mrf.mxu0
        %v2214 = vadd.f32 0.0, %v2213
        %v2215 = vpop.f32.mrf.mxu0
        %2216 = vmatprep.mubr.bf16.mxu0 0
        %2217 = vmatmul.mubr.bf16.gmra.mxu0 %v2099
        %v2218 = vpop.f32.mrf.mxu0
        %v2219 = vadd.f32 0.0, %v2218
        %v2220 = vpop.f32.mrf.mxu0
        %v2221 = vpop.f32.mrf.mxu0
        %v2222 = vadd.f32 0.0, %v2221
        %v2223 = vpop.f32.mrf.mxu0
        %2224 = vmatprep.mubr.bf16.mxu0 0
        %2225 = vmatmul.mubr.bf16.gmra.mxu0 %v2100
        %v2226 = vpop.f32.mrf.mxu0
        %v2227 = vadd.f32 0.0, %v2226
        %v2228 = vpop.f32.mrf.mxu0
        %v2229 = vpop.f32.mrf.mxu0
        %v2230 = vadd.f32 0.0, %v2229
        %v2231 = vpop.f32.mrf.mxu0
        %2232 = vmatprep.mubr.bf16.mxu0 0
        %2233 = vmatmul.mubr.bf16.gmra.mxu0 %v2101
        %v2234 = vpop.f32.mrf.mxu0
        %v2235 = vadd.f32 0.0, %v2234
        %v2236 = vpop.f32.mrf.mxu0
        %v2237 = vpop.f32.mrf.mxu0
        %v2238 = vadd.f32 0.0, %v2237
        %v2239 = vpop.f32.mrf.mxu0
        %2240 = vmatprep.mubr.bf16.mxu0 0
        %2241 = vmatmul.mubr.bf16.gmra.mxu0 %v2102
        %v2242 = vpop.f32.mrf.mxu0
        %v2243 = vadd.f32 0.0, %v2242
        %v2244 = vpop.f32.mrf.mxu0
        %v2245 = vpop.f32.mrf.mxu0
        %v2246 = vadd.f32 0.0, %v2245
        %v2247 = vpop.f32.mrf.mxu0
        %2248 = vmatprep.mubr.bf16.mxu0 0
        %2249 = vmatmul.mubr.bf16.gmra.mxu0 %v2103
        %v2250 = vpop.f32.mrf.mxu0
        %v2251 = vadd.f32 0.0, %v2250
        %v2252 = vpop.f32.mrf.mxu0
        %v2253 = vpop.f32.mrf.mxu0
        %v2254 = vadd.f32 0.0, %v2253
        %v2255 = vpop.f32.mrf.mxu0
        %2256 = vdwg.mxu0
        %v2257 = vmul.f32 %v2195, 0.088388346
        %v2258 = vmul.f32 %v2198, 0.088388346
        %v2259 = vmul.f32 %v2203, 0.088388346
        %v2260 = vmul.f32 %v2206, 0.088388346
        %v2261 = vmul.f32 %v2211, 0.088388346
        %v2262 = vmul.f32 %v2214, 0.088388346
        %v2263 = vmul.f32 %v2219, 0.088388346
        %v2264 = vmul.f32 %v2222, 0.088388346
        %v2265 = vmul.f32 %v2227, 0.088388346
        %v2266 = vmul.f32 %v2230, 0.088388346
        %v2267 = vmul.f32 %v2235, 0.088388346
        %v2268 = vmul.f32 %v2238, 0.088388346
        %v2269 = vmul.f32 %v2243, 0.088388346
        %v2270 = vmul.f32 %v2246, 0.088388346
        %v2271 = vmul.f32 %v2251, 0.088388346
        %v2272 = vmul.f32 %v2254, 0.088388346
        %s2273 = scalar_lea.vmem %s476, 128 [#allocation16]
        %2274 = vst [vmem:[%s2273] sm:$0xff] %v2257
        %2275 = vst [vmem:[%s2273 + $0x8] sm:$0xff] %v2258
        %2276 = vst [vmem:[%s2273 + $0x10] sm:$0xff] %v2259
        %2277 = vst [vmem:[%s2273 + $0x18] sm:$0xff] %v2260
        %2278 = vst [vmem:[%s2273 + $0x20] sm:$0xff] %v2261
        %2279 = vst [vmem:[%s2273 + $0x28] sm:$0xff] %v2262
        %2280 = vst [vmem:[%s2273 + $0x30] sm:$0xff] %v2263
        %2281 = vst [vmem:[%s2273 + $0x38] sm:$0xff] %v2264
        %2282 = vst [vmem:[%s2273 + $0x40] sm:$0xff] %v2265
        %2283 = vst [vmem:[%s2273 + $0x48] sm:$0xff] %v2266
        %2284 = vst [vmem:[%s2273 + $0x50] sm:$0xff] %v2267
        %2285 = vst [vmem:[%s2273 + $0x58] sm:$0xff] %v2268
        %2286 = vst [vmem:[%s2273 + $0x60] sm:$0xff] %v2269
        %2287 = vst [vmem:[%s2273 + $0x68] sm:$0xff] %v2270
        %2288 = vst [vmem:[%s2273 + $0x70] sm:$0xff] %v2271
        %2289 = vst [vmem:[%s2273 + $0x78] sm:$0xff] %v2272
        %s2290 = scalar_lea.vmem [#allocation3], 128
        %v2291 = vld [vmem:[%s2290] sm:$0xff]
        %v2292 = vld [vmem:[%s2290 + $0x8] sm:$0xff]
        %v2293 = vld [vmem:[%s2290 + $0x10] sm:$0xff]
        %v2294 = vld [vmem:[%s2290 + $0x18] sm:$0xff]
        %v2295 = vld [vmem:[%s2290 + $0x20] sm:$0xff]
        %v2296 = vld [vmem:[%s2290 + $0x28] sm:$0xff]
        %v2297 = vld [vmem:[%s2290 + $0x30] sm:$0xff]
        %v2298 = vld [vmem:[%s2290 + $0x38] sm:$0xff]
        %v2299 = vld [vmem:[%s2290 + $0x40] sm:$0xff]
        %v2300 = vld [vmem:[%s2290 + $0x48] sm:$0xff]
        %v2301 = vld [vmem:[%s2290 + $0x50] sm:$0xff]
        %v2302 = vld [vmem:[%s2290 + $0x58] sm:$0xff]
        %v2303 = vld [vmem:[%s2290 + $0x60] sm:$0xff]
        %v2304 = vld [vmem:[%s2290 + $0x68] sm:$0xff]
        %v2305 = vld [vmem:[%s2290 + $0x70] sm:$0xff]
        %v2306 = vld [vmem:[%s2290 + $0x78] sm:$0xff]
        %2307 = vmax.xlane.f32.xlu0 %v2257
        %v2308 = vpop.xlane.xlu0 %2307
        %2309 = vmax.xlane.f32.xlu0 %v2258
        %v2310 = vpop.xlane.xlu0 %2309
        %2311 = vmax.xlane.f32.xlu0 %v2259
        %v2312 = vpop.xlane.xlu0 %2311
        %2313 = vmax.xlane.f32.xlu0 %v2260
        %v2314 = vpop.xlane.xlu0 %2313
        %2315 = vmax.xlane.f32.xlu0 %v2261
        %v2316 = vpop.xlane.xlu0 %2315
        %2317 = vmax.xlane.f32.xlu0 %v2262
        %v2318 = vpop.xlane.xlu0 %2317
        %2319 = vmax.xlane.f32.xlu0 %v2263
        %v2320 = vpop.xlane.xlu0 %2319
        %2321 = vmax.xlane.f32.xlu0 %v2264
        %v2322 = vpop.xlane.xlu0 %2321
        %2323 = vmax.xlane.f32.xlu0 %v2265
        %v2324 = vpop.xlane.xlu0 %2323
        %2325 = vmax.xlane.f32.xlu0 %v2266
        %v2326 = vpop.xlane.xlu0 %2325
        %2327 = vmax.xlane.f32.xlu0 %v2267
        %v2328 = vpop.xlane.xlu0 %2327
        %2329 = vmax.xlane.f32.xlu0 %v2268
        %v2330 = vpop.xlane.xlu0 %2329
        %2331 = vmax.xlane.f32.xlu0 %v2269
        %v2332 = vpop.xlane.xlu0 %2331
        %2333 = vmax.xlane.f32.xlu0 %v2270
        %v2334 = vpop.xlane.xlu0 %2333
        %2335 = vmax.xlane.f32.xlu0 %v2271
        %v2336 = vpop.xlane.xlu0 %2335
        %2337 = vmax.xlane.f32.xlu0 %v2272
        %v2338 = vpop.xlane.xlu0 %2337
        %v2339 = vmax.f32 %v2291, %v2308
        %v2340 = vmax.f32 %v2292, %v2310
        %v2341 = vmax.f32 %v2293, %v2312
        %v2342 = vmax.f32 %v2294, %v2314
        %v2343 = vmax.f32 %v2295, %v2316
        %v2344 = vmax.f32 %v2296, %v2318
        %v2345 = vmax.f32 %v2297, %v2320
        %v2346 = vmax.f32 %v2298, %v2322
        %v2347 = vmax.f32 %v2299, %v2324
        %v2348 = vmax.f32 %v2300, %v2326
        %v2349 = vmax.f32 %v2301, %v2328
        %v2350 = vmax.f32 %v2302, %v2330
        %v2351 = vmax.f32 %v2303, %v2332
        %v2352 = vmax.f32 %v2304, %v2334
        %v2353 = vmax.f32 %v2305, %v2336
        %v2354 = vmax.f32 %v2306, %v2338
        %v2355 = vsub.f32 %v2291, %v2339
        %v2356 = vsub.f32 %v2292, %v2340
        %v2357 = vsub.f32 %v2293, %v2341
        %v2358 = vsub.f32 %v2294, %v2342
        %v2359 = vsub.f32 %v2295, %v2343
        %v2360 = vsub.f32 %v2296, %v2344
        %v2361 = vsub.f32 %v2297, %v2345
        %v2362 = vsub.f32 %v2298, %v2346
        %v2363 = vsub.f32 %v2299, %v2347
        %v2364 = vsub.f32 %v2300, %v2348
        %v2365 = vsub.f32 %v2301, %v2349
        %v2366 = vsub.f32 %v2302, %v2350
        %v2367 = vsub.f32 %v2303, %v2351
        %v2368 = vsub.f32 %v2304, %v2352
        %v2369 = vsub.f32 %v2305, %v2353
        %v2370 = vsub.f32 %v2306, %v2354
        %v2371 = vmul.f32 %v2355, 1.442695
        %v2372 = vpow.pop %v2371
        %v2373 = vmul.f32 %v2356, 1.442695
        %v2374 = vpow.pop %v2373
        %v2375 = vmul.f32 %v2357, 1.442695
        %v2376 = vpow.pop %v2375
        %v2377 = vmul.f32 %v2358, 1.442695
        %v2378 = vpow.pop %v2377
        %v2379 = vmul.f32 %v2359, 1.442695
        %v2380 = vpow.pop %v2379
        %v2381 = vmul.f32 %v2360, 1.442695
        %v2382 = vpow.pop %v2381
        %v2383 = vmul.f32 %v2361, 1.442695
        %v2384 = vpow.pop %v2383
        %v2385 = vmul.f32 %v2362, 1.442695
        %v2386 = vpow.pop %v2385
        %v2387 = vmul.f32 %v2363, 1.442695
        %v2388 = vpow.pop %v2387
        %v2389 = vmul.f32 %v2364, 1.442695
        %v2390 = vpow.pop %v2389
        %v2391 = vmul.f32 %v2365, 1.442695
        %v2392 = vpow.pop %v2391
        %v2393 = vmul.f32 %v2366, 1.442695
        %v2394 = vpow.pop %v2393
        %v2395 = vmul.f32 %v2367, 1.442695
        %v2396 = vpow.pop %v2395
        %v2397 = vmul.f32 %v2368, 1.442695
        %v2398 = vpow.pop %v2397
        %v2399 = vmul.f32 %v2369, 1.442695
        %v2400 = vpow.pop %v2399
        %v2401 = vmul.f32 %v2370, 1.442695
        %v2402 = vpow.pop %v2401
        %2404 = vset.pattern.permute.xlu0 0
        %2405 = vperm.xlu0 %2404, %v2339
        %v2406 = vpop.permute.xlu0 %2405
        %2409 = vset.pattern.permute.xlu0 0
        %2410 = vperm.xlu0 %2409, %v2340
        %v2411 = vpop.permute.xlu0 %2410
        %2414 = vset.pattern.permute.xlu0 0
        %2415 = vperm.xlu0 %2414, %v2341
        %v2416 = vpop.permute.xlu0 %2415
        %2419 = vset.pattern.permute.xlu0 0
        %2420 = vperm.xlu0 %2419, %v2342
        %v2421 = vpop.permute.xlu0 %2420
        %2424 = vset.pattern.permute.xlu0 0
        %2425 = vperm.xlu0 %2424, %v2343
        %v2426 = vpop.permute.xlu0 %2425
        %2429 = vset.pattern.permute.xlu0 0
        %2430 = vperm.xlu0 %2429, %v2344
        %v2431 = vpop.permute.xlu0 %2430
        %2434 = vset.pattern.permute.xlu0 0
        %2435 = vperm.xlu0 %2434, %v2345
        %v2436 = vpop.permute.xlu0 %2435
        %2439 = vset.pattern.permute.xlu0 0
        %2440 = vperm.xlu0 %2439, %v2346
        %v2441 = vpop.permute.xlu0 %2440
        %2444 = vset.pattern.permute.xlu0 0
        %2445 = vperm.xlu0 %2444, %v2347
        %v2446 = vpop.permute.xlu0 %2445
        %2449 = vset.pattern.permute.xlu0 0
        %2450 = vperm.xlu0 %2449, %v2348
        %v2451 = vpop.permute.xlu0 %2450
        %2454 = vset.pattern.permute.xlu0 0
        %2455 = vperm.xlu0 %2454, %v2349
        %v2456 = vpop.permute.xlu0 %2455
        %2459 = vset.pattern.permute.xlu0 0
        %2460 = vperm.xlu0 %2459, %v2350
        %v2461 = vpop.permute.xlu0 %2460
        %2464 = vset.pattern.permute.xlu0 0
        %2465 = vperm.xlu0 %2464, %v2351
        %v2466 = vpop.permute.xlu0 %2465
        %2469 = vset.pattern.permute.xlu0 0
        %2470 = vperm.xlu0 %2469, %v2352
        %v2471 = vpop.permute.xlu0 %2470
        %2474 = vset.pattern.permute.xlu0 0
        %2475 = vperm.xlu0 %2474, %v2353
        %v2476 = vpop.permute.xlu0 %2475
        %2479 = vset.pattern.permute.xlu0 0
        %2480 = vperm.xlu0 %2479, %v2354
        %v2481 = vpop.permute.xlu0 %2480
        %v2483 = vsub.f32 %v2257, %v2406
        %v2484 = vsub.f32 %v2258, %v2411
        %v2485 = vsub.f32 %v2259, %v2416
        %v2486 = vsub.f32 %v2260, %v2421
        %v2487 = vsub.f32 %v2261, %v2426
        %v2488 = vsub.f32 %v2262, %v2431
        %v2489 = vsub.f32 %v2263, %v2436
        %v2490 = vsub.f32 %v2264, %v2441
        %v2491 = vsub.f32 %v2265, %v2446
        %v2492 = vsub.f32 %v2266, %v2451
        %v2493 = vsub.f32 %v2267, %v2456
        %v2494 = vsub.f32 %v2268, %v2461
        %v2495 = vsub.f32 %v2269, %v2466
        %v2496 = vsub.f32 %v2270, %v2471
        %v2497 = vsub.f32 %v2271, %v2476
        %v2498 = vsub.f32 %v2272, %v2481
        %v2499 = vmul.f32 %v2483, 1.442695
        %v2500 = vpow.pop %v2499
        %v2501 = vmul.f32 %v2484, 1.442695
        %v2502 = vpow.pop %v2501
        %v2503 = vmul.f32 %v2485, 1.442695
        %v2504 = vpow.pop %v2503
        %v2505 = vmul.f32 %v2486, 1.442695
        %v2506 = vpow.pop %v2505
        %v2507 = vmul.f32 %v2487, 1.442695
        %v2508 = vpow.pop %v2507
        %v2509 = vmul.f32 %v2488, 1.442695
        %v2510 = vpow.pop %v2509
        %v2511 = vmul.f32 %v2489, 1.442695
        %v2512 = vpow.pop %v2511
        %v2513 = vmul.f32 %v2490, 1.442695
        %v2514 = vpow.pop %v2513
        %v2515 = vmul.f32 %v2491, 1.442695
        %v2516 = vpow.pop %v2515
        %v2517 = vmul.f32 %v2492, 1.442695
        %v2518 = vpow.pop %v2517
        %v2519 = vmul.f32 %v2493, 1.442695
        %v2520 = vpow.pop %v2519
        %v2521 = vmul.f32 %v2494, 1.442695
        %v2522 = vpow.pop %v2521
        %v2523 = vmul.f32 %v2495, 1.442695
        %v2524 = vpow.pop %v2523
        %v2525 = vmul.f32 %v2496, 1.442695
        %v2526 = vpow.pop %v2525
        %v2527 = vmul.f32 %v2497, 1.442695
        %v2528 = vpow.pop %v2527
        %v2529 = vmul.f32 %v2498, 1.442695
        %v2530 = vpow.pop %v2529
        %s2531 = scalar_lea.vmem [#allocation4], 128
        %v2532 = vld [vmem:[%s2531] sm:$0xff]
        %v2533 = vld [vmem:[%s2531 + $0x8] sm:$0xff]
        %v2534 = vld [vmem:[%s2531 + $0x10] sm:$0xff]
        %v2535 = vld [vmem:[%s2531 + $0x18] sm:$0xff]
        %v2536 = vld [vmem:[%s2531 + $0x20] sm:$0xff]
        %v2537 = vld [vmem:[%s2531 + $0x28] sm:$0xff]
        %v2538 = vld [vmem:[%s2531 + $0x30] sm:$0xff]
        %v2539 = vld [vmem:[%s2531 + $0x38] sm:$0xff]
        %v2540 = vld [vmem:[%s2531 + $0x40] sm:$0xff]
        %v2541 = vld [vmem:[%s2531 + $0x48] sm:$0xff]
        %v2542 = vld [vmem:[%s2531 + $0x50] sm:$0xff]
        %v2543 = vld [vmem:[%s2531 + $0x58] sm:$0xff]
        %v2544 = vld [vmem:[%s2531 + $0x60] sm:$0xff]
        %v2545 = vld [vmem:[%s2531 + $0x68] sm:$0xff]
        %v2546 = vld [vmem:[%s2531 + $0x70] sm:$0xff]
        %v2547 = vld [vmem:[%s2531 + $0x78] sm:$0xff]
        %v2548 = vmul.f32 %v2372, %v2532
        %v2549 = vmul.f32 %v2374, %v2533
        %v2550 = vmul.f32 %v2376, %v2534
        %v2551 = vmul.f32 %v2378, %v2535
        %v2552 = vmul.f32 %v2380, %v2536
        %v2553 = vmul.f32 %v2382, %v2537
        %v2554 = vmul.f32 %v2384, %v2538
        %v2555 = vmul.f32 %v2386, %v2539
        %v2556 = vmul.f32 %v2388, %v2540
        %v2557 = vmul.f32 %v2390, %v2541
        %v2558 = vmul.f32 %v2392, %v2542
        %v2559 = vmul.f32 %v2394, %v2543
        %v2560 = vmul.f32 %v2396, %v2544
        %v2561 = vmul.f32 %v2398, %v2545
        %v2562 = vmul.f32 %v2400, %v2546
        %v2563 = vmul.f32 %v2402, %v2547
        %2564 = vadd.xlane.f32.xlu0 %v2500
        %v2565 = vpop.xlane.xlu0 %2564
        %2566 = vadd.xlane.f32.xlu0 %v2502
        %v2567 = vpop.xlane.xlu0 %2566
        %2568 = vadd.xlane.f32.xlu0 %v2504
        %v2569 = vpop.xlane.xlu0 %2568
        %2570 = vadd.xlane.f32.xlu0 %v2506
        %v2571 = vpop.xlane.xlu0 %2570
        %2572 = vadd.xlane.f32.xlu0 %v2508
        %v2573 = vpop.xlane.xlu0 %2572
        %2574 = vadd.xlane.f32.xlu0 %v2510
        %v2575 = vpop.xlane.xlu0 %2574
        %2576 = vadd.xlane.f32.xlu0 %v2512
        %v2577 = vpop.xlane.xlu0 %2576
        %2578 = vadd.xlane.f32.xlu0 %v2514
        %v2579 = vpop.xlane.xlu0 %2578
        %2580 = vadd.xlane.f32.xlu0 %v2516
        %v2581 = vpop.xlane.xlu0 %2580
        %2582 = vadd.xlane.f32.xlu0 %v2518
        %v2583 = vpop.xlane.xlu0 %2582
        %2584 = vadd.xlane.f32.xlu0 %v2520
        %v2585 = vpop.xlane.xlu0 %2584
        %2586 = vadd.xlane.f32.xlu0 %v2522
        %v2587 = vpop.xlane.xlu0 %2586
        %2588 = vadd.xlane.f32.xlu0 %v2524
        %v2589 = vpop.xlane.xlu0 %2588
        %2590 = vadd.xlane.f32.xlu0 %v2526
        %v2591 = vpop.xlane.xlu0 %2590
        %2592 = vadd.xlane.f32.xlu0 %v2528
        %v2593 = vpop.xlane.xlu0 %2592
        %2594 = vadd.xlane.f32.xlu0 %v2530
        %v2595 = vpop.xlane.xlu0 %2594
        %v2596 = vadd.f32 %v2548, %v2565
        %v2597 = vadd.f32 %v2549, %v2567
        %v2598 = vadd.f32 %v2550, %v2569
        %v2599 = vadd.f32 %v2551, %v2571
        %v2600 = vadd.f32 %v2552, %v2573
        %v2601 = vadd.f32 %v2553, %v2575
        %v2602 = vadd.f32 %v2554, %v2577
        %v2603 = vadd.f32 %v2555, %v2579
        %v2604 = vadd.f32 %v2556, %v2581
        %v2605 = vadd.f32 %v2557, %v2583
        %v2606 = vadd.f32 %v2558, %v2585
        %v2607 = vadd.f32 %v2559, %v2587
        %v2608 = vadd.f32 %v2560, %v2589
        %v2609 = vadd.f32 %v2561, %v2591
        %v2610 = vadd.f32 %v2562, %v2593
        %v2611 = vadd.f32 %v2563, %v2595
        %2612 = vst.msk [vmem:[%s2531] sm:$0xff] %vm1685, %v2596
        %2613 = vst.msk [vmem:[%s2531 + $0x8] sm:$0xff] %vm1685, %v2597
        %2614 = vst.msk [vmem:[%s2531 + $0x10] sm:$0xff] %vm1685, %v2598
        %2615 = vst.msk [vmem:[%s2531 + $0x18] sm:$0xff] %vm1685, %v2599
        %2616 = vst.msk [vmem:[%s2531 + $0x20] sm:$0xff] %vm1685, %v2600
        %2617 = vst.msk [vmem:[%s2531 + $0x28] sm:$0xff] %vm1685, %v2601
        %2618 = vst.msk [vmem:[%s2531 + $0x30] sm:$0xff] %vm1685, %v2602
        %2619 = vst.msk [vmem:[%s2531 + $0x38] sm:$0xff] %vm1685, %v2603
        %2620 = vst.msk [vmem:[%s2531 + $0x40] sm:$0xff] %vm1685, %v2604
        %2621 = vst.msk [vmem:[%s2531 + $0x48] sm:$0xff] %vm1685, %v2605
        %2622 = vst.msk [vmem:[%s2531 + $0x50] sm:$0xff] %vm1685, %v2606
        %2623 = vst.msk [vmem:[%s2531 + $0x58] sm:$0xff] %vm1685, %v2607
        %2624 = vst.msk [vmem:[%s2531 + $0x60] sm:$0xff] %vm1685, %v2608
        %2625 = vst.msk [vmem:[%s2531 + $0x68] sm:$0xff] %vm1685, %v2609
        %2626 = vst.msk [vmem:[%s2531 + $0x70] sm:$0xff] %vm1685, %v2610
        %2627 = vst.msk [vmem:[%s2531 + $0x78] sm:$0xff] %vm1685, %v2611
        %v2628 = vpack.c.bf16 %v2502, %v2500
        %v2629 = vpack.c.bf16 %v2506, %v2504
        %v2630 = vpack.c.bf16 %v2510, %v2508
        %v2631 = vpack.c.bf16 %v2514, %v2512
        %v2632 = vpack.c.bf16 %v2518, %v2516
        %v2633 = vpack.c.bf16 %v2522, %v2520
        %v2634 = vpack.c.bf16 %v2526, %v2524
        %v2635 = vpack.c.bf16 %v2530, %v2528
        %s2636 = scalar_lea.vmem [#allocation11], 64
        %v2637 = vld [vmem:[%s2636] sm:$0xf]
        %v2638 = vld [vmem:[%s2636 + $0x4] sm:$0xf]
        %v2639 = vld [vmem:[%s2636 + $0x8] sm:$0xf]
        %v2640 = vld [vmem:[%s2636 + $0xc] sm:$0xf]
        %v2641 = vld [vmem:[%s2636 + $0x10] sm:$0xf]
        %v2642 = vld [vmem:[%s2636 + $0x14] sm:$0xf]
        %v2643 = vld [vmem:[%s2636 + $0x18] sm:$0xf]
        %v2644 = vld [vmem:[%s2636 + $0x1c] sm:$0xf]
        %v2645 = vld [vmem:[%s2636 + $0x20] sm:$0xf]
        %v2646 = vld [vmem:[%s2636 + $0x24] sm:$0xf]
        %v2647 = vld [vmem:[%s2636 + $0x28] sm:$0xf]
        %v2648 = vld [vmem:[%s2636 + $0x2c] sm:$0xf]
        %v2649 = vld [vmem:[%s2636 + $0x30] sm:$0xf]
        %v2650 = vld [vmem:[%s2636 + $0x34] sm:$0xf]
        %v2651 = vld [vmem:[%s2636 + $0x38] sm:$0xf]
        %v2652 = vld [vmem:[%s2636 + $0x3c] sm:$0xf]
        %v2669 = vunpack.c.l.b16 %v2637
        %v2670 = vunpack.c.l.b16 %v2638
        %v2671 = vunpack.c.l.b16 %v2639
        %v2672 = vunpack.c.l.b16 %v2640
        %v2673 = vunpack.c.l.b16 %v2641
        %v2674 = vunpack.c.l.b16 %v2642
        %v2675 = vunpack.c.l.b16 %v2643
        %v2676 = vunpack.c.l.b16 %v2644
        %v2677 = vunpack.c.l.b16 %v2645
        %v2678 = vunpack.c.l.b16 %v2646
        %v2679 = vunpack.c.l.b16 %v2647
        %v2680 = vunpack.c.l.b16 %v2648
        %v2681 = vunpack.c.l.b16 %v2649
        %v2682 = vunpack.c.l.b16 %v2650
        %v2683 = vunpack.c.l.b16 %v2651
        %v2684 = vunpack.c.l.b16 %v2652
        %v2685 = vpack.c.b16 %v2670, %v2669
        %v2686 = vpack.c.b16 %v2672, %v2671
        %v2687 = vpack.c.b16 %v2674, %v2673
        %v2688 = vpack.c.b16 %v2676, %v2675
        %v2689 = vpack.c.b16 %v2678, %v2677
        %v2690 = vpack.c.b16 %v2680, %v2679
        %v2691 = vpack.c.b16 %v2682, %v2681
        %v2692 = vpack.c.b16 %v2684, %v2683
        %2701 = vmatprep.subr.bf16.mxu0 0
        %2702 = vmatpush1.bf16.msra.mxu0 %v2692
        %2703 = vmatprep.subr.bf16.mxu0 0
        %2704 = vmatpush1.bf16.msra.mxu0 %v2691
        %2705 = vmatprep.subr.bf16.mxu0 0
        %2706 = vmatpush1.bf16.msra.mxu0 %v2690
        %2707 = vmatprep.subr.bf16.mxu0 0
        %2708 = vmatpush1.bf16.msra.mxu0 %v2689
        %2709 = vmatprep.subr.bf16.mxu0 0
        %2710 = vmatpush1.bf16.msra.mxu0 %v2688
        %2711 = vmatprep.subr.bf16.mxu0 0
        %2712 = vmatpush1.bf16.msra.mxu0 %v2687
        %2713 = vmatprep.subr.bf16.mxu0 0
        %2714 = vmatpush1.bf16.msra.mxu0 %v2686
        %2715 = vmatprep.subr.bf16.mxu0 0
        %2716 = vmatpush1.bf16.msra.mxu0 %v2685
        %2717 = vmatprep.subr.bf16.mxu0 0
        %2718 = vmatpush2.bf16.msra.mxu0 0
        %2719 = vmatprep.subr.bf16.mxu0 0
        %2720 = vmatpush2.bf16.msra.mxu0 0
        %2721 = vmatprep.subr.bf16.mxu0 0
        %2722 = vmatpush2.bf16.msra.mxu0 0
        %2723 = vmatprep.subr.bf16.mxu0 0
        %2724 = vmatpush2.bf16.msra.mxu0 0
        %2725 = vmatprep.subr.bf16.mxu0 0
        %2726 = vmatpush2.bf16.msra.mxu0 0
        %2727 = vmatprep.subr.bf16.mxu0 0
        %2728 = vmatpush2.bf16.msra.mxu0 0
        %2729 = vmatprep.subr.bf16.mxu0 0
        %2730 = vmatpush2.bf16.msra.mxu0 0
        %2731 = vmatprep.subr.bf16.mxu0 0
        %2732 = vmatpush2.bf16.msra.mxu0 0
        %2733 = vmatprep.mubr.bf16.mxu0 0
        %2734 = vmatmul.mubr.bf16.gmra.mxu0 %v2628
        %v2735 = vpop.f32.mrf.mxu0
        %v2736 = vadd.f32 0.0, %v2735
        %v2737 = vpop.f32.mrf.mxu0
        %v2738 = vpop.f32.mrf.mxu0
        %v2739 = vadd.f32 0.0, %v2738
        %v2740 = vpop.f32.mrf.mxu0
        %2741 = vmatprep.mubr.bf16.mxu0 0
        %2742 = vmatmul.mubr.bf16.gmra.mxu0 %v2629
        %v2743 = vpop.f32.mrf.mxu0
        %v2744 = vadd.f32 0.0, %v2743
        %v2745 = vpop.f32.mrf.mxu0
        %v2746 = vpop.f32.mrf.mxu0
        %v2747 = vadd.f32 0.0, %v2746
        %v2748 = vpop.f32.mrf.mxu0
        %2749 = vmatprep.mubr.bf16.mxu0 0
        %2750 = vmatmul.mubr.bf16.gmra.mxu0 %v2630
        %v2751 = vpop.f32.mrf.mxu0
        %v2752 = vadd.f32 0.0, %v2751
        %v2753 = vpop.f32.mrf.mxu0
        %v2754 = vpop.f32.mrf.mxu0
        %v2755 = vadd.f32 0.0, %v2754
        %v2756 = vpop.f32.mrf.mxu0
        %2757 = vmatprep.mubr.bf16.mxu0 0
        %2758 = vmatmul.mubr.bf16.gmra.mxu0 %v2631
        %v2759 = vpop.f32.mrf.mxu0
        %v2760 = vadd.f32 0.0, %v2759
        %v2761 = vpop.f32.mrf.mxu0
        %v2762 = vpop.f32.mrf.mxu0
        %v2763 = vadd.f32 0.0, %v2762
        %v2764 = vpop.f32.mrf.mxu0
        %2765 = vmatprep.mubr.bf16.mxu0 0
        %2766 = vmatmul.mubr.bf16.gmra.mxu0 %v2632
        %v2767 = vpop.f32.mrf.mxu0
        %v2768 = vadd.f32 0.0, %v2767
        %v2769 = vpop.f32.mrf.mxu0
        %v2770 = vpop.f32.mrf.mxu0
        %v2771 = vadd.f32 0.0, %v2770
        %v2772 = vpop.f32.mrf.mxu0
        %2773 = vmatprep.mubr.bf16.mxu0 0
        %2774 = vmatmul.mubr.bf16.gmra.mxu0 %v2633
        %v2775 = vpop.f32.mrf.mxu0
        %v2776 = vadd.f32 0.0, %v2775
        %v2777 = vpop.f32.mrf.mxu0
        %v2778 = vpop.f32.mrf.mxu0
        %v2779 = vadd.f32 0.0, %v2778
        %v2780 = vpop.f32.mrf.mxu0
        %2781 = vmatprep.mubr.bf16.mxu0 0
        %2782 = vmatmul.mubr.bf16.gmra.mxu0 %v2634
        %v2783 = vpop.f32.mrf.mxu0
        %v2784 = vadd.f32 0.0, %v2783
        %v2785 = vpop.f32.mrf.mxu0
        %v2786 = vpop.f32.mrf.mxu0
        %v2787 = vadd.f32 0.0, %v2786
        %v2788 = vpop.f32.mrf.mxu0
        %2789 = vmatprep.mubr.bf16.mxu0 0
        %2790 = vmatmul.mubr.bf16.gmra.mxu0 %v2635
        %v2791 = vpop.f32.mrf.mxu0
        %v2792 = vadd.f32 0.0, %v2791
        %v2793 = vpop.f32.mrf.mxu0
        %v2794 = vpop.f32.mrf.mxu0
        %v2795 = vadd.f32 0.0, %v2794
        %v2796 = vpop.f32.mrf.mxu0
        %2797 = vdwg.mxu0
        %v2798 = vld [vmem:[#allocation5 + $0x8] sm:$0xff]
        %v2799 = vld [vmem:[#allocation5 + $0x18] sm:$0xff]
        %v2800 = vld [vmem:[#allocation5 + $0x28] sm:$0xff]
        %v2801 = vld [vmem:[#allocation5 + $0x38] sm:$0xff]
        %v2802 = vld [vmem:[#allocation5 + $0x48] sm:$0xff]
        %v2803 = vld [vmem:[#allocation5 + $0x58] sm:$0xff]
        %v2804 = vld [vmem:[#allocation5 + $0x68] sm:$0xff]
        %v2805 = vld [vmem:[#allocation5 + $0x78] sm:$0xff]
        %v2806 = vld [vmem:[#allocation5 + $0x88] sm:$0xff]
        %v2807 = vld [vmem:[#allocation5 + $0x98] sm:$0xff]
        %v2808 = vld [vmem:[#allocation5 + $0xa8] sm:$0xff]
        %v2809 = vld [vmem:[#allocation5 + $0xb8] sm:$0xff]
        %v2810 = vld [vmem:[#allocation5 + $0xc8] sm:$0xff]
        %v2811 = vld [vmem:[#allocation5 + $0xd8] sm:$0xff]
        %v2812 = vld [vmem:[#allocation5 + $0xe8] sm:$0xff]
        %v2813 = vld [vmem:[#allocation5 + $0xf8] sm:$0xff]
        %2815 = vset.pattern.permute.xlu0 0
        %2816 = vperm.xlu0 %2815, %v2372
        %v2817 = vpop.permute.xlu0 %2816
        %2820 = vset.pattern.permute.xlu0 0
        %2821 = vperm.xlu0 %2820, %v2374
        %v2822 = vpop.permute.xlu0 %2821
        %2825 = vset.pattern.permute.xlu0 0
        %2826 = vperm.xlu0 %2825, %v2376
        %v2827 = vpop.permute.xlu0 %2826
        %2830 = vset.pattern.permute.xlu0 0
        %2831 = vperm.xlu0 %2830, %v2378
        %v2832 = vpop.permute.xlu0 %2831
        %2835 = vset.pattern.permute.xlu0 0
        %2836 = vperm.xlu0 %2835, %v2380
        %v2837 = vpop.permute.xlu0 %2836
        %2840 = vset.pattern.permute.xlu0 0
        %2841 = vperm.xlu0 %2840, %v2382
        %v2842 = vpop.permute.xlu0 %2841
        %2845 = vset.pattern.permute.xlu0 0
        %2846 = vperm.xlu0 %2845, %v2384
        %v2847 = vpop.permute.xlu0 %2846
        %2850 = vset.pattern.permute.xlu0 0
        %2851 = vperm.xlu0 %2850, %v2386
        %v2852 = vpop.permute.xlu0 %2851
        %2855 = vset.pattern.permute.xlu0 0
        %2856 = vperm.xlu0 %2855, %v2388
        %v2857 = vpop.permute.xlu0 %2856
        %2860 = vset.pattern.permute.xlu0 0
        %2861 = vperm.xlu0 %2860, %v2390
        %v2862 = vpop.permute.xlu0 %2861
        %2865 = vset.pattern.permute.xlu0 0
        %2866 = vperm.xlu0 %2865, %v2392
        %v2867 = vpop.permute.xlu0 %2866
        %2870 = vset.pattern.permute.xlu0 0
        %2871 = vperm.xlu0 %2870, %v2394
        %v2872 = vpop.permute.xlu0 %2871
        %2875 = vset.pattern.permute.xlu0 0
        %2876 = vperm.xlu0 %2875, %v2396
        %v2877 = vpop.permute.xlu0 %2876
        %2880 = vset.pattern.permute.xlu0 0
        %2881 = vperm.xlu0 %2880, %v2398
        %v2882 = vpop.permute.xlu0 %2881
        %2885 = vset.pattern.permute.xlu0 0
        %2886 = vperm.xlu0 %2885, %v2400
        %v2887 = vpop.permute.xlu0 %2886
        %2890 = vset.pattern.permute.xlu0 0
        %2891 = vperm.xlu0 %2890, %v2402
        %v2892 = vpop.permute.xlu0 %2891
        %v2894 = vmul.f32 %v2817, %v2798
        %v2895 = vmul.f32 %v2822, %v2799
        %v2896 = vmul.f32 %v2827, %v2800
        %v2897 = vmul.f32 %v2832, %v2801
        %v2898 = vmul.f32 %v2837, %v2802
        %v2899 = vmul.f32 %v2842, %v2803
        %v2900 = vmul.f32 %v2847, %v2804
        %v2901 = vmul.f32 %v2852, %v2805
        %v2902 = vmul.f32 %v2857, %v2806
        %v2903 = vmul.f32 %v2862, %v2807
        %v2904 = vmul.f32 %v2867, %v2808
        %v2905 = vmul.f32 %v2872, %v2809
        %v2906 = vmul.f32 %v2877, %v2810
        %v2907 = vmul.f32 %v2882, %v2811
        %v2908 = vmul.f32 %v2887, %v2812
        %v2909 = vmul.f32 %v2892, %v2813
        %v2910 = vadd.f32 %v2894, %v2736
        %v2911 = vadd.f32 %v2895, %v2739
        %v2912 = vadd.f32 %v2896, %v2744
        %v2913 = vadd.f32 %v2897, %v2747
        %v2914 = vadd.f32 %v2898, %v2752
        %v2915 = vadd.f32 %v2899, %v2755
        %v2916 = vadd.f32 %v2900, %v2760
        %v2917 = vadd.f32 %v2901, %v2763
        %v2918 = vadd.f32 %v2902, %v2768
        %v2919 = vadd.f32 %v2903, %v2771
        %v2920 = vadd.f32 %v2904, %v2776
        %v2921 = vadd.f32 %v2905, %v2779
        %v2922 = vadd.f32 %v2906, %v2784
        %v2923 = vadd.f32 %v2907, %v2787
        %v2924 = vadd.f32 %v2908, %v2792
        %v2925 = vadd.f32 %v2909, %v2795
        %2926 = vst [vmem:[#allocation5 + $0x8] sm:$0xff] %v2910
        %2927 = vst [vmem:[#allocation5 + $0x18] sm:$0xff] %v2911
        %2928 = vst [vmem:[#allocation5 + $0x28] sm:$0xff] %v2912
        %2929 = vst [vmem:[#allocation5 + $0x38] sm:$0xff] %v2913
        %2930 = vst [vmem:[#allocation5 + $0x48] sm:$0xff] %v2914
        %2931 = vst [vmem:[#allocation5 + $0x58] sm:$0xff] %v2915
        %2932 = vst [vmem:[#allocation5 + $0x68] sm:$0xff] %v2916
        %2933 = vst [vmem:[#allocation5 + $0x78] sm:$0xff] %v2917
        %2934 = vst [vmem:[#allocation5 + $0x88] sm:$0xff] %v2918
        %2935 = vst [vmem:[#allocation5 + $0x98] sm:$0xff] %v2919
        %2936 = vst [vmem:[#allocation5 + $0xa8] sm:$0xff] %v2920
        %2937 = vst [vmem:[#allocation5 + $0xb8] sm:$0xff] %v2921
        %2938 = vst [vmem:[#allocation5 + $0xc8] sm:$0xff] %v2922
        %2939 = vst [vmem:[#allocation5 + $0xd8] sm:$0xff] %v2923
        %2940 = vst [vmem:[#allocation5 + $0xe8] sm:$0xff] %v2924
        %2941 = vst [vmem:[#allocation5 + $0xf8] sm:$0xff] %v2925
        %2942 = vst.msk [vmem:[%s2290] sm:$0xff] %vm1685, %v2339
        %2943 = vst.msk [vmem:[%s2290 + $0x8] sm:$0xff] %vm1685, %v2340
        %2944 = vst.msk [vmem:[%s2290 + $0x10] sm:$0xff] %vm1685, %v2341
        %2945 = vst.msk [vmem:[%s2290 + $0x18] sm:$0xff] %vm1685, %v2342
        %2946 = vst.msk [vmem:[%s2290 + $0x20] sm:$0xff] %vm1685, %v2343
        %2947 = vst.msk [vmem:[%s2290 + $0x28] sm:$0xff] %vm1685, %v2344
        %2948 = vst.msk [vmem:[%s2290 + $0x30] sm:$0xff] %vm1685, %v2345
        %2949 = vst.msk [vmem:[%s2290 + $0x38] sm:$0xff] %vm1685, %v2346
        %2950 = vst.msk [vmem:[%s2290 + $0x40] sm:$0xff] %vm1685, %v2347
        %2951 = vst.msk [vmem:[%s2290 + $0x48] sm:$0xff] %vm1685, %v2348
        %2952 = vst.msk [vmem:[%s2290 + $0x50] sm:$0xff] %vm1685, %v2349
        %2953 = vst.msk [vmem:[%s2290 + $0x58] sm:$0xff] %vm1685, %v2350
        %2954 = vst.msk [vmem:[%s2290 + $0x60] sm:$0xff] %vm1685, %v2351
        %2955 = vst.msk [vmem:[%s2290 + $0x68] sm:$0xff] %vm1685, %v2352
        %2956 = vst.msk [vmem:[%s2290 + $0x70] sm:$0xff] %vm1685, %v2353
        %2957 = vst.msk [vmem:[%s2290 + $0x78] sm:$0xff] %vm1685, %v2354
        // Predicated region
        $region81: #{tpu_custom_call.1} parent=55 // pred_check
          %p2958 = pneg %p482
        $region82: #{tpu_custom_call.1} parent=55 // pred_check_branch
          %2960 = sbr.rel (%p2958) target = $region84
        $region83: #{tpu_custom_call.1} parent=55 // pred_region
          %v2961 = vld [vmem:[#allocation5] sm:$0xff]
          %v2962 = vld [vmem:[#allocation5 + $0x10] sm:$0xff]
          %v2963 = vld [vmem:[#allocation5 + $0x20] sm:$0xff]
          %v2964 = vld [vmem:[#allocation5 + $0x30] sm:$0xff]
          %v2965 = vld [vmem:[#allocation5 + $0x40] sm:$0xff]
          %v2966 = vld [vmem:[#allocation5 + $0x50] sm:$0xff]
          %v2967 = vld [vmem:[#allocation5 + $0x60] sm:$0xff]
          %v2968 = vld [vmem:[#allocation5 + $0x70] sm:$0xff]
          %v2969 = vld [vmem:[#allocation5 + $0x80] sm:$0xff]
          %v2970 = vld [vmem:[#allocation5 + $0x90] sm:$0xff]
          %v2971 = vld [vmem:[#allocation5 + $0xa0] sm:$0xff]
          %v2972 = vld [vmem:[#allocation5 + $0xb0] sm:$0xff]
          %v2973 = vld [vmem:[#allocation5 + $0xc0] sm:$0xff]
          %v2974 = vld [vmem:[#allocation5 + $0xd0] sm:$0xff]
          %v2975 = vld [vmem:[#allocation5 + $0xe0] sm:$0xff]
          %v2976 = vld [vmem:[#allocation5 + $0xf0] sm:$0xff]
          %v2977 = vld [vmem:[#allocation4] sm:$0xff]
          %v2978 = vld [vmem:[#allocation4 + $0x8] sm:$0xff]
          %v2979 = vld [vmem:[#allocation4 + $0x10] sm:$0xff]
          %v2980 = vld [vmem:[#allocation4 + $0x18] sm:$0xff]
          %v2981 = vld [vmem:[#allocation4 + $0x20] sm:$0xff]
          %v2982 = vld [vmem:[#allocation4 + $0x28] sm:$0xff]
          %v2983 = vld [vmem:[#allocation4 + $0x30] sm:$0xff]
          %v2984 = vld [vmem:[#allocation4 + $0x38] sm:$0xff]
          %v2985 = vld [vmem:[#allocation4 + $0x40] sm:$0xff]
          %v2986 = vld [vmem:[#allocation4 + $0x48] sm:$0xff]
          %v2987 = vld [vmem:[#allocation4 + $0x50] sm:$0xff]
          %v2988 = vld [vmem:[#allocation4 + $0x58] sm:$0xff]
          %v2989 = vld [vmem:[#allocation4 + $0x60] sm:$0xff]
          %v2990 = vld [vmem:[#allocation4 + $0x68] sm:$0xff]
          %v2991 = vld [vmem:[#allocation4 + $0x70] sm:$0xff]
          %v2992 = vld [vmem:[#allocation4 + $0x78] sm:$0xff]
          %2994 = vset.pattern.permute.xlu0 0
          %2995 = vperm.xlu0 %2994, %v2977
          %v2996 = vpop.permute.xlu0 %2995
          %2999 = vset.pattern.permute.xlu0 0
          %3000 = vperm.xlu0 %2999, %v2978
          %v3001 = vpop.permute.xlu0 %3000
          %3004 = vset.pattern.permute.xlu0 0
          %3005 = vperm.xlu0 %3004, %v2979
          %v3006 = vpop.permute.xlu0 %3005
          %3009 = vset.pattern.permute.xlu0 0
          %3010 = vperm.xlu0 %3009, %v2980
          %v3011 = vpop.permute.xlu0 %3010
          %3014 = vset.pattern.permute.xlu0 0
          %3015 = vperm.xlu0 %3014, %v2981
          %v3016 = vpop.permute.xlu0 %3015
          %3019 = vset.pattern.permute.xlu0 0
          %3020 = vperm.xlu0 %3019, %v2982
          %v3021 = vpop.permute.xlu0 %3020
          %3024 = vset.pattern.permute.xlu0 0
          %3025 = vperm.xlu0 %3024, %v2983
          %v3026 = vpop.permute.xlu0 %3025
          %3029 = vset.pattern.permute.xlu0 0
          %3030 = vperm.xlu0 %3029, %v2984
          %v3031 = vpop.permute.xlu0 %3030
          %3034 = vset.pattern.permute.xlu0 0
          %3035 = vperm.xlu0 %3034, %v2985
          %v3036 = vpop.permute.xlu0 %3035
          %3039 = vset.pattern.permute.xlu0 0
          %3040 = vperm.xlu0 %3039, %v2986
          %v3041 = vpop.permute.xlu0 %3040
          %3044 = vset.pattern.permute.xlu0 0
          %3045 = vperm.xlu0 %3044, %v2987
          %v3046 = vpop.permute.xlu0 %3045
          %3049 = vset.pattern.permute.xlu0 0
          %3050 = vperm.xlu0 %3049, %v2988
          %v3051 = vpop.permute.xlu0 %3050
          %3054 = vset.pattern.permute.xlu0 0
          %3055 = vperm.xlu0 %3054, %v2989
          %v3056 = vpop.permute.xlu0 %3055
          %3059 = vset.pattern.permute.xlu0 0
          %3060 = vperm.xlu0 %3059, %v2990
          %v3061 = vpop.permute.xlu0 %3060
          %3064 = vset.pattern.permute.xlu0 0
          %3065 = vperm.xlu0 %3064, %v2991
          %v3066 = vpop.permute.xlu0 %3065
          %3069 = vset.pattern.permute.xlu0 0
          %3070 = vperm.xlu0 %3069, %v2992
          %v3071 = vpop.permute.xlu0 %3070
          %v3073 = vrcp.pop %v2996
          %v3074 = vmul.f32 %v2961, %v3073
          %v3075 = vrcp.pop %v3001
          %v3076 = vmul.f32 %v2962, %v3075
          %v3077 = vrcp.pop %v3006
          %v3078 = vmul.f32 %v2963, %v3077
          %v3079 = vrcp.pop %v3011
          %v3080 = vmul.f32 %v2964, %v3079
          %v3081 = vrcp.pop %v3016
          %v3082 = vmul.f32 %v2965, %v3081
          %v3083 = vrcp.pop %v3021
          %v3084 = vmul.f32 %v2966, %v3083
          %v3085 = vrcp.pop %v3026
          %v3086 = vmul.f32 %v2967, %v3085
          %v3087 = vrcp.pop %v3031
          %v3088 = vmul.f32 %v2968, %v3087
          %v3089 = vrcp.pop %v3036
          %v3090 = vmul.f32 %v2969, %v3089
          %v3091 = vrcp.pop %v3041
          %v3092 = vmul.f32 %v2970, %v3091
          %v3093 = vrcp.pop %v3046
          %v3094 = vmul.f32 %v2971, %v3093
          %v3095 = vrcp.pop %v3051
          %v3096 = vmul.f32 %v2972, %v3095
          %v3097 = vrcp.pop %v3056
          %v3098 = vmul.f32 %v2973, %v3097
          %v3099 = vrcp.pop %v3061
          %v3100 = vmul.f32 %v2974, %v3099
          %v3101 = vrcp.pop %v3066
          %v3102 = vmul.f32 %v2975, %v3101
          %v3103 = vrcp.pop %v3071
          %v3104 = vmul.f32 %v2976, %v3103
          %3105 = vst [vmem:[#allocation5] sm:$0xff] %v3074
          %3106 = vst [vmem:[#allocation5 + $0x10] sm:$0xff] %v3076
          %3107 = vst [vmem:[#allocation5 + $0x20] sm:$0xff] %v3078
          %3108 = vst [vmem:[#allocation5 + $0x30] sm:$0xff] %v3080
          %3109 = vst [vmem:[#allocation5 + $0x40] sm:$0xff] %v3082
          %3110 = vst [vmem:[#allocation5 + $0x50] sm:$0xff] %v3084
          %3111 = vst [vmem:[#allocation5 + $0x60] sm:$0xff] %v3086
          %3112 = vst [vmem:[#allocation5 + $0x70] sm:$0xff] %v3088
          %3113 = vst [vmem:[#allocation5 + $0x80] sm:$0xff] %v3090
          %3114 = vst [vmem:[#allocation5 + $0x90] sm:$0xff] %v3092
          %3115 = vst [vmem:[#allocation5 + $0xa0] sm:$0xff] %v3094
          %3116 = vst [vmem:[#allocation5 + $0xb0] sm:$0xff] %v3096
          %3117 = vst [vmem:[#allocation5 + $0xc0] sm:$0xff] %v3098
          %3118 = vst [vmem:[#allocation5 + $0xd0] sm:$0xff] %v3100
          %3119 = vst [vmem:[#allocation5 + $0xe0] sm:$0xff] %v3102
          %3120 = vst [vmem:[#allocation5 + $0xf0] sm:$0xff] %v3104
          %v3121 = vld [vmem:[#allocation5 + $0x8] sm:$0xff]
          %v3122 = vld [vmem:[#allocation5 + $0x18] sm:$0xff]
          %v3123 = vld [vmem:[#allocation5 + $0x28] sm:$0xff]
          %v3124 = vld [vmem:[#allocation5 + $0x38] sm:$0xff]
          %v3125 = vld [vmem:[#allocation5 + $0x48] sm:$0xff]
          %v3126 = vld [vmem:[#allocation5 + $0x58] sm:$0xff]
          %v3127 = vld [vmem:[#allocation5 + $0x68] sm:$0xff]
          %v3128 = vld [vmem:[#allocation5 + $0x78] sm:$0xff]
          %v3129 = vld [vmem:[#allocation5 + $0x88] sm:$0xff]
          %v3130 = vld [vmem:[#allocation5 + $0x98] sm:$0xff]
          %v3131 = vld [vmem:[#allocation5 + $0xa8] sm:$0xff]
          %v3132 = vld [vmem:[#allocation5 + $0xb8] sm:$0xff]
          %v3133 = vld [vmem:[#allocation5 + $0xc8] sm:$0xff]
          %v3134 = vld [vmem:[#allocation5 + $0xd8] sm:$0xff]
          %v3135 = vld [vmem:[#allocation5 + $0xe8] sm:$0xff]
          %v3136 = vld [vmem:[#allocation5 + $0xf8] sm:$0xff]
          %v3137 = vld [vmem:[%s2531] sm:$0xff]
          %v3138 = vld [vmem:[%s2531 + $0x8] sm:$0xff]
          %v3139 = vld [vmem:[%s2531 + $0x10] sm:$0xff]
          %v3140 = vld [vmem:[%s2531 + $0x18] sm:$0xff]
          %v3141 = vld [vmem:[%s2531 + $0x20] sm:$0xff]
          %v3142 = vld [vmem:[%s2531 + $0x28] sm:$0xff]
          %v3143 = vld [vmem:[%s2531 + $0x30] sm:$0xff]
          %v3144 = vld [vmem:[%s2531 + $0x38] sm:$0xff]
          %v3145 = vld [vmem:[%s2531 + $0x40] sm:$0xff]
          %v3146 = vld [vmem:[%s2531 + $0x48] sm:$0xff]
          %v3147 = vld [vmem:[%s2531 + $0x50] sm:$0xff]
          %v3148 = vld [vmem:[%s2531 + $0x58] sm:$0xff]
          %v3149 = vld [vmem:[%s2531 + $0x60] sm:$0xff]
          %v3150 = vld [vmem:[%s2531 + $0x68] sm:$0xff]
          %v3151 = vld [vmem:[%s2531 + $0x70] sm:$0xff]
          %v3152 = vld [vmem:[%s2531 + $0x78] sm:$0xff]
          %3154 = vset.pattern.permute.xlu0 0
          %3155 = vperm.xlu0 %3154, %v3137
          %v3156 = vpop.permute.xlu0 %3155
          %3159 = vset.pattern.permute.xlu0 0
          %3160 = vperm.xlu0 %3159, %v3138
          %v3161 = vpop.permute.xlu0 %3160
          %3164 = vset.pattern.permute.xlu0 0
          %3165 = vperm.xlu0 %3164, %v3139
          %v3166 = vpop.permute.xlu0 %3165
          %3169 = vset.pattern.permute.xlu0 0
          %3170 = vperm.xlu0 %3169, %v3140
          %v3171 = vpop.permute.xlu0 %3170
          %3174 = vset.pattern.permute.xlu0 0
          %3175 = vperm.xlu0 %3174, %v3141
          %v3176 = vpop.permute.xlu0 %3175
          %3179 = vset.pattern.permute.xlu0 0
          %3180 = vperm.xlu0 %3179, %v3142
          %v3181 = vpop.permute.xlu0 %3180
          %3184 = vset.pattern.permute.xlu0 0
          %3185 = vperm.xlu0 %3184, %v3143
          %v3186 = vpop.permute.xlu0 %3185
          %3189 = vset.pattern.permute.xlu0 0
          %3190 = vperm.xlu0 %3189, %v3144
          %v3191 = vpop.permute.xlu0 %3190
          %3194 = vset.pattern.permute.xlu0 0
          %3195 = vperm.xlu0 %3194, %v3145
          %v3196 = vpop.permute.xlu0 %3195
          %3199 = vset.pattern.permute.xlu0 0
          %3200 = vperm.xlu0 %3199, %v3146
          %v3201 = vpop.permute.xlu0 %3200
          %3204 = vset.pattern.permute.xlu0 0
          %3205 = vperm.xlu0 %3204, %v3147
          %v3206 = vpop.permute.xlu0 %3205
          %3209 = vset.pattern.permute.xlu0 0
          %3210 = vperm.xlu0 %3209, %v3148
          %v3211 = vpop.permute.xlu0 %3210
          %3214 = vset.pattern.permute.xlu0 0
          %3215 = vperm.xlu0 %3214, %v3149
          %v3216 = vpop.permute.xlu0 %3215
          %3219 = vset.pattern.permute.xlu0 0
          %3220 = vperm.xlu0 %3219, %v3150
          %v3221 = vpop.permute.xlu0 %3220
          %3224 = vset.pattern.permute.xlu0 0
          %3225 = vperm.xlu0 %3224, %v3151
          %v3226 = vpop.permute.xlu0 %3225
          %3229 = vset.pattern.permute.xlu0 0
          %3230 = vperm.xlu0 %3229, %v3152
          %v3231 = vpop.permute.xlu0 %3230
          %v3233 = vrcp.pop %v3156
          %v3234 = vmul.f32 %v3121, %v3233
          %v3235 = vrcp.pop %v3161
          %v3236 = vmul.f32 %v3122, %v3235
          %v3237 = vrcp.pop %v3166
          %v3238 = vmul.f32 %v3123, %v3237
          %v3239 = vrcp.pop %v3171
          %v3240 = vmul.f32 %v3124, %v3239
          %v3241 = vrcp.pop %v3176
          %v3242 = vmul.f32 %v3125, %v3241
          %v3243 = vrcp.pop %v3181
          %v3244 = vmul.f32 %v3126, %v3243
          %v3245 = vrcp.pop %v3186
          %v3246 = vmul.f32 %v3127, %v3245
          %v3247 = vrcp.pop %v3191
          %v3248 = vmul.f32 %v3128, %v3247
          %v3249 = vrcp.pop %v3196
          %v3250 = vmul.f32 %v3129, %v3249
          %v3251 = vrcp.pop %v3201
          %v3252 = vmul.f32 %v3130, %v3251
          %v3253 = vrcp.pop %v3206
          %v3254 = vmul.f32 %v3131, %v3253
          %v3255 = vrcp.pop %v3211
          %v3256 = vmul.f32 %v3132, %v3255
          %v3257 = vrcp.pop %v3216
          %v3258 = vmul.f32 %v3133, %v3257
          %v3259 = vrcp.pop %v3221
          %v3260 = vmul.f32 %v3134, %v3259
          %v3261 = vrcp.pop %v3226
          %v3262 = vmul.f32 %v3135, %v3261
          %v3263 = vrcp.pop %v3231
          %v3264 = vmul.f32 %v3136, %v3263
          %3265 = vst [vmem:[#allocation5 + $0x8] sm:$0xff] %v3234
          %3266 = vst [vmem:[#allocation5 + $0x18] sm:$0xff] %v3236
          %3267 = vst [vmem:[#allocation5 + $0x28] sm:$0xff] %v3238
          %3268 = vst [vmem:[#allocation5 + $0x38] sm:$0xff] %v3240
          %3269 = vst [vmem:[#allocation5 + $0x48] sm:$0xff] %v3242
          %3270 = vst [vmem:[#allocation5 + $0x58] sm:$0xff] %v3244
          %3271 = vst [vmem:[#allocation5 + $0x68] sm:$0xff] %v3246
          %3272 = vst [vmem:[#allocation5 + $0x78] sm:$0xff] %v3248
          %3273 = vst [vmem:[#allocation5 + $0x88] sm:$0xff] %v3250
          %3274 = vst [vmem:[#allocation5 + $0x98] sm:$0xff] %v3252
          %3275 = vst [vmem:[#allocation5 + $0xa8] sm:$0xff] %v3254
          %3276 = vst [vmem:[#allocation5 + $0xb8] sm:$0xff] %v3256
          %3277 = vst [vmem:[#allocation5 + $0xc8] sm:$0xff] %v3258
          %3278 = vst [vmem:[#allocation5 + $0xd8] sm:$0xff] %v3260
          %3279 = vst [vmem:[#allocation5 + $0xe8] sm:$0xff] %v3262
          %3280 = vst [vmem:[#allocation5 + $0xf8] sm:$0xff] %v3264
          %v3281 = vld [vmem:[#allocation5] sm:$0xff]
          %v3282 = vld [vmem:[#allocation5 + $0x8] sm:$0xff]
          %v3283 = vld [vmem:[#allocation5 + $0x10] sm:$0xff]
          %v3284 = vld [vmem:[#allocation5 + $0x18] sm:$0xff]
          %v3285 = vld [vmem:[#allocation5 + $0x20] sm:$0xff]
          %v3286 = vld [vmem:[#allocation5 + $0x28] sm:$0xff]
          %v3287 = vld [vmem:[#allocation5 + $0x30] sm:$0xff]
          %v3288 = vld [vmem:[#allocation5 + $0x38] sm:$0xff]
          %v3289 = vld [vmem:[#allocation5 + $0x40] sm:$0xff]
          %v3290 = vld [vmem:[#allocation5 + $0x48] sm:$0xff]
          %v3291 = vld [vmem:[#allocation5 + $0x50] sm:$0xff]
          %v3292 = vld [vmem:[#allocation5 + $0x58] sm:$0xff]
          %v3293 = vld [vmem:[#allocation5 + $0x60] sm:$0xff]
          %v3294 = vld [vmem:[#allocation5 + $0x68] sm:$0xff]
          %v3295 = vld [vmem:[#allocation5 + $0x70] sm:$0xff]
          %v3296 = vld [vmem:[#allocation5 + $0x78] sm:$0xff]
          %v3297 = vld [vmem:[#allocation5 + $0x80] sm:$0xff]
          %v3298 = vld [vmem:[#allocation5 + $0x88] sm:$0xff]
          %v3299 = vld [vmem:[#allocation5 + $0x90] sm:$0xff]
          %v3300 = vld [vmem:[#allocation5 + $0x98] sm:$0xff]
          %v3301 = vld [vmem:[#allocation5 + $0xa0] sm:$0xff]
          %v3302 = vld [vmem:[#allocation5 + $0xa8] sm:$0xff]
          %v3303 = vld [vmem:[#allocation5 + $0xb0] sm:$0xff]
          %v3304 = vld [vmem:[#allocation5 + $0xb8] sm:$0xff]
          %v3305 = vld [vmem:[#allocation5 + $0xc0] sm:$0xff]
          %v3306 = vld [vmem:[#allocation5 + $0xc8] sm:$0xff]
          %v3307 = vld [vmem:[#allocation5 + $0xd0] sm:$0xff]
          %v3308 = vld [vmem:[#allocation5 + $0xd8] sm:$0xff]
          %v3309 = vld [vmem:[#allocation5 + $0xe0] sm:$0xff]
          %v3310 = vld [vmem:[#allocation5 + $0xe8] sm:$0xff]
          %v3311 = vld [vmem:[#allocation5 + $0xf0] sm:$0xff]
          %v3312 = vld [vmem:[#allocation5 + $0xf8] sm:$0xff]
          %v3313 = vpack.c.bf16 %v3283, %v3281
          %v3314 = vpack.c.bf16 %v3284, %v3282
          %v3315 = vpack.c.bf16 %v3287, %v3285
          %v3316 = vpack.c.bf16 %v3288, %v3286
          %v3317 = vpack.c.bf16 %v3291, %v3289
          %v3318 = vpack.c.bf16 %v3292, %v3290
          %v3319 = vpack.c.bf16 %v3295, %v3293
          %v3320 = vpack.c.bf16 %v3296, %v3294
          %v3321 = vpack.c.bf16 %v3299, %v3297
          %v3322 = vpack.c.bf16 %v3300, %v3298
          %v3323 = vpack.c.bf16 %v3303, %v3301
          %v3324 = vpack.c.bf16 %v3304, %v3302
          %v3325 = vpack.c.bf16 %v3307, %v3305
          %v3326 = vpack.c.bf16 %v3308, %v3306
          %v3327 = vpack.c.bf16 %v3311, %v3309
          %v3328 = vpack.c.bf16 %v3312, %v3310
          %v3329 = vld [vmem:[#allocation14] sm:$0xff]
          %v3330 = vld [vmem:[#allocation14 + $0x8] sm:$0xff]
          %v3331 = vld [vmem:[#allocation14 + $0x10] sm:$0xff]
          %v3332 = vld [vmem:[#allocation14 + $0x18] sm:$0xff]
          %v3333 = vld [vmem:[#allocation14 + $0x20] sm:$0xff]
          %v3334 = vld [vmem:[#allocation14 + $0x28] sm:$0xff]
          %v3335 = vld [vmem:[#allocation14 + $0x30] sm:$0xff]
          %v3336 = vld [vmem:[#allocation14 + $0x38] sm:$0xff]
          %v3337 = vld [vmem:[#allocation14 + $0x40] sm:$0xff]
          %v3338 = vld [vmem:[#allocation14 + $0x48] sm:$0xff]
          %v3339 = vld [vmem:[#allocation14 + $0x50] sm:$0xff]
          %v3340 = vld [vmem:[#allocation14 + $0x58] sm:$0xff]
          %v3341 = vld [vmem:[#allocation14 + $0x60] sm:$0xff]
          %v3342 = vld [vmem:[#allocation14 + $0x68] sm:$0xff]
          %v3343 = vld [vmem:[#allocation14 + $0x70] sm:$0xff]
          %v3344 = vld [vmem:[#allocation14 + $0x78] sm:$0xff]
          %v3345 = vld [vmem:[#allocation14 + $0x80] sm:$0xff]
          %v3346 = vld [vmem:[#allocation14 + $0x88] sm:$0xff]
          %v3347 = vld [vmem:[#allocation14 + $0x90] sm:$0xff]
          %v3348 = vld [vmem:[#allocation14 + $0x98] sm:$0xff]
          %v3349 = vld [vmem:[#allocation14 + $0xa0] sm:$0xff]
          %v3350 = vld [vmem:[#allocation14 + $0xa8] sm:$0xff]
          %v3351 = vld [vmem:[#allocation14 + $0xb0] sm:$0xff]
          %v3352 = vld [vmem:[#allocation14 + $0xb8] sm:$0xff]
          %v3353 = vld [vmem:[#allocation14 + $0xc0] sm:$0xff]
          %v3354 = vld [vmem:[#allocation14 + $0xc8] sm:$0xff]
          %v3355 = vld [vmem:[#allocation14 + $0xd0] sm:$0xff]
          %v3356 = vld [vmem:[#allocation14 + $0xd8] sm:$0xff]
          %v3357 = vld [vmem:[#allocation14 + $0xe0] sm:$0xff]
          %v3358 = vld [vmem:[#allocation14 + $0xe8] sm:$0xff]
          %v3359 = vld [vmem:[#allocation14 + $0xf0] sm:$0xff]
          %v3360 = vld [vmem:[#allocation14 + $0xf8] sm:$0xff]
          %v3361 = vld [vmem:[%s6] sm:$0x3]
          %v3363 = vlaneseq
          %v3364 = vshrl.u32 %v3363, 7
          %v3365 = vsub.s32 0, %v3364
          %v3366 = vrot.slane %v3361, %v3365
          %v3367 = vlaneseq
          %v3368 = vshrl.u32 %v3367, 7
          %v3369 = vsub.s32 1, %v3368
          %v3370 = vrot.slane %v3361, %v3369
          %v3405 = vunpack.c.l.b16 %v3329
          %v3406 = vunpack.c.h.b16 %v3329
          %v3407 = vunpack.c.l.b16 %v3330
          %v3408 = vunpack.c.h.b16 %v3330
          %v3409 = vunpack.c.l.b16 %v3331
          %v3410 = vunpack.c.h.b16 %v3331
          %v3411 = vunpack.c.l.b16 %v3332
          %v3412 = vunpack.c.h.b16 %v3332
          %v3413 = vunpack.c.l.b16 %v3333
          %v3414 = vunpack.c.h.b16 %v3333
          %v3415 = vunpack.c.l.b16 %v3334
          %v3416 = vunpack.c.h.b16 %v3334
          %v3417 = vunpack.c.l.b16 %v3335
          %v3418 = vunpack.c.h.b16 %v3335
          %v3419 = vunpack.c.l.b16 %v3336
          %v3420 = vunpack.c.h.b16 %v3336
          %v3421 = vunpack.c.l.b16 %v3337
          %v3422 = vunpack.c.h.b16 %v3337
          %v3423 = vunpack.c.l.b16 %v3338
          %v3424 = vunpack.c.h.b16 %v3338
          %v3425 = vunpack.c.l.b16 %v3339
          %v3426 = vunpack.c.h.b16 %v3339
          %v3427 = vunpack.c.l.b16 %v3340
          %v3428 = vunpack.c.h.b16 %v3340
          %v3429 = vunpack.c.l.b16 %v3341
          %v3430 = vunpack.c.h.b16 %v3341
          %v3431 = vunpack.c.l.b16 %v3342
          %v3432 = vunpack.c.h.b16 %v3342
          %v3433 = vunpack.c.l.b16 %v3343
          %v3434 = vunpack.c.h.b16 %v3343
          %v3435 = vunpack.c.l.b16 %v3344
          %v3436 = vunpack.c.h.b16 %v3344
          %v3437 = vunpack.c.l.b16 %v3345
          %v3438 = vunpack.c.h.b16 %v3345
          %v3439 = vunpack.c.l.b16 %v3346
          %v3440 = vunpack.c.h.b16 %v3346
          %v3441 = vunpack.c.l.b16 %v3347
          %v3442 = vunpack.c.h.b16 %v3347
          %v3443 = vunpack.c.l.b16 %v3348
          %v3444 = vunpack.c.h.b16 %v3348
          %v3445 = vunpack.c.l.b16 %v3349
          %v3446 = vunpack.c.h.b16 %v3349
          %v3447 = vunpack.c.l.b16 %v3350
          %v3448 = vunpack.c.h.b16 %v3350
          %v3449 = vunpack.c.l.b16 %v3351
          %v3450 = vunpack.c.h.b16 %v3351
          %v3451 = vunpack.c.l.b16 %v3352
          %v3452 = vunpack.c.h.b16 %v3352
          %v3453 = vunpack.c.l.b16 %v3353
          %v3454 = vunpack.c.h.b16 %v3353
          %v3455 = vunpack.c.l.b16 %v3354
          %v3456 = vunpack.c.h.b16 %v3354
          %v3457 = vunpack.c.l.b16 %v3355
          %v3458 = vunpack.c.h.b16 %v3355
          %v3459 = vunpack.c.l.b16 %v3356
          %v3460 = vunpack.c.h.b16 %v3356
          %v3461 = vunpack.c.l.b16 %v3357
          %v3462 = vunpack.c.h.b16 %v3357
          %v3463 = vunpack.c.l.b16 %v3358
          %v3464 = vunpack.c.h.b16 %v3358
          %v3465 = vunpack.c.l.b16 %v3359
          %v3466 = vunpack.c.h.b16 %v3359
          %v3467 = vunpack.c.l.b16 %v3360
          %v3468 = vunpack.c.h.b16 %v3360
          %v3469 = vpack.c.b16 %v3407, %v3405
          %v3470 = vpack.c.b16 %v3408, %v3406
          %v3471 = vpack.c.b16 %v3411, %v3409
          %v3472 = vpack.c.b16 %v3412, %v3410
          %v3473 = vpack.c.b16 %v3415, %v3413
          %v3474 = vpack.c.b16 %v3416, %v3414
          %v3475 = vpack.c.b16 %v3419, %v3417
          %v3476 = vpack.c.b16 %v3420, %v3418
          %v3477 = vpack.c.b16 %v3423, %v3421
          %v3478 = vpack.c.b16 %v3424, %v3422
          %v3479 = vpack.c.b16 %v3427, %v3425
          %v3480 = vpack.c.b16 %v3428, %v3426
          %v3481 = vpack.c.b16 %v3431, %v3429
          %v3482 = vpack.c.b16 %v3432, %v3430
          %v3483 = vpack.c.b16 %v3435, %v3433
          %v3484 = vpack.c.b16 %v3436, %v3434
          %v3485 = vpack.c.b16 %v3439, %v3437
          %v3486 = vpack.c.b16 %v3440, %v3438
          %v3487 = vpack.c.b16 %v3443, %v3441
          %v3488 = vpack.c.b16 %v3444, %v3442
          %v3489 = vpack.c.b16 %v3447, %v3445
          %v3490 = vpack.c.b16 %v3448, %v3446
          %v3491 = vpack.c.b16 %v3451, %v3449
          %v3492 = vpack.c.b16 %v3452, %v3450
          %v3493 = vpack.c.b16 %v3455, %v3453
          %v3494 = vpack.c.b16 %v3456, %v3454
          %v3495 = vpack.c.b16 %v3459, %v3457
          %v3496 = vpack.c.b16 %v3460, %v3458
          %v3497 = vpack.c.b16 %v3463, %v3461
          %v3498 = vpack.c.b16 %v3464, %v3462
          %v3499 = vpack.c.b16 %v3467, %v3465
          %v3500 = vpack.c.b16 %v3468, %v3466
          %3533 = vmatprep.subr.bf16.mxu0 %v3484
          %3534 = vmatpush1.bf16.msra.mxu0 %v3483
          %3535 = vmatprep.subr.bf16.mxu0 %v3482
          %3536 = vmatpush1.bf16.msra.mxu0 %v3481
          %3537 = vmatprep.subr.bf16.mxu0 %v3480
          %3538 = vmatpush1.bf16.msra.mxu0 %v3479
          %3539 = vmatprep.subr.bf16.mxu0 %v3478
          %3540 = vmatpush1.bf16.msra.mxu0 %v3477
          %3541 = vmatprep.subr.bf16.mxu0 %v3476
          %3542 = vmatpush1.bf16.msra.mxu0 %v3475
          %3543 = vmatprep.subr.bf16.mxu0 %v3474
          %3544 = vmatpush1.bf16.msra.mxu0 %v3473
          %3545 = vmatprep.subr.bf16.mxu0 %v3472
          %3546 = vmatpush1.bf16.msra.mxu0 %v3471
          %3547 = vmatprep.subr.bf16.mxu0 %v3470
          %3548 = vmatpush1.bf16.msra.mxu0 %v3469
          %3549 = vmatprep.subr.bf16.mxu0 %v3500
          %3550 = vmatpush2.bf16.msra.mxu0 %v3499
          %3551 = vmatprep.subr.bf16.mxu0 %v3498
          %3552 = vmatpush2.bf16.msra.mxu0 %v3497
          %3553 = vmatprep.subr.bf16.mxu0 %v3496
          %3554 = vmatpush2.bf16.msra.mxu0 %v3495
          %3555 = vmatprep.subr.bf16.mxu0 %v3494
          %3556 = vmatpush2.bf16.msra.mxu0 %v3493
          %3557 = vmatprep.subr.bf16.mxu0 %v3492
          %3558 = vmatpush2.bf16.msra.mxu0 %v3491
          %3559 = vmatprep.subr.bf16.mxu0 %v3490
          %3560 = vmatpush2.bf16.msra.mxu0 %v3489
          %3561 = vmatprep.subr.bf16.mxu0 %v3488
          %3562 = vmatpush2.bf16.msra.mxu0 %v3487
          %3563 = vmatprep.subr.bf16.mxu0 %v3486
          %3564 = vmatpush2.bf16.msra.mxu0 %v3485
          %3565 = vmatprep.mubr.bf16.mxu0 %v3314
          %3566 = vmatmul.mubr.bf16.gmra.mxu0 %v3313
          %v3567 = vpop.f32.mrf.mxu0
          %v3568 = vadd.f32 %v3366, %v3567
          %v3569 = vpop.f32.mrf.mxu0
          %v3570 = vadd.f32 %v3370, %v3569
          %v3571 = vpop.f32.mrf.mxu0
          %v3572 = vadd.f32 %v3366, %v3571
          %v3573 = vpop.f32.mrf.mxu0
          %v3574 = vadd.f32 %v3370, %v3573
          %3575 = vmatprep.mubr.bf16.mxu0 %v3316
          %3576 = vmatmul.mubr.bf16.gmra.mxu0 %v3315
          %v3577 = vpop.f32.mrf.mxu0
          %v3578 = vadd.f32 %v3366, %v3577
          %v3579 = vpop.f32.mrf.mxu0
          %v3580 = vadd.f32 %v3370, %v3579
          %v3581 = vpop.f32.mrf.mxu0
          %v3582 = vadd.f32 %v3366, %v3581
          %v3583 = vpop.f32.mrf.mxu0
          %v3584 = vadd.f32 %v3370, %v3583
          %3585 = vmatprep.mubr.bf16.mxu0 %v3318
          %3586 = vmatmul.mubr.bf16.gmra.mxu0 %v3317
          %v3587 = vpop.f32.mrf.mxu0
          %v3588 = vadd.f32 %v3366, %v3587
          %v3589 = vpop.f32.mrf.mxu0
          %v3590 = vadd.f32 %v3370, %v3589
          %v3591 = vpop.f32.mrf.mxu0
          %v3592 = vadd.f32 %v3366, %v3591
          %v3593 = vpop.f32.mrf.mxu0
          %v3594 = vadd.f32 %v3370, %v3593
          %3595 = vmatprep.mubr.bf16.mxu0 %v3320
          %3596 = vmatmul.mubr.bf16.gmra.mxu0 %v3319
          %v3597 = vpop.f32.mrf.mxu0
          %v3598 = vadd.f32 %v3366, %v3597
          %v3599 = vpop.f32.mrf.mxu0
          %v3600 = vadd.f32 %v3370, %v3599
          %v3601 = vpop.f32.mrf.mxu0
          %v3602 = vadd.f32 %v3366, %v3601
          %v3603 = vpop.f32.mrf.mxu0
          %v3604 = vadd.f32 %v3370, %v3603
          %3605 = vmatprep.mubr.bf16.mxu0 %v3322
          %3606 = vmatmul.mubr.bf16.gmra.mxu0 %v3321
          %v3607 = vpop.f32.mrf.mxu0
          %v3608 = vadd.f32 %v3366, %v3607
          %v3609 = vpop.f32.mrf.mxu0
          %v3610 = vadd.f32 %v3370, %v3609
          %v3611 = vpop.f32.mrf.mxu0
          %v3612 = vadd.f32 %v3366, %v3611
          %v3613 = vpop.f32.mrf.mxu0
          %v3614 = vadd.f32 %v3370, %v3613
          %3615 = vmatprep.mubr.bf16.mxu0 %v3324
          %3616 = vmatmul.mubr.bf16.gmra.mxu0 %v3323
          %v3617 = vpop.f32.mrf.mxu0
          %v3618 = vadd.f32 %v3366, %v3617
          %v3619 = vpop.f32.mrf.mxu0
          %v3620 = vadd.f32 %v3370, %v3619
          %v3621 = vpop.f32.mrf.mxu0
          %v3622 = vadd.f32 %v3366, %v3621
          %v3623 = vpop.f32.mrf.mxu0
          %v3624 = vadd.f32 %v3370, %v3623
          %3625 = vmatprep.mubr.bf16.mxu0 %v3326
          %3626 = vmatmul.mubr.bf16.gmra.mxu0 %v3325
          %v3627 = vpop.f32.mrf.mxu0
          %v3628 = vadd.f32 %v3366, %v3627
          %v3629 = vpop.f32.mrf.mxu0
          %v3630 = vadd.f32 %v3370, %v3629
          %v3631 = vpop.f32.mrf.mxu0
          %v3632 = vadd.f32 %v3366, %v3631
          %v3633 = vpop.f32.mrf.mxu0
          %v3634 = vadd.f32 %v3370, %v3633
          %3635 = vmatprep.mubr.bf16.mxu0 %v3328
          %3636 = vmatmul.mubr.bf16.gmra.mxu0 %v3327
          %v3637 = vpop.f32.mrf.mxu0
          %v3638 = vadd.f32 %v3366, %v3637
          %v3639 = vpop.f32.mrf.mxu0
          %v3640 = vadd.f32 %v3370, %v3639
          %v3641 = vpop.f32.mrf.mxu0
          %v3642 = vadd.f32 %v3366, %v3641
          %v3643 = vpop.f32.mrf.mxu0
          %v3644 = vadd.f32 %v3370, %v3643
          %3645 = vdwg.mxu0
          %v3646 = vadd.f32 %v3568, %v3570
          %3647 = vadd.xlane.f32.xlu0 %v3646
          %v3648 = vpop.xlane.xlu0 %3647
          %v3649 = vadd.f32 %v3572, %v3574
          %3650 = vadd.xlane.f32.xlu0 %v3649
          %v3651 = vpop.xlane.xlu0 %3650
          %v3652 = vadd.f32 %v3578, %v3580
          %3653 = vadd.xlane.f32.xlu0 %v3652
          %v3654 = vpop.xlane.xlu0 %3653
          %v3655 = vadd.f32 %v3582, %v3584
          %3656 = vadd.xlane.f32.xlu0 %v3655
          %v3657 = vpop.xlane.xlu0 %3656
          %v3658 = vadd.f32 %v3588, %v3590
          %3659 = vadd.xlane.f32.xlu0 %v3658
          %v3660 = vpop.xlane.xlu0 %3659
          %v3661 = vadd.f32 %v3592, %v3594
          %3662 = vadd.xlane.f32.xlu0 %v3661
          %v3663 = vpop.xlane.xlu0 %3662
          %v3664 = vadd.f32 %v3598, %v3600
          %3665 = vadd.xlane.f32.xlu0 %v3664
          %v3666 = vpop.xlane.xlu0 %3665
          %v3667 = vadd.f32 %v3602, %v3604
          %3668 = vadd.xlane.f32.xlu0 %v3667
          %v3669 = vpop.xlane.xlu0 %3668
          %v3670 = vadd.f32 %v3608, %v3610
          %3671 = vadd.xlane.f32.xlu0 %v3670
          %v3672 = vpop.xlane.xlu0 %3671
          %v3673 = vadd.f32 %v3612, %v3614
          %3674 = vadd.xlane.f32.xlu0 %v3673
          %v3675 = vpop.xlane.xlu0 %3674
          %v3676 = vadd.f32 %v3618, %v3620
          %3677 = vadd.xlane.f32.xlu0 %v3676
          %v3678 = vpop.xlane.xlu0 %3677
          %v3679 = vadd.f32 %v3622, %v3624
          %3680 = vadd.xlane.f32.xlu0 %v3679
          %v3681 = vpop.xlane.xlu0 %3680
          %v3682 = vadd.f32 %v3628, %v3630
          %3683 = vadd.xlane.f32.xlu0 %v3682
          %v3684 = vpop.xlane.xlu0 %3683
          %v3685 = vadd.f32 %v3632, %v3634
          %3686 = vadd.xlane.f32.xlu0 %v3685
          %v3687 = vpop.xlane.xlu0 %3686
          %v3688 = vadd.f32 %v3638, %v3640
          %3689 = vadd.xlane.f32.xlu0 %v3688
          %v3690 = vpop.xlane.xlu0 %3689
          %v3691 = vadd.f32 %v3642, %v3644
          %3692 = vadd.xlane.f32.xlu0 %v3691
          %v3693 = vpop.xlane.xlu0 %3692
          %v3694 = vrcp.pop 256.0
          %v3695 = vmul.f32 %v3648, %v3694
          %v3696 = vmul.f32 %v3651, %v3694
          %v3697 = vmul.f32 %v3654, %v3694
          %v3698 = vmul.f32 %v3657, %v3694
          %v3699 = vmul.f32 %v3660, %v3694
          %v3700 = vmul.f32 %v3663, %v3694
          %v3701 = vmul.f32 %v3666, %v3694
          %v3702 = vmul.f32 %v3669, %v3694
          %v3703 = vmul.f32 %v3672, %v3694
          %v3704 = vmul.f32 %v3675, %v3694
          %v3705 = vmul.f32 %v3678, %v3694
          %v3706 = vmul.f32 %v3681, %v3694
          %v3707 = vmul.f32 %v3684, %v3694
          %v3708 = vmul.f32 %v3687, %v3694
          %v3709 = vmul.f32 %v3690, %v3694
          %v3710 = vmul.f32 %v3693, %v3694
          %v3711 = vsub.f32 %v3568, %v3695
          %v3712 = vsub.f32 %v3570, %v3695
          %v3713 = vsub.f32 %v3572, %v3696
          %v3714 = vsub.f32 %v3574, %v3696
          %v3715 = vsub.f32 %v3578, %v3697
          %v3716 = vsub.f32 %v3580, %v3697
          %v3717 = vsub.f32 %v3582, %v3698
          %v3718 = vsub.f32 %v3584, %v3698
          %v3719 = vsub.f32 %v3588, %v3699
          %v3720 = vsub.f32 %v3590, %v3699
          %v3721 = vsub.f32 %v3592, %v3700
          %v3722 = vsub.f32 %v3594, %v3700
          %v3723 = vsub.f32 %v3598, %v3701
          %v3724 = vsub.f32 %v3600, %v3701
          %v3725 = vsub.f32 %v3602, %v3702
          %v3726 = vsub.f32 %v3604, %v3702
          %v3727 = vsub.f32 %v3608, %v3703
          %v3728 = vsub.f32 %v3610, %v3703
          %v3729 = vsub.f32 %v3612, %v3704
          %v3730 = vsub.f32 %v3614, %v3704
          %v3731 = vsub.f32 %v3618, %v3705
          %v3732 = vsub.f32 %v3620, %v3705
          %v3733 = vsub.f32 %v3622, %v3706
          %v3734 = vsub.f32 %v3624, %v3706
          %v3735 = vsub.f32 %v3628, %v3707
          %v3736 = vsub.f32 %v3630, %v3707
          %v3737 = vsub.f32 %v3632, %v3708
          %v3738 = vsub.f32 %v3634, %v3708
          %v3739 = vsub.f32 %v3638, %v3709
          %v3740 = vsub.f32 %v3640, %v3709
          %v3741 = vsub.f32 %v3642, %v3710
          %v3742 = vsub.f32 %v3644, %v3710
          %v3743 = vmul.f32 %v3711, %v3711
          %v3744 = vmul.f32 %v3712, %v3712
          %v3745 = vmul.f32 %v3713, %v3713
          %v3746 = vmul.f32 %v3714, %v3714
          %v3747 = vmul.f32 %v3715, %v3715
          %v3748 = vmul.f32 %v3716, %v3716
          %v3749 = vmul.f32 %v3717, %v3717
          %v3750 = vmul.f32 %v3718, %v3718
          %v3751 = vmul.f32 %v3719, %v3719
          %v3752 = vmul.f32 %v3720, %v3720
          %v3753 = vmul.f32 %v3721, %v3721
          %v3754 = vmul.f32 %v3722, %v3722
          %v3755 = vmul.f32 %v3723, %v3723
          %v3756 = vmul.f32 %v3724, %v3724
          %v3757 = vmul.f32 %v3725, %v3725
          %v3758 = vmul.f32 %v3726, %v3726
          %v3759 = vmul.f32 %v3727, %v3727
          %v3760 = vmul.f32 %v3728, %v3728
          %v3761 = vmul.f32 %v3729, %v3729
          %v3762 = vmul.f32 %v3730, %v3730
          %v3763 = vmul.f32 %v3731, %v3731
          %v3764 = vmul.f32 %v3732, %v3732
          %v3765 = vmul.f32 %v3733, %v3733
          %v3766 = vmul.f32 %v3734, %v3734
          %v3767 = vmul.f32 %v3735, %v3735
          %v3768 = vmul.f32 %v3736, %v3736
          %v3769 = vmul.f32 %v3737, %v3737
          %v3770 = vmul.f32 %v3738, %v3738
          %v3771 = vmul.f32 %v3739, %v3739
          %v3772 = vmul.f32 %v3740, %v3740
          %v3773 = vmul.f32 %v3741, %v3741
          %v3774 = vmul.f32 %v3742, %v3742
          %v3775 = vadd.f32 %v3743, %v3744
          %3776 = vadd.xlane.f32.xlu0 %v3775
          %v3777 = vpop.xlane.xlu0 %3776
          %v3778 = vadd.f32 %v3745, %v3746
          %3779 = vadd.xlane.f32.xlu0 %v3778
          %v3780 = vpop.xlane.xlu0 %3779
          %v3781 = vadd.f32 %v3747, %v3748
          %3782 = vadd.xlane.f32.xlu0 %v3781
          %v3783 = vpop.xlane.xlu0 %3782
          %v3784 = vadd.f32 %v3749, %v3750
          %3785 = vadd.xlane.f32.xlu0 %v3784
          %v3786 = vpop.xlane.xlu0 %3785
          %v3787 = vadd.f32 %v3751, %v3752
          %3788 = vadd.xlane.f32.xlu0 %v3787
          %v3789 = vpop.xlane.xlu0 %3788
          %v3790 = vadd.f32 %v3753, %v3754
          %3791 = vadd.xlane.f32.xlu0 %v3790
          %v3792 = vpop.xlane.xlu0 %3791
          %v3793 = vadd.f32 %v3755, %v3756
          %3794 = vadd.xlane.f32.xlu0 %v3793
          %v3795 = vpop.xlane.xlu0 %3794
          %v3796 = vadd.f32 %v3757, %v3758
          %3797 = vadd.xlane.f32.xlu0 %v3796
          %v3798 = vpop.xlane.xlu0 %3797
          %v3799 = vadd.f32 %v3759, %v3760
          %3800 = vadd.xlane.f32.xlu0 %v3799
          %v3801 = vpop.xlane.xlu0 %3800
          %v3802 = vadd.f32 %v3761, %v3762
          %3803 = vadd.xlane.f32.xlu0 %v3802
          %v3804 = vpop.xlane.xlu0 %3803
          %v3805 = vadd.f32 %v3763, %v3764
          %3806 = vadd.xlane.f32.xlu0 %v3805
          %v3807 = vpop.xlane.xlu0 %3806
          %v3808 = vadd.f32 %v3765, %v3766
          %3809 = vadd.xlane.f32.xlu0 %v3808
          %v3810 = vpop.xlane.xlu0 %3809
          %v3811 = vadd.f32 %v3767, %v3768
          %3812 = vadd.xlane.f32.xlu0 %v3811
          %v3813 = vpop.xlane.xlu0 %3812
          %v3814 = vadd.f32 %v3769, %v3770
          %3815 = vadd.xlane.f32.xlu0 %v3814
          %v3816 = vpop.xlane.xlu0 %3815
          %v3817 = vadd.f32 %v3771, %v3772
          %3818 = vadd.xlane.f32.xlu0 %v3817
          %v3819 = vpop.xlane.xlu0 %3818
          %v3820 = vadd.f32 %v3773, %v3774
          %3821 = vadd.xlane.f32.xlu0 %v3820
          %v3822 = vpop.xlane.xlu0 %3821
          %v3823 = vmul.f32 %v3777, %v3694
          %v3824 = vmul.f32 %v3780, %v3694
          %v3825 = vmul.f32 %v3783, %v3694
          %v3826 = vmul.f32 %v3786, %v3694
          %v3827 = vmul.f32 %v3789, %v3694
          %v3828 = vmul.f32 %v3792, %v3694
          %v3829 = vmul.f32 %v3795, %v3694
          %v3830 = vmul.f32 %v3798, %v3694
          %v3831 = vmul.f32 %v3801, %v3694
          %v3832 = vmul.f32 %v3804, %v3694
          %v3833 = vmul.f32 %v3807, %v3694
          %v3834 = vmul.f32 %v3810, %v3694
          %v3835 = vmul.f32 %v3813, %v3694
          %v3836 = vmul.f32 %v3816, %v3694
          %v3837 = vmul.f32 %v3819, %v3694
          %v3838 = vmul.f32 %v3822, %v3694
          %v3839 = vadd.f32 %v3823, 1e-06
          %v3840 = vadd.f32 %v3824, 1e-06
          %v3841 = vadd.f32 %v3825, 1e-06
          %v3842 = vadd.f32 %v3826, 1e-06
          %v3843 = vadd.f32 %v3827, 1e-06
          %v3844 = vadd.f32 %v3828, 1e-06
          %v3845 = vadd.f32 %v3829, 1e-06
          %v3846 = vadd.f32 %v3830, 1e-06
          %v3847 = vadd.f32 %v3831, 1e-06
          %v3848 = vadd.f32 %v3832, 1e-06
          %v3849 = vadd.f32 %v3833, 1e-06
          %v3850 = vadd.f32 %v3834, 1e-06
          %v3851 = vadd.f32 %v3835, 1e-06
          %v3852 = vadd.f32 %v3836, 1e-06
          %v3853 = vadd.f32 %v3837, 1e-06
          %v3854 = vadd.f32 %v3838, 1e-06
          %v3855 = vrsqrt.pop %v3839
          %v3856 = vrsqrt.pop %v3840
          %v3857 = vrsqrt.pop %v3841
          %v3858 = vrsqrt.pop %v3842
          %v3859 = vrsqrt.pop %v3843
          %v3860 = vrsqrt.pop %v3844
          %v3861 = vrsqrt.pop %v3845
          %v3862 = vrsqrt.pop %v3846
          %v3863 = vrsqrt.pop %v3847
          %v3864 = vrsqrt.pop %v3848
          %v3865 = vrsqrt.pop %v3849
          %v3866 = vrsqrt.pop %v3850
          %v3867 = vrsqrt.pop %v3851
          %v3868 = vrsqrt.pop %v3852
          %v3869 = vrsqrt.pop %v3853
          %v3870 = vrsqrt.pop %v3854
          %v3871 = vmul.f32 %v3711, %v3855
          %v3872 = vmul.f32 %v3712, %v3855
          %v3873 = vmul.f32 %v3713, %v3856
          %v3874 = vmul.f32 %v3714, %v3856
          %v3875 = vmul.f32 %v3715, %v3857
          %v3876 = vmul.f32 %v3716, %v3857
          %v3877 = vmul.f32 %v3717, %v3858
          %v3878 = vmul.f32 %v3718, %v3858
          %v3879 = vmul.f32 %v3719, %v3859
          %v3880 = vmul.f32 %v3720, %v3859
          %v3881 = vmul.f32 %v3721, %v3860
          %v3882 = vmul.f32 %v3722, %v3860
          %v3883 = vmul.f32 %v3723, %v3861
          %v3884 = vmul.f32 %v3724, %v3861
          %v3885 = vmul.f32 %v3725, %v3862
          %v3886 = vmul.f32 %v3726, %v3862
          %v3887 = vmul.f32 %v3727, %v3863
          %v3888 = vmul.f32 %v3728, %v3863
          %v3889 = vmul.f32 %v3729, %v3864
          %v3890 = vmul.f32 %v3730, %v3864
          %v3891 = vmul.f32 %v3731, %v3865
          %v3892 = vmul.f32 %v3732, %v3865
          %v3893 = vmul.f32 %v3733, %v3866
          %v3894 = vmul.f32 %v3734, %v3866
          %v3895 = vmul.f32 %v3735, %v3867
          %v3896 = vmul.f32 %v3736, %v3867
          %v3897 = vmul.f32 %v3737, %v3868
          %v3898 = vmul.f32 %v3738, %v3868
          %v3899 = vmul.f32 %v3739, %v3869
          %v3900 = vmul.f32 %v3740, %v3869
          %v3901 = vmul.f32 %v3741, %v3870
          %v3902 = vmul.f32 %v3742, %v3870
          %v3903 = vld [vmem:[%s7] sm:$0x3]
          %v3905 = vlaneseq
          %v3906 = vshrl.u32 %v3905, 7
          %v3907 = vsub.s32 0, %v3906
          %v3908 = vrot.slane %v3903, %v3907
          %v3909 = vlaneseq
          %v3910 = vshrl.u32 %v3909, 7
          %v3911 = vsub.s32 1, %v3910
          %v3912 = vrot.slane %v3903, %v3911
          %v3915 = vmul.f32 %v3871, %v3908
          %v3916 = vmul.f32 %v3872, %v3912
          %v3917 = vmul.f32 %v3873, %v3908
          %v3918 = vmul.f32 %v3874, %v3912
          %v3919 = vmul.f32 %v3875, %v3908
          %v3920 = vmul.f32 %v3876, %v3912
          %v3921 = vmul.f32 %v3877, %v3908
          %v3922 = vmul.f32 %v3878, %v3912
          %v3923 = vmul.f32 %v3879, %v3908
          %v3924 = vmul.f32 %v3880, %v3912
          %v3925 = vmul.f32 %v3881, %v3908
          %v3926 = vmul.f32 %v3882, %v3912
          %v3927 = vmul.f32 %v3883, %v3908
          %v3928 = vmul.f32 %v3884, %v3912
          %v3929 = vmul.f32 %v3885, %v3908
          %v3930 = vmul.f32 %v3886, %v3912
          %v3931 = vmul.f32 %v3887, %v3908
          %v3932 = vmul.f32 %v3888, %v3912
          %v3933 = vmul.f32 %v3889, %v3908
          %v3934 = vmul.f32 %v3890, %v3912
          %v3935 = vmul.f32 %v3891, %v3908
          %v3936 = vmul.f32 %v3892, %v3912
          %v3937 = vmul.f32 %v3893, %v3908
          %v3938 = vmul.f32 %v3894, %v3912
          %v3939 = vmul.f32 %v3895, %v3908
          %v3940 = vmul.f32 %v3896, %v3912
          %v3941 = vmul.f32 %v3897, %v3908
          %v3942 = vmul.f32 %v3898, %v3912
          %v3943 = vmul.f32 %v3899, %v3908
          %v3944 = vmul.f32 %v3900, %v3912
          %v3945 = vmul.f32 %v3901, %v3908
          %v3946 = vmul.f32 %v3902, %v3912
          %v3947 = vld [vmem:[%s8] sm:$0x3]
          %v3949 = vlaneseq
          %v3950 = vshrl.u32 %v3949, 7
          %v3951 = vsub.s32 0, %v3950
          %v3952 = vrot.slane %v3947, %v3951
          %v3953 = vlaneseq
          %v3954 = vshrl.u32 %v3953, 7
          %v3955 = vsub.s32 1, %v3954
          %v3956 = vrot.slane %v3947, %v3955
          %v3959 = vadd.f32 %v3915, %v3952
          %v3960 = vadd.f32 %v3916, %v3956
          %v3961 = vadd.f32 %v3917, %v3952
          %v3962 = vadd.f32 %v3918, %v3956
          %v3963 = vadd.f32 %v3919, %v3952
          %v3964 = vadd.f32 %v3920, %v3956
          %v3965 = vadd.f32 %v3921, %v3952
          %v3966 = vadd.f32 %v3922, %v3956
          %v3967 = vadd.f32 %v3923, %v3952
          %v3968 = vadd.f32 %v3924, %v3956
          %v3969 = vadd.f32 %v3925, %v3952
          %v3970 = vadd.f32 %v3926, %v3956
          %v3971 = vadd.f32 %v3927, %v3952
          %v3972 = vadd.f32 %v3928, %v3956
          %v3973 = vadd.f32 %v3929, %v3952
          %v3974 = vadd.f32 %v3930, %v3956
          %v3975 = vadd.f32 %v3931, %v3952
          %v3976 = vadd.f32 %v3932, %v3956
          %v3977 = vadd.f32 %v3933, %v3952
          %v3978 = vadd.f32 %v3934, %v3956
          %v3979 = vadd.f32 %v3935, %v3952
          %v3980 = vadd.f32 %v3936, %v3956
          %v3981 = vadd.f32 %v3937, %v3952
          %v3982 = vadd.f32 %v3938, %v3956
          %v3983 = vadd.f32 %v3939, %v3952
          %v3984 = vadd.f32 %v3940, %v3956
          %v3985 = vadd.f32 %v3941, %v3952
          %v3986 = vadd.f32 %v3942, %v3956
          %v3987 = vadd.f32 %v3943, %v3952
          %v3988 = vadd.f32 %v3944, %v3956
          %v3989 = vadd.f32 %v3945, %v3952
          %v3990 = vadd.f32 %v3946, %v3956
          %3991 = vst [vmem:[%s469] sm:$0xff] %v3959
          %3992 = vst [vmem:[%s469 + $0x8] sm:$0xff] %v3960
          %3993 = vst [vmem:[%s469 + $0x10] sm:$0xff] %v3961
          %3994 = vst [vmem:[%s469 + $0x18] sm:$0xff] %v3962
          %3995 = vst [vmem:[%s469 + $0x20] sm:$0xff] %v3963
          %3996 = vst [vmem:[%s469 + $0x28] sm:$0xff] %v3964
          %3997 = vst [vmem:[%s469 + $0x30] sm:$0xff] %v3965
          %3998 = vst [vmem:[%s469 + $0x38] sm:$0xff] %v3966
          %3999 = vst [vmem:[%s469 + $0x40] sm:$0xff] %v3967
          %4000 = vst [vmem:[%s469 + $0x48] sm:$0xff] %v3968
          %4001 = vst [vmem:[%s469 + $0x50] sm:$0xff] %v3969
          %4002 = vst [vmem:[%s469 + $0x58] sm:$0xff] %v3970
          %4003 = vst [vmem:[%s469 + $0x60] sm:$0xff] %v3971
          %4004 = vst [vmem:[%s469 + $0x68] sm:$0xff] %v3972
          %4005 = vst [vmem:[%s469 + $0x70] sm:$0xff] %v3973
          %4006 = vst [vmem:[%s469 + $0x78] sm:$0xff] %v3974
          %4007 = vst [vmem:[%s469 + $0x80] sm:$0xff] %v3975
          %4008 = vst [vmem:[%s469 + $0x88] sm:$0xff] %v3976
          %4009 = vst [vmem:[%s469 + $0x90] sm:$0xff] %v3977
          %4010 = vst [vmem:[%s469 + $0x98] sm:$0xff] %v3978
          %4011 = vst [vmem:[%s469 + $0xa0] sm:$0xff] %v3979
          %4012 = vst [vmem:[%s469 + $0xa8] sm:$0xff] %v3980
          %4013 = vst [vmem:[%s469 + $0xb0] sm:$0xff] %v3981
          %4014 = vst [vmem:[%s469 + $0xb8] sm:$0xff] %v3982
          %4015 = vst [vmem:[%s469 + $0xc0] sm:$0xff] %v3983
          %4016 = vst [vmem:[%s469 + $0xc8] sm:$0xff] %v3984
          %4017 = vst [vmem:[%s469 + $0xd0] sm:$0xff] %v3985
          %4018 = vst [vmem:[%s469 + $0xd8] sm:$0xff] %v3986
          %4019 = vst [vmem:[%s469 + $0xe0] sm:$0xff] %v3987
          %4020 = vst [vmem:[%s469 + $0xe8] sm:$0xff] %v3988
          %4021 = vst [vmem:[%s469 + $0xf0] sm:$0xff] %v3989
          %4022 = vst [vmem:[%s469 + $0xf8] sm:$0xff] %v3990
        $region84: #{tpu_custom_call.1} parent=55 // pred_fallthru
          _
        %s4023 = sand.u32 %s257, 1
        %s4024 = scalar_lea.sflag [#allocation8], %s4023
        %s4025 = sand.u32 %s257, 1
        %s4026 = smul.addr %s4025, 256
        %s4027 = scalar_lea.vmem [#allocation15], %s4026
        %s4028 = sand.u32 %s285, 1
        %s4029 = scalar_lea.sflag [#allocation17], %s4028
        %s4030 = sand.u32 %s285, 1
        %s4031 = smul.addr %s4030, 256
        %s4032 = scalar_lea.vmem [#allocation16], %s4031
        // Predicated region
        $region85: #{tpu_custom_call.1} parent=55 // pred_check
          %p4033 = pneg %p267
        $region86: #{tpu_custom_call.1} parent=55 // pred_check_branch
          %4035 = sbr.rel (%p4033) target = $region88
        $region87: #{tpu_custom_call.1} parent=55 // pred_region
          %s4036 = smul.u32 16, %s37
          %s4038 = ssub.s32 4096, 4096
          %4039 = vsyncadd %s4024, %s4038
          %s4040 = smul.addr %s4036, 2
          %s4041 = smul.addr %s4040, 128
          %s4042 = scalar_lea.hbm %s9, %s4041
          %s4043 = sshll.u32 %s4027, 4
          %s4044 = int_to_ptr.vmem [resolvable:$true] %s4043
          %4049 = dma.vmem_to_hbm [thread:$0]  %s4044, 4096, %s4042, %s4024, 256, 256, 16
        $region88: #{tpu_custom_call.1} parent=55 // pred_fallthru
          _
        // Predicated region
        $region89: #{tpu_custom_call.1} parent=55 // pred_check
          %p4050 = pneg %p295
        $region90: #{tpu_custom_call.1} parent=55 // pred_check_branch
          %4052 = sbr.rel (%p4050) target = $region92
        $region91: #{tpu_custom_call.1} parent=55 // pred_region
          #allocation19 [shape = 'u32[6]{0}', space=smem, size = 0x18, scoped, tag = 'DMA stride descriptor']
          %s4053 = smul.u32 16, %s37
          %s4055 = ssub.s32 4096, 4096
          %4056 = vsyncadd %s4029, %s4055
          %s4057 = sadd.s32 %s38, %s4053
          %s4058 = smul.addr %s4057, 128
          %s4059 = scalar_lea.hbm %s10, %s4058
          %s4061 = sshll.u32 1, 14
          %s4062 = sxor.u32 4294967295, %s4061
          %s4065 = sshll.u32 7, 18
          %s4066 = sxor.u32 4294967295, %s4065
          %s4067 = sand.u32 0, %s4066
          %s4069 = sor.u32 %s4067, 0
          %s4070 = sshll.u32 %s4032, 4
          %s4071 = int_to_ptr.vmem [resolvable:$true] %s4070
          %4077 = sst [smem:[#allocation19]] 2048
          %s4078 = scalar_lea.smem [#allocation19], 1
          %4079 = sst [smem:[%s4078]] 4096
          %s4080 = scalar_lea.smem [#allocation19], 2
          %4081 = sst [smem:[%s4080]] 16
          %s4082 = scalar_lea.smem [#allocation19], 3
          %4083 = sst [smem:[%s4082]] 128
          %s4084 = scalar_lea.smem [#allocation19], 4
          %4085 = sst [smem:[%s4084]] 128
          %s4086 = scalar_lea.smem [#allocation19], 5
          %4087 = sst [smem:[%s4086]] 8
          %4089 = dma.general %s4071, 4096, %s4059, %s4029, 131072, [#allocation19], %s4069, 0
        $region92: #{tpu_custom_call.1} parent=55 // pred_fallthru
          _
      $region56: #{tpu_custom_call.1} parent=5 // pred_fallthru
        _
      %p4090 = scmp.le.s32.totalorder 2, %s28
      // Predicated region
      $region93: #{tpu_custom_call.1} parent=5 // pred_check
        %p4091 = pneg %p4090
      $region94: #{tpu_custom_call.1} parent=5 // pred_check_branch
        %4093 = sbr.rel (%p4091) target = $region96
      $region95: #{tpu_custom_call.1} parent=5 // pred_region
        %s4094 = ssub.s32 %s28, 2
        // Predicated region
        $region97: #{tpu_custom_call.1} parent=95 // pred_check
          %p4095 = pneg %p273
        $region98: #{tpu_custom_call.1} parent=95 // pred_check_branch
          %4097 = sbr.rel (%p4095) target = $region100
        $region99: #{tpu_custom_call.1} parent=95 // pred_region
          %s4098 = sand.u32 %s258, 1
          %s4099 = scalar_lea.sflag [#allocation8], %s4098
          %s4100 = sand.u32 %s258, 1
          %s4101 = smul.addr %s4100, 256
          %s4102 = scalar_lea.vmem [#allocation15], %s4101
          %4103 = dma.done %s4099, 4096
        $region100: #{tpu_custom_call.1} parent=95 // pred_fallthru
          _
        // Predicated region
        $region101: #{tpu_custom_call.1} parent=95 // pred_check
          %p4104 = pneg %p301
        $region102: #{tpu_custom_call.1} parent=95 // pred_check_branch
          %4106 = sbr.rel (%p4104) target = $region104
        $region103: #{tpu_custom_call.1} parent=95 // pred_region
          %s4107 = sand.u32 %s286, 1
          %s4108 = scalar_lea.sflag [#allocation17], %s4107
          %s4109 = sand.u32 %s286, 1
          %s4110 = smul.addr %s4109, 256
          %s4111 = scalar_lea.vmem [#allocation16], %s4110
          %4112 = dma.done %s4108, 4096
        $region104: #{tpu_custom_call.1} parent=95 // pred_fallthru
          _
      $region96: #{tpu_custom_call.1} parent=5 // pred_fallthru
        _
    $region6: #{tpu_custom_call.1} parent=1 // loop_footer
      %s32 = sadd.s32 1, %s28
    $region7: #{tpu_custom_call.1} parent=1 // loop_footer_branch
      %27 = sbr.rel target = $region3
    $region8: #{tpu_custom_call.1} parent=1 // loop_exit
      _
    %4113 = vsyncpa [#allocation7], 1
    %s4114 = scalar_lea.sflag [#allocation7], 1
    %4115 = vsyncpa %s4114, 1
    %4116 = vsyncpa [#allocation10], 1
    %4117 = vsyncpa [#allocation13], 1
    %4118 = vsyncpa [#allocation8], 1
    %s4119 = scalar_lea.sflag [#allocation8], 1
    %4120 = vsyncpa %s4119, 1
    %4121 = vsyncpa [#allocation17], 1
    %s4122 = scalar_lea.sflag [#allocation17], 1
    %4123 = vsyncpa %s4122, 1

</llo_original>
